<compile_context>
chip_gen: v5e
topology: v5e:2x2
jax: 0.10.0
libtpu: 0.0.40
codegen_flags: <defaults>
</compile_context>

<pallas_src>
import math
import numpy as np
import jax
import jax.numpy as jnp
from jax.experimental import pallas as pl
from jax.experimental.pallas import tpu as pltpu

SHIFT = 10          # pixel shift used by ShiftViTBlockv2.shift_feat
PAD = 16            # sublane-aligned halo padding for the shift
NEG_SLOPE = 0.01    # nn.LeakyReLU default negative slope
assert SHIFT <= PAD, "halo padding must cover the shift distance"


def _leaky(y):
    return jnp.where(y >= 0, y, NEG_SLOPE * y)


def _hswish(y):                 # x * relu6(x + 3) / 6
    return y * jnp.clip(y + 3.0, 0.0, 6.0) * (1.0 / 6.0)


# ---------------------------------------------------------------------------
# Stage 1: norm1 -> shift_feat -> gate -> add1 -> CoordAtt pools + convs.
# Grid = (N,), one batch image per step.  Outputs: add1, a_h, a_w.
# ---------------------------------------------------------------------------
def _make_stage1_kernel(H, W, C, g):
    def kernel(x_ref, s1_ref, t1_ref, ssv_ref, tsv_ref,
               caw1_ref, cab1_ref, caw2_ref, cab2_ref,
               cow1_ref, cos_ref, cot_ref,
               cowh_ref, cobh_ref, coww_ref, cobw_ref,
               add1_ref, ah_ref, aw_ref, pad_ref):
        x = x_ref[0]                                        # (H, W, C)
        xn = x * s1_ref[0] + t1_ref[0]                      # norm1 (folded BN)

        # --- ShiftViT shift_feat via zero halo buffer (static slices). ---
        # TODO(synk): swap to pltpu.roll + edge masks once rank-3 sublane
        # rotation is verified across target generations.
        pad_ref[...] = jnp.zeros(pad_ref.shape, jnp.float32)
        pad_ref[PAD:PAD + H, PAD:PAD + W, :] = xn
        w_l = pad_ref[PAD:PAD + H, PAD + SHIFT:PAD + SHIFT + W, :]   # x[..., j+10]
        w_r = pad_ref[PAD:PAD + H, PAD - SHIFT:PAD - SHIFT + W, :]   # x[..., j-10]
        h_l = pad_ref[PAD + SHIFT:PAD + SHIFT + H, PAD:PAD + W, :]
        h_r = pad_ref[PAD - SHIFT:PAD - SHIFT + H, PAD:PAD + W, :]

        cidx = jax.lax.broadcasted_iota(jnp.int32, (H, W, C), 2)
        xs = jnp.where(cidx < g, w_l,
             jnp.where(cidx < 2 * g, w_r,
             jnp.where(cidx < 3 * g, h_l,
             jnp.where(cidx < 4 * g, h_r, xn))))

        # --- ShiftViT channel-attention gate (BN + avg/max pool + MLP). ---
        xsn = xs * ssv_ref[0] + tsv_ref[0]
        avg = jnp.mean(xsn, axis=(0, 1)).reshape(1, C)
        mx = jnp.max(xsn, axis=(0, 1)).reshape(1, C)

        def ca_mlp(v):
            h = _leaky(jnp.dot(v, caw1_ref[...],
                               preferred_element_type=jnp.float32) + cab1_ref[...])
            return jnp.dot(h, caw2_ref[...],
                           preferred_element_type=jnp.float32) + cab2_ref[...]

        att = jax.nn.sigmoid(ca_mlp(avg) + ca_mlp(mx))      # (1, C)

        # shift_vit residual + SHA residual: add1 = (xs + xs*att) + x
        add1 = xs * (1.0 + att) + x
        add1_ref[0] = add1

        # --- CoordAtt: H/W pools + 1x1 convs (kept entirely in VMEM). ---
        ph = jnp.mean(add1, axis=1)                         # (H, C)  avg over W
        pw = jnp.mean(add1, axis=0)                         # (W, C)  avg over H

        def coord_branch(pool, wo_ref, bo_ref):
            y = jnp.dot(pool, cow1_ref[...], preferred_element_type=jnp.float32)
            y = _hswish(y * cos_ref[...] + cot_ref[...])    # conv1 bias folded into BN
            a = jnp.dot(y, wo_ref[...], preferred_element_type=jnp.float32) + bo_ref[...]
            return jax.nn.sigmoid(a)

        ah_ref[0] = coord_branch(ph, cowh_ref, cobh_ref)    # (H, C)
        aw_ref[0] = coord_branch(pw, coww_ref, cobw_ref)    # (W, C)
    return kernel


# ---------------------------------------------------------------------------
# Stage 2: coord-att apply + norm2(BN) + MLP + residual + out conv.
# Grid = (N, H // TH); one (TH*W, C) row tile per step, single HBM pass.
# ---------------------------------------------------------------------------
def _make_stage2_kernel(TH, W, C, hid, out_ch):
    def kernel(a1_ref, ah_ref, aw_ref, s2_ref, t2_ref,
               w1_ref, b1_ref, w2_ref, b2_ref, ow_ref, ob_ref, o_ref):
        a1 = a1_ref[0]                                      # (TH, W, C)
        ca = a1 * ah_ref[0][:, None, :] * aw_ref[0][None, :, :]
        can = ca * s2_ref[0] + t2_ref[0]                    # norm2 (folded BN)

        rows = TH * W
        can2 = can.reshape(rows, C)
        h1 = _leaky(jnp.dot(can2, w1_ref[...],
                            preferred_element_type=jnp.float32) + b1_ref[...])
        mlp = jnp.dot(h1, w2_ref[...],
                      preferred_element_type=jnp.float32) + b2_ref[...]
        add2 = a1.reshape(rows, C) + mlp                    # SHA second residual
        out = jnp.dot(add2, ow_ref[...],
                      preferred_element_type=jnp.float32) + ob_ref[...]
        o_ref[0] = out.reshape(TH, W, out_ch)
    return kernel


def _pick_row_tile(H, W, target_rows=512):
    """Largest H-tile (multiple of 8, or full H) with TH*W <= target rows."""
    if H * W <= target_rows:
        return H
    cands = [th for th in range(8, H + 1, 8) if H % th == 0 and th * W <= target_rows]
    return max(cands) if cands else H


# ---------------------------------------------------------------------------
# Forward pass (wrapper / orchestration).
# ---------------------------------------------------------------------------
def sha_forward(x_nchw, p):
    N, C, H, W = x_nchw.shape
    x = jnp.transpose(x_nchw, (0, 2, 3, 1)).astype(jnp.float32)   # NCHW -> NHWC
    g = C // p["n_div"]
    hid = p["ca_fc1_w"].shape[1]
    mip = p["co_conv1_w"].shape[1]
    out_ch = p["out_w"].shape[1]
    row = lambda v: v.reshape(1, -1).astype(jnp.float32)

    # fold the CoordAtt conv1 bias into the (inference-mode) BN affine
    co_t_eff = p["co_conv1_b"] * p["co_bn_s"] + p["co_bn_t"]

    def const2(shape):                  # stage-1 broadcast params (1-D grid)
        return pl.BlockSpec(shape, lambda n: (0, 0))

    add1, ah, aw = pl.pallas_call(
        _make_stage1_kernel(H, W, C, g),
        out_shape=(jax.ShapeDtypeStruct((N, H, W, C), jnp.float32),
                   jax.ShapeDtypeStruct((N, H, C), jnp.float32),
                   jax.ShapeDtypeStruct((N, W, C), jnp.float32)),
        grid=(N,),
        in_specs=[
            pl.BlockSpec((1, H, W, C), lambda n: (n, 0, 0, 0)),
            const2((1, C)), const2((1, C)),                     # norm1 scale/shift
            const2((1, C)), const2((1, C)),                     # shift_vit.norm2
            const2((C, hid)), const2((1, hid)),                 # CA fc1
            const2((hid, C)), const2((1, C)),                   # CA fc2
            const2((C, mip)), const2((1, mip)), const2((1, mip)),  # CoordAtt conv1+bn
            const2((mip, C)), const2((1, C)),                   # CoordAtt conv_h
            const2((mip, C)), const2((1, C)),                   # CoordAtt conv_w
        ],
        out_specs=(pl.BlockSpec((1, H, W, C), lambda n: (n, 0, 0, 0)),
                   pl.BlockSpec((1, H, C), lambda n: (n, 0, 0)),
                   pl.BlockSpec((1, W, C), lambda n: (n, 0, 0))),
        scratch_shapes=[pltpu.VMEM((H + 2 * PAD, W + 2 * PAD, C), jnp.float32)],
        compiler_params=pltpu.CompilerParams(
            dimension_semantics=("parallel",),
            vmem_limit_bytes=64 * 1024 * 1024),
    )(x,
      row(p["bn1_s"]), row(p["bn1_t"]),
      row(p["bnsv_s"]), row(p["bnsv_t"]),
      p["ca_fc1_w"], row(p["ca_fc1_b"]),
      p["ca_fc2_w"], row(p["ca_fc2_b"]),
      p["co_conv1_w"], row(p["co_bn_s"]), row(co_t_eff),
      p["co_convh_w"], row(p["co_convh_b"]),
      p["co_convw_w"], row(p["co_convw_b"]))

    TH = _pick_row_tile(H, W)

    def const2b(shape):                 # stage-2 broadcast params (2-D grid)
        return pl.BlockSpec(shape, lambda n, h: (0, 0))

    out = pl.pallas_call(
        _make_stage2_kernel(TH, W, C, hid, out_ch),
        out_shape=jax.ShapeDtypeStruct((N, H, W, out_ch), jnp.float32),
        grid=(N, H // TH),
        in_specs=[
            pl.BlockSpec((1, TH, W, C), lambda n, h: (n, h, 0, 0)),
            pl.BlockSpec((1, TH, C), lambda n, h: (n, h, 0)),
            pl.BlockSpec((1, W, C), lambda n, h: (n, 0, 0)),
            const2b((1, C)), const2b((1, C)),                   # norm2 scale/shift
            const2b((C, hid)), const2b((1, hid)),               # mlp conv1
            const2b((hid, C)), const2b((1, C)),                 # mlp conv2
            const2b((C, out_ch)), const2b((1, out_ch)),         # out conv
        ],
        out_specs=pl.BlockSpec((1, TH, W, out_ch), lambda n, h: (n, h, 0, 0)),
        compiler_params=pltpu.CompilerParams(
            dimension_semantics=("parallel", "parallel"),
            vmem_limit_bytes=64 * 1024 * 1024),
    )(add1, ah, aw,
      row(p["bn2_s"]), row(p["bn2_t"]),
      p["mlp_w1"], row(p["mlp_b1"]),
      p["mlp_w2"], row(p["mlp_b2"]),
      p["out_w"], row(p["out_b"]))

    return jnp.transpose(out, (0, 3, 1, 2))                     # NHWC -> NCHW


# ---------------------------------------------------------------------------
# Pure-JAX reference (NHWC math mirrored from the PyTorch module).
# ---------------------------------------------------------------------------
def sha_ref(x_nchw, p):
    x = jnp.transpose(x_nchw, (0, 2, 3, 1)).astype(jnp.float32)
    N, H, W, C = x.shape
    g = C // p["n_div"]
    bn = lambda v, s, t: v * s + t

    xn = bn(x, p["bn1_s"], p["bn1_t"])
    xs = jnp.zeros_like(xn)
    if g > 0:
        xs = xs.at[:, :, :W - SHIFT, 0:g].set(xn[:, :, SHIFT:, 0:g])
        xs = xs.at[:, :, SHIFT:, g:2 * g].set(xn[:, :, :W - SHIFT, g:2 * g])
        xs = xs.at[:, :H - SHIFT, :, 2 * g:3 * g].set(xn[:, SHIFT:, :, 2 * g:3 * g])
        xs = xs.at[:, SHIFT:, :, 3 * g:4 * g].set(xn[:, :H - SHIFT, :, 3 * g:4 * g])
    xs = xs.at[:, :, :, 4 * g:].set(xn[:, :, :, 4 * g:])

    xsn = bn(xs, p["bnsv_s"], p["bnsv_t"])
    avg = xsn.mean(axis=(1, 2))
    mx = xsn.max(axis=(1, 2))

    def camlp(v):
        h = _leaky(v @ p["ca_fc1_w"] + p["ca_fc1_b"])
        return h @ p["ca_fc2_w"] + p["ca_fc2_b"]

    att = jax.nn.sigmoid(camlp(avg) + camlp(mx))
    add1 = xs * (1.0 + att[:, None, None, :]) + x

    ph = add1.mean(axis=2)
    pw = add1.mean(axis=1)
    y = jnp.concatenate([ph, pw], axis=1) @ p["co_conv1_w"] + p["co_conv1_b"]
    y = y * p["co_bn_s"] + p["co_bn_t"]
    y = y * jnp.clip(y + 3.0, 0.0, 6.0) / 6.0
    ah = jax.nn.sigmoid(y[:, :H, :] @ p["co_convh_w"] + p["co_convh_b"])
    aw = jax.nn.sigmoid(y[:, H:, :] @ p["co_convw_w"] + p["co_convw_b"])

    can = bn(add1 * ah[:, :, None, :] * aw[:, None, :, :], p["bn2_s"], p["bn2_t"])
    mlp_out = _leaky(can @ p["mlp_w1"] + p["mlp_b1"]) @ p["mlp_w2"] + p["mlp_b2"]
    out = (add1 + mlp_out) @ p["out_w"] + p["out_b"]
    return jnp.transpose(out, (0, 3, 1, 2))


# ---------------------------------------------------------------------------
# Deterministic parameter initialization (shapes per SHA.__init__).
# ---------------------------------------------------------------------------
def init_params(key, dim, out_ch, *, ratio=4.0, n_div=12, reduction=32):
    hid = int(dim * ratio)
    mip = max(8, dim // reduction)
    keys = jax.random.split(key, 12)

    def bn_fold(k, c, eps=1e-5):
        k1, k2, k3, k4 = jax.random.split(k, 4)
        gamma = jax.random.uniform(k1, (c,), minval=0.8, maxval=1.2)
        beta = 0.1 * jax.random.normal(k2, (c,))
        mean = 0.1 * jax.random.normal(k3, (c,))
        var = jax.random.uniform(k4, (c,), minval=0.5, maxval=1.5)
        s = gamma / jnp.sqrt(var + eps)
        return s.astype(jnp.float32), (beta - mean * s).astype(jnp.float32)

    def conv_init(k, cin, cout):
        k1, k2 = jax.random.split(k)
        bound = 1.0 / math.sqrt(cin)
        w = jax.random.uniform(k1, (cin, cout), minval=-bound, maxval=bound)
        b = jax.random.uniform(k2, (cout,), minval=-bound, maxval=bound)
        return w.astype(jnp.float32), b.astype(jnp.float32)

    p = {"n_div": n_div}
    p["bn1_s"], p["bn1_t"] = bn_fold(keys[0], dim)                   # SHA.norm1
    p["bnsv_s"], p["bnsv_t"] = bn_fold(keys[1], dim)                 # shift_vit.norm2
    p["ca_fc1_w"], p["ca_fc1_b"] = conv_init(keys[2], dim, hid)      # ChannelAttention2.fc1
    p["ca_fc2_w"], p["ca_fc2_b"] = conv_init(keys[3], hid, dim)      # ChannelAttention2.fc2
    p["co_conv1_w"], p["co_conv1_b"] = conv_init(keys[4], dim, mip)  # CoordAtt.conv1
    p["co_bn_s"], p["co_bn_t"] = bn_fold(keys[5], mip)               # CoordAtt.bn1
    p["co_convh_w"], p["co_convh_b"] = conv_init(keys[6], mip, dim)
    p["co_convw_w"], p["co_convw_b"] = conv_init(keys[7], mip, dim)
    p["bn2_s"], p["bn2_t"] = bn_fold(keys[8], dim)                   # SHA.norm2
    p["mlp_w1"], p["mlp_b1"] = conv_init(keys[9], dim, hid)          # SHA.mlp[0]
    p["mlp_w2"], p["mlp_b2"] = conv_init(keys[10], hid, dim)         # SHA.mlp[2]
    p["out_w"], p["out_b"] = conv_init(keys[11], dim, out_ch)        # SHA.out
    return p


if __name__ == "__main__":
    key = jax.random.PRNGKey(0)
    kx, kp = jax.random.split(key)
    N, C, H, W = 2, 16, 16, 16       # dim=16 -> g = 16//12 = 1 shifted channel per group
    OUT = 8
    x = jax.random.normal(kx, (N, C, H, W), dtype=jnp.float32)
    params = init_params(kp, C, OUT, ratio=4.0, n_div=12)

    y = jax.block_until_ready(sha_forward(x, params))
    y_ref = jax.block_until_ready(sha_ref(x, params))
    np.testing.assert_allclose(np.asarray(y), np.asarray(y_ref), rtol=2e-2, atol=2e-2)
    print("KERNEL_OK")
</pallas_src>

<mosaic_0001>
module attributes {stable_mosaic.version = 11 : i64} {
  func.func @kernel(%arg0: i32, %arg1: memref<1x16x16x16xf32, #tpu.memory_space<vmem>>, %arg2: memref<1x16xf32, #tpu.memory_space<vmem>>, %arg3: memref<1x16xf32, #tpu.memory_space<vmem>>, %arg4: memref<1x16xf32, #tpu.memory_space<vmem>>, %arg5: memref<1x16xf32, #tpu.memory_space<vmem>>, %arg6: memref<16x64xf32, #tpu.memory_space<vmem>>, %arg7: memref<1x64xf32, #tpu.memory_space<vmem>>, %arg8: memref<64x16xf32, #tpu.memory_space<vmem>>, %arg9: memref<1x16xf32, #tpu.memory_space<vmem>>, %arg10: memref<16x8xf32, #tpu.memory_space<vmem>>, %arg11: memref<1x8xf32, #tpu.memory_space<vmem>>, %arg12: memref<1x8xf32, #tpu.memory_space<vmem>>, %arg13: memref<8x16xf32, #tpu.memory_space<vmem>>, %arg14: memref<1x16xf32, #tpu.memory_space<vmem>>, %arg15: memref<8x16xf32, #tpu.memory_space<vmem>>, %arg16: memref<1x16xf32, #tpu.memory_space<vmem>>, %arg17: memref<1x16x16x16xf32, #tpu.memory_space<vmem>>, %arg18: memref<1x16x16xf32, #tpu.memory_space<vmem>>, %arg19: memref<1x16x16xf32, #tpu.memory_space<vmem>>, %arg20: memref<48x48x16xf32, #tpu.memory_space<vmem>>) attributes {dimension_semantics = [#tpu.dimension_semantics<parallel>], iteration_bounds = array<i64: 2>, scalar_prefetch = 0 : i64, scratch_operands = 1 : i64, tpu.core_type = #tpu.core_type<tc>, window_params = [{transform_indices = @transform_0, window_bounds = array<i64: 1, 16, 16, 16>}, {pipeline_mode = #tpu.pipeline_mode<synchronous>, transform_indices = @transform_1, window_bounds = array<i64: 1, 16>}, {pipeline_mode = #tpu.pipeline_mode<synchronous>, transform_indices = @transform_2, window_bounds = array<i64: 1, 16>}, {pipeline_mode = #tpu.pipeline_mode<synchronous>, transform_indices = @transform_3, window_bounds = array<i64: 1, 16>}, {pipeline_mode = #tpu.pipeline_mode<synchronous>, transform_indices = @transform_4, window_bounds = array<i64: 1, 16>}, {pipeline_mode = #tpu.pipeline_mode<synchronous>, transform_indices = @transform_5, window_bounds = array<i64: 16, 64>}, {pipeline_mode = #tpu.pipeline_mode<synchronous>, transform_indices = @transform_6, window_bounds = array<i64: 1, 64>}, {pipeline_mode = #tpu.pipeline_mode<synchronous>, transform_indices = @transform_7, window_bounds = array<i64: 64, 16>}, {pipeline_mode = #tpu.pipeline_mode<synchronous>, transform_indices = @transform_8, window_bounds = array<i64: 1, 16>}, {pipeline_mode = #tpu.pipeline_mode<synchronous>, transform_indices = @transform_9, window_bounds = array<i64: 16, 8>}, {pipeline_mode = #tpu.pipeline_mode<synchronous>, transform_indices = @transform_10, window_bounds = array<i64: 1, 8>}, {pipeline_mode = #tpu.pipeline_mode<synchronous>, transform_indices = @transform_11, window_bounds = array<i64: 1, 8>}, {pipeline_mode = #tpu.pipeline_mode<synchronous>, transform_indices = @transform_12, window_bounds = array<i64: 8, 16>}, {pipeline_mode = #tpu.pipeline_mode<synchronous>, transform_indices = @transform_13, window_bounds = array<i64: 1, 16>}, {pipeline_mode = #tpu.pipeline_mode<synchronous>, transform_indices = @transform_14, window_bounds = array<i64: 8, 16>}, {pipeline_mode = #tpu.pipeline_mode<synchronous>, transform_indices = @transform_15, window_bounds = array<i64: 1, 16>}, {transform_indices = @transform_16, window_bounds = array<i64: 1, 16, 16, 16>}, {transform_indices = @transform_17, window_bounds = array<i64: 1, 16, 16>}, {transform_indices = @transform_18, window_bounds = array<i64: 1, 16, 16>}]} {
    %c0 = arith.constant 0 : index
    %c0_0 = arith.constant 0 : index
    %c0_1 = arith.constant 0 : index
    %c0_2 = arith.constant 0 : index
    %0 = vector.load %arg1[%c0, %c0_0, %c0_1, %c0_2] : memref<1x16x16x16xf32, #tpu.memory_space<vmem>>, vector<1x16x16x16xf32>
    %1 = vector.shape_cast %0 : vector<1x16x16x16xf32> to vector<16x16x16xf32>
    %c0_3 = arith.constant 0 : index
    %c0_4 = arith.constant 0 : index
    %2 = vector.load %arg2[%c0_3, %c0_4] : memref<1x16xf32, #tpu.memory_space<vmem>>, vector<1x16xf32>
    %3 = vector.shape_cast %2 : vector<1x16xf32> to vector<16xf32>
    %4 = vector.shape_cast %3 : vector<16xf32> to vector<1x1x16xf32>
    %5 = vector.broadcast %4 : vector<1x1x16xf32> to vector<16x16x16xf32>
    %6 = arith.mulf %1, %5 : vector<16x16x16xf32>
    %c0_5 = arith.constant 0 : index
    %c0_6 = arith.constant 0 : index
    %7 = vector.load %arg3[%c0_5, %c0_6] : memref<1x16xf32, #tpu.memory_space<vmem>>, vector<1x16xf32>
    %8 = vector.shape_cast %7 : vector<1x16xf32> to vector<16xf32>
    %9 = vector.shape_cast %8 : vector<16xf32> to vector<1x1x16xf32>
    %10 = vector.broadcast %9 : vector<1x1x16xf32> to vector<16x16x16xf32>
    %11 = arith.addf %6, %10 : vector<16x16x16xf32>
    %cst = arith.constant 0.000000e+00 : f32
    %12 = vector.broadcast %cst : f32 to vector<48x48x16xf32>
    %c0_7 = arith.constant 0 : index
    %c0_8 = arith.constant 0 : index
    %c0_9 = arith.constant 0 : index
    %13 = vector.load %arg20[%c0_7, %c0_8, %c0_9] : memref<48x48x16xf32, #tpu.memory_space<vmem>>, vector<48x48x16xf32>
    tpu.vector_store %arg20[%c0_7, %c0_8, %c0_9], %12 {strides = array<i32>} : memref<48x48x16xf32, #tpu.memory_space<vmem>>, vector<48x48x16xf32>,
    %c16 = arith.constant 16 : index
    %c16_10 = arith.constant 16 : index
    %c0_11 = arith.constant 0 : index
    %14 = vector.load %arg20[%c16, %c16_10, %c0_11] : memref<48x48x16xf32, #tpu.memory_space<vmem>>, vector<16x16x16xf32>
    tpu.vector_store %arg20[%c16, %c16_10, %c0_11], %11 {strides = array<i32>} : memref<48x48x16xf32, #tpu.memory_space<vmem>>, vector<16x16x16xf32>,
    %c16_12 = arith.constant 16 : index
    %c26 = arith.constant 26 : index
    %c0_13 = arith.constant 0 : index
    %15 = vector.load %arg20[%c16_12, %c26, %c0_13] : memref<48x48x16xf32, #tpu.memory_space<vmem>>, vector<16x16x16xf32>
    %c16_14 = arith.constant 16 : index
    %c6 = arith.constant 6 : index
    %c0_15 = arith.constant 0 : index
    %16 = vector.load %arg20[%c16_14, %c6, %c0_15] : memref<48x48x16xf32, #tpu.memory_space<vmem>>, vector<16x16x16xf32>
    %c26_16 = arith.constant 26 : index
    %c16_17 = arith.constant 16 : index
    %c0_18 = arith.constant 0 : index
    %17 = vector.load %arg20[%c26_16, %c16_17, %c0_18] : memref<48x48x16xf32, #tpu.memory_space<vmem>>, vector<16x16x16xf32>
    %c6_19 = arith.constant 6 : index
    %c16_20 = arith.constant 16 : index
    %c0_21 = arith.constant 0 : index
    %18 = vector.load %arg20[%c6_19, %c16_20, %c0_21] : memref<48x48x16xf32, #tpu.memory_space<vmem>>, vector<16x16x16xf32>
    %19 = tpu.iota {dimensions = array<i32: 2>} : vector<16x16x16xi32>
    %c1_i32 = arith.constant 1 : i32
    %20 = vector.broadcast %c1_i32 : i32 to vector<16x16x16xi32>
    %21 = arith.cmpi slt, %19, %20 : vector<16x16x16xi32>
    %c2_i32 = arith.constant 2 : i32
    %22 = vector.broadcast %c2_i32 : i32 to vector<16x16x16xi32>
    %23 = arith.cmpi slt, %19, %22 : vector<16x16x16xi32>
    %c3_i32 = arith.constant 3 : i32
    %24 = vector.broadcast %c3_i32 : i32 to vector<16x16x16xi32>
    %25 = arith.cmpi slt, %19, %24 : vector<16x16x16xi32>
    %c4_i32 = arith.constant 4 : i32
    %26 = vector.broadcast %c4_i32 : i32 to vector<16x16x16xi32>
    %27 = arith.cmpi slt, %19, %26 : vector<16x16x16xi32>
    %28 = arith.select %27, %18, %11 : vector<16x16x16xi1>, vector<16x16x16xf32>
    %29 = arith.select %25, %17, %28 : vector<16x16x16xi1>, vector<16x16x16xf32>
    %30 = arith.select %23, %16, %29 : vector<16x16x16xi1>, vector<16x16x16xf32>
    %31 = arith.select %21, %15, %30 : vector<16x16x16xi1>, vector<16x16x16xf32>
    %c0_22 = arith.constant 0 : index
    %c0_23 = arith.constant 0 : index
    %32 = vector.load %arg4[%c0_22, %c0_23] : memref<1x16xf32, #tpu.memory_space<vmem>>, vector<1x16xf32>
    %33 = vector.shape_cast %32 : vector<1x16xf32> to vector<16xf32>
    %34 = vector.shape_cast %33 : vector<16xf32> to vector<1x1x16xf32>
    %35 = vector.broadcast %34 : vector<1x1x16xf32> to vector<16x16x16xf32>
    %36 = arith.mulf %31, %35 : vector<16x16x16xf32>
    %c0_24 = arith.constant 0 : index
    %c0_25 = arith.constant 0 : index
    %37 = vector.load %arg5[%c0_24, %c0_25] : memref<1x16xf32, #tpu.memory_space<vmem>>, vector<1x16xf32>
    %38 = vector.shape_cast %37 : vector<1x16xf32> to vector<16xf32>
    %39 = vector.shape_cast %38 : vector<16xf32> to vector<1x1x16xf32>
    %40 = vector.broadcast %39 : vector<1x1x16xf32> to vector<16x16x16xf32>
    %41 = arith.addf %36, %40 : vector<16x16x16xf32>
    %cst_26 = arith.constant dense<0.000000e+00> : vector<16xf32>
    %42 = vector.multi_reduction <add>, %41, %cst_26 [0, 1] : vector<16x16x16xf32> to vector<16xf32>
    %cst_27 = arith.constant 2.560000e+02 : f32
    %43 = vector.broadcast %cst_27 : f32 to vector<16xf32>
    %44 = arith.divf %42, %43 : vector<16xf32>
    %45 = vector.shape_cast %44 : vector<16xf32> to vector<1x16xf32>
    %cst_28 = arith.constant dense<0xFF800000> : vector<16xf32>
    %46 = vector.multi_reduction <maximumf>, %41, %cst_28 [0, 1] : vector<16x16x16xf32> to vector<16xf32>
    %47 = vector.shape_cast %46 : vector<16xf32> to vector<1x16xf32>
    %c0_29 = arith.constant 0 : index
    %c0_30 = arith.constant 0 : index
    %48 = vector.load %arg6[%c0_29, %c0_30] : memref<16x64xf32, #tpu.memory_space<vmem>>, vector<16x64xf32>
    %cst_31 = arith.constant dense<0.000000e+00> : vector<1x64xf32>
    %49 = tpu.matmul %45, %48, %cst_31 {dimension_numbers = #tpu.dot_dimension_numbers<[1], [0], [0], [1], [0, 0, 1, 1], [], []>} : vector<1x16xf32>, vector<16x64xf32>, vector<1x64xf32> -> vector<1x64xf32>
    %c0_32 = arith.constant 0 : index
    %c0_33 = arith.constant 0 : index
    %50 = vector.load %arg7[%c0_32, %c0_33] : memref<1x64xf32, #tpu.memory_space<vmem>>, vector<1x64xf32>
    %51 = arith.addf %49, %50 : vector<1x64xf32>
    %cst_34 = arith.constant 0.000000e+00 : f32
    %52 = vector.broadcast %cst_34 : f32 to vector<1x64xf32>
    %53 = arith.cmpf oge, %51, %52 : vector<1x64xf32>
    %cst_35 = arith.constant 0.00999999977 : f32
    %54 = vector.broadcast %cst_35 : f32 to vector<1x64xf32>
    %55 = arith.mulf %54, %51 : vector<1x64xf32>
    %56 = arith.select %53, %51, %55 : vector<1x64xi1>, vector<1x64xf32>
    %c0_36 = arith.constant 0 : index
    %c0_37 = arith.constant 0 : index
    %57 = vector.load %arg8[%c0_36, %c0_37] : memref<64x16xf32, #tpu.memory_space<vmem>>, vector<64x16xf32>
    %cst_38 = arith.constant dense<0.000000e+00> : vector<1x16xf32>
    %58 = tpu.matmul %56, %57, %cst_38 {dimension_numbers = #tpu.dot_dimension_numbers<[1], [0], [0], [1], [0, 0, 1, 1], [], []>} : vector<1x64xf32>, vector<64x16xf32>, vector<1x16xf32> -> vector<1x16xf32>
    %c0_39 = arith.constant 0 : index
    %c0_40 = arith.constant 0 : index
    %59 = vector.load %arg9[%c0_39, %c0_40] : memref<1x16xf32, #tpu.memory_space<vmem>>, vector<1x16xf32>
    %60 = arith.addf %58, %59 : vector<1x16xf32>
    %c0_41 = arith.constant 0 : index
    %c0_42 = arith.constant 0 : index
    %61 = vector.load %arg6[%c0_41, %c0_42] : memref<16x64xf32, #tpu.memory_space<vmem>>, vector<16x64xf32>
    %cst_43 = arith.constant dense<0.000000e+00> : vector<1x64xf32>
    %62 = tpu.matmul %47, %61, %cst_43 {dimension_numbers = #tpu.dot_dimension_numbers<[1], [0], [0], [1], [0, 0, 1, 1], [], []>} : vector<1x16xf32>, vector<16x64xf32>, vector<1x64xf32> -> vector<1x64xf32>
    %c0_44 = arith.constant 0 : index
    %c0_45 = arith.constant 0 : index
    %63 = vector.load %arg7[%c0_44, %c0_45] : memref<1x64xf32, #tpu.memory_space<vmem>>, vector<1x64xf32>
    %64 = arith.addf %62, %63 : vector<1x64xf32>
    %cst_46 = arith.constant 0.000000e+00 : f32
    %65 = vector.broadcast %cst_46 : f32 to vector<1x64xf32>
    %66 = arith.cmpf oge, %64, %65 : vector<1x64xf32>
    %cst_47 = arith.constant 0.00999999977 : f32
    %67 = vector.broadcast %cst_47 : f32 to vector<1x64xf32>
    %68 = arith.mulf %67, %64 : vector<1x64xf32>
    %69 = arith.select %66, %64, %68 : vector<1x64xi1>, vector<1x64xf32>
    %c0_48 = arith.constant 0 : index
    %c0_49 = arith.constant 0 : index
    %70 = vector.load %arg8[%c0_48, %c0_49] : memref<64x16xf32, #tpu.memory_space<vmem>>, vector<64x16xf32>
    %cst_50 = arith.constant dense<0.000000e+00> : vector<1x16xf32>
    %71 = tpu.matmul %69, %70, %cst_50 {dimension_numbers = #tpu.dot_dimension_numbers<[1], [0], [0], [1], [0, 0, 1, 1], [], []>} : vector<1x64xf32>, vector<64x16xf32>, vector<1x16xf32> -> vector<1x16xf32>
    %c0_51 = arith.constant 0 : index
    %c0_52 = arith.constant 0 : index
    %72 = vector.load %arg9[%c0_51, %c0_52] : memref<1x16xf32, #tpu.memory_space<vmem>>, vector<1x16xf32>
    %73 = arith.addf %71, %72 : vector<1x16xf32>
    %74 = arith.addf %60, %73 : vector<1x16xf32>
    %75 = arith.negf %74 : vector<1x16xf32>
    %76 = math.exp %75 : vector<1x16xf32>
    %cst_53 = arith.constant 1.000000e+00 : f32
    %77 = vector.broadcast %cst_53 : f32 to vector<1x16xf32>
    %78 = arith.addf %77, %76 : vector<1x16xf32>
    %79 = arith.divf %77, %78 : vector<1x16xf32>
    %cst_54 = arith.constant 1.000000e+00 : f32
    %80 = vector.broadcast %cst_54 : f32 to vector<1x16xf32>
    %81 = arith.addf %80, %79 : vector<1x16xf32>
    %82 = vector.shape_cast %81 : vector<1x16xf32> to vector<1x1x16xf32>
    %83 = vector.broadcast %82 : vector<1x1x16xf32> to vector<16x16x16xf32>
    %84 = arith.mulf %31, %83 : vector<16x16x16xf32>
    %85 = arith.addf %84, %1 : vector<16x16x16xf32>
    %c0_55 = arith.constant 0 : index
    %c0_56 = arith.constant 0 : index
    %c0_57 = arith.constant 0 : index
    %c0_58 = arith.constant 0 : index
    %86 = vector.load %arg17[%c0_55, %c0_56, %c0_57, %c0_58] : memref<1x16x16x16xf32, #tpu.memory_space<vmem>>, vector<1x16x16x16xf32>
    %87 = vector.shape_cast %86 : vector<1x16x16x16xf32> to vector<16x16x16xf32>
    %88 = vector.shape_cast %85 : vector<16x16x16xf32> to vector<1x16x16x16xf32>
    tpu.vector_store %arg17[%c0_55, %c0_56, %c0_57, %c0_58], %88 {strides = array<i32>} : memref<1x16x16x16xf32, #tpu.memory_space<vmem>>, vector<1x16x16x16xf32>,
    %cst_59 = arith.constant dense<0.000000e+00> : vector<16x16xf32>
    %89 = vector.multi_reduction <add>, %85, %cst_59 [1] : vector<16x16x16xf32> to vector<16x16xf32>
    %cst_60 = arith.constant 1.600000e+01 : f32
    %90 = vector.broadcast %cst_60 : f32 to vector<16x16xf32>
    %91 = arith.divf %89, %90 : vector<16x16xf32>
    %cst_61 = arith.constant dense<0.000000e+00> : vector<16x16xf32>
    %92 = vector.multi_reduction <add>, %85, %cst_61 [0] : vector<16x16x16xf32> to vector<16x16xf32>
    %cst_62 = arith.constant 1.600000e+01 : f32
    %93 = vector.broadcast %cst_62 : f32 to vector<16x16xf32>
    %94 = arith.divf %92, %93 : vector<16x16xf32>
    %c0_63 = arith.constant 0 : index
    %c0_64 = arith.constant 0 : index
    %95 = vector.load %arg10[%c0_63, %c0_64] : memref<16x8xf32, #tpu.memory_space<vmem>>, vector<16x8xf32>
    %cst_65 = arith.constant dense<0.000000e+00> : vector<16x8xf32>
    %96 = tpu.matmul %91, %95, %cst_65 {dimension_numbers = #tpu.dot_dimension_numbers<[1], [0], [0], [1], [0, 0, 1, 1], [], []>} : vector<16x16xf32>, vector<16x8xf32>, vector<16x8xf32> -> vector<16x8xf32>
    %c0_66 = arith.constant 0 : index
    %c0_67 = arith.constant 0 : index
    %97 = vector.load %arg11[%c0_66, %c0_67] : memref<1x8xf32, #tpu.memory_space<vmem>>, vector<1x8xf32>
    %98 = vector.broadcast %97 : vector<1x8xf32> to vector<16x8xf32>
    %99 = arith.mulf %96, %98 : vector<16x8xf32>
    %c0_68 = arith.constant 0 : index
    %c0_69 = arith.constant 0 : index
    %100 = vector.load %arg12[%c0_68, %c0_69] : memref<1x8xf32, #tpu.memory_space<vmem>>, vector<1x8xf32>
    %101 = vector.broadcast %100 : vector<1x8xf32> to vector<16x8xf32>
    %102 = arith.addf %99, %101 : vector<16x8xf32>
    %cst_70 = arith.constant 3.000000e+00 : f32
    %103 = vector.broadcast %cst_70 : f32 to vector<16x8xf32>
    %104 = arith.addf %102, %103 : vector<16x8xf32>
    %cst_71 = arith.constant 0.000000e+00 : f32
    %cst_72 = arith.constant 6.000000e+00 : f32
    %105 = vector.broadcast %cst_71 : f32 to vector<16x8xf32>
    %106 = arith.maximumf %105, %104 : vector<16x8xf32>
    %107 = vector.broadcast %cst_72 : f32 to vector<16x8xf32>
    %108 = arith.minimumf %107, %106 : vector<16x8xf32>
    %109 = arith.mulf %102, %108 : vector<16x8xf32>
    %cst_73 = arith.constant 0.166666672 : f32
    %110 = vector.broadcast %cst_73 : f32 to vector<16x8xf32>
    %111 = arith.mulf %109, %110 : vector<16x8xf32>
    %c0_74 = arith.constant 0 : index
    %c0_75 = arith.constant 0 : index
    %112 = vector.load %arg13[%c0_74, %c0_75] : memref<8x16xf32, #tpu.memory_space<vmem>>, vector<8x16xf32>
    %cst_76 = arith.constant dense<0.000000e+00> : vector<16x16xf32>
    %113 = tpu.matmul %111, %112, %cst_76 {dimension_numbers = #tpu.dot_dimension_numbers<[1], [0], [0], [1], [0, 0, 1, 1], [], []>} : vector<16x8xf32>, vector<8x16xf32>, vector<16x16xf32> -> vector<16x16xf32>
    %c0_77 = arith.constant 0 : index
    %c0_78 = arith.constant 0 : index
    %114 = vector.load %arg14[%c0_77, %c0_78] : memref<1x16xf32, #tpu.memory_space<vmem>>, vector<1x16xf32>
    %115 = vector.broadcast %114 : vector<1x16xf32> to vector<16x16xf32>
    %116 = arith.addf %113, %115 : vector<16x16xf32>
    %117 = arith.negf %116 : vector<16x16xf32>
    %118 = math.exp %117 : vector<16x16xf32>
    %cst_79 = arith.constant 1.000000e+00 : f32
    %119 = vector.broadcast %cst_79 : f32 to vector<16x16xf32>
    %120 = arith.addf %119, %118 : vector<16x16xf32>
    %121 = arith.divf %119, %120 : vector<16x16xf32>
    %c0_80 = arith.constant 0 : index
    %c0_81 = arith.constant 0 : index
    %c0_82 = arith.constant 0 : index
    %122 = vector.load %arg18[%c0_80, %c0_81, %c0_82] : memref<1x16x16xf32, #tpu.memory_space<vmem>>, vector<1x16x16xf32>
    %123 = vector.shape_cast %122 : vector<1x16x16xf32> to vector<16x16xf32>
    %124 = vector.shape_cast %121 : vector<16x16xf32> to vector<1x16x16xf32>
    tpu.vector_store %arg18[%c0_80, %c0_81, %c0_82], %124 {strides = array<i32>} : memref<1x16x16xf32, #tpu.memory_space<vmem>>, vector<1x16x16xf32>,
    %c0_83 = arith.constant 0 : index
    %c0_84 = arith.constant 0 : index
    %125 = vector.load %arg10[%c0_83, %c0_84] : memref<16x8xf32, #tpu.memory_space<vmem>>, vector<16x8xf32>
    %cst_85 = arith.constant dense<0.000000e+00> : vector<16x8xf32>
    %126 = tpu.matmul %94, %125, %cst_85 {dimension_numbers = #tpu.dot_dimension_numbers<[1], [0], [0], [1], [0, 0, 1, 1], [], []>} : vector<16x16xf32>, vector<16x8xf32>, vector<16x8xf32> -> vector<16x8xf32>
    %c0_86 = arith.constant 0 : index
    %c0_87 = arith.constant 0 : index
    %127 = vector.load %arg11[%c0_86, %c0_87] : memref<1x8xf32, #tpu.memory_space<vmem>>, vector<1x8xf32>
    %128 = vector.broadcast %127 : vector<1x8xf32> to vector<16x8xf32>
    %129 = arith.mulf %126, %128 : vector<16x8xf32>
    %c0_88 = arith.constant 0 : index
    %c0_89 = arith.constant 0 : index
    %130 = vector.load %arg12[%c0_88, %c0_89] : memref<1x8xf32, #tpu.memory_space<vmem>>, vector<1x8xf32>
    %131 = vector.broadcast %130 : vector<1x8xf32> to vector<16x8xf32>
    %132 = arith.addf %129, %131 : vector<16x8xf32>
    %cst_90 = arith.constant 3.000000e+00 : f32
    %133 = vector.broadcast %cst_90 : f32 to vector<16x8xf32>
    %134 = arith.addf %132, %133 : vector<16x8xf32>
    %cst_91 = arith.constant 0.000000e+00 : f32
    %cst_92 = arith.constant 6.000000e+00 : f32
    %135 = vector.broadcast %cst_91 : f32 to vector<16x8xf32>
    %136 = arith.maximumf %135, %134 : vector<16x8xf32>
    %137 = vector.broadcast %cst_92 : f32 to vector<16x8xf32>
    %138 = arith.minimumf %137, %136 : vector<16x8xf32>
    %139 = arith.mulf %132, %138 : vector<16x8xf32>
    %cst_93 = arith.constant 0.166666672 : f32
    %140 = vector.broadcast %cst_93 : f32 to vector<16x8xf32>
    %141 = arith.mulf %139, %140 : vector<16x8xf32>
    %c0_94 = arith.constant 0 : index
    %c0_95 = arith.constant 0 : index
    %142 = vector.load %arg15[%c0_94, %c0_95] : memref<8x16xf32, #tpu.memory_space<vmem>>, vector<8x16xf32>
    %cst_96 = arith.constant dense<0.000000e+00> : vector<16x16xf32>
    %143 = tpu.matmul %141, %142, %cst_96 {dimension_numbers = #tpu.dot_dimension_numbers<[1], [0], [0], [1], [0, 0, 1, 1], [], []>} : vector<16x8xf32>, vector<8x16xf32>, vector<16x16xf32> -> vector<16x16xf32>
    %c0_97 = arith.constant 0 : index
    %c0_98 = arith.constant 0 : index
    %144 = vector.load %arg16[%c0_97, %c0_98] : memref<1x16xf32, #tpu.memory_space<vmem>>, vector<1x16xf32>
    %145 = vector.broadcast %144 : vector<1x16xf32> to vector<16x16xf32>
    %146 = arith.addf %143, %145 : vector<16x16xf32>
    %147 = arith.negf %146 : vector<16x16xf32>
    %148 = math.exp %147 : vector<16x16xf32>
    %cst_99 = arith.constant 1.000000e+00 : f32
    %149 = vector.broadcast %cst_99 : f32 to vector<16x16xf32>
    %150 = arith.addf %149, %148 : vector<16x16xf32>
    %151 = arith.divf %149, %150 : vector<16x16xf32>
    %c0_100 = arith.constant 0 : index
    %c0_101 = arith.constant 0 : index
    %c0_102 = arith.constant 0 : index
    %152 = vector.load %arg19[%c0_100, %c0_101, %c0_102] : memref<1x16x16xf32, #tpu.memory_space<vmem>>, vector<1x16x16xf32>
    %153 = vector.shape_cast %152 : vector<1x16x16xf32> to vector<16x16xf32>
    %154 = vector.shape_cast %151 : vector<16x16xf32> to vector<1x16x16xf32>
    tpu.vector_store %arg19[%c0_100, %c0_101, %c0_102], %154 {strides = array<i32>} : memref<1x16x16xf32, #tpu.memory_space<vmem>>, vector<1x16x16xf32>,
    return
  }
  func.func @transform_0(%arg0: i32) -> (i32, i32, i32, i32) {
    %c0_i32 = arith.constant 0 : i32
    %c0_i32_0 = arith.constant 0 : i32
    %c0_i32_1 = arith.constant 0 : i32
    %c0_i32_2 = arith.constant 0 : i32
    return %arg0, %c0_i32, %c0_i32_0, %c0_i32_1 : i32, i32, i32, i32
  }
  func.func @transform_1(%arg0: i32) -> (i32, i32) {
    %c0_i32 = arith.constant 0 : i32
    %c0_i32_0 = arith.constant 0 : i32
    %c0_i32_1 = arith.constant 0 : i32
    return %c0_i32, %c0_i32_0 : i32, i32
  }
  func.func @transform_2(%arg0: i32) -> (i32, i32) {
    %c0_i32 = arith.constant 0 : i32
    %c0_i32_0 = arith.constant 0 : i32
    %c0_i32_1 = arith.constant 0 : i32
    return %c0_i32, %c0_i32_0 : i32, i32
  }
  func.func @transform_3(%arg0: i32) -> (i32, i32) {
    %c0_i32 = arith.constant 0 : i32
    %c0_i32_0 = arith.constant 0 : i32
    %c0_i32_1 = arith.constant 0 : i32
    return %c0_i32, %c0_i32_0 : i32, i32
  }
  func.func @transform_4(%arg0: i32) -> (i32, i32) {
    %c0_i32 = arith.constant 0 : i32
    %c0_i32_0 = arith.constant 0 : i32
    %c0_i32_1 = arith.constant 0 : i32
    return %c0_i32, %c0_i32_0 : i32, i32
  }
  func.func @transform_5(%arg0: i32) -> (i32, i32) {
    %c0_i32 = arith.constant 0 : i32
    %c0_i32_0 = arith.constant 0 : i32
    %c0_i32_1 = arith.constant 0 : i32
    return %c0_i32, %c0_i32_0 : i32, i32
  }
  func.func @transform_6(%arg0: i32) -> (i32, i32) {
    %c0_i32 = arith.constant 0 : i32
    %c0_i32_0 = arith.constant 0 : i32
    %c0_i32_1 = arith.constant 0 : i32
    return %c0_i32, %c0_i32_0 : i32, i32
  }
  func.func @transform_7(%arg0: i32) -> (i32, i32) {
    %c0_i32 = arith.constant 0 : i32
    %c0_i32_0 = arith.constant 0 : i32
    %c0_i32_1 = arith.constant 0 : i32
    return %c0_i32, %c0_i32_0 : i32, i32
  }
  func.func @transform_8(%arg0: i32) -> (i32, i32) {
    %c0_i32 = arith.constant 0 : i32
    %c0_i32_0 = arith.constant 0 : i32
    %c0_i32_1 = arith.constant 0 : i32
    return %c0_i32, %c0_i32_0 : i32, i32
  }
  func.func @transform_9(%arg0: i32) -> (i32, i32) {
    %c0_i32 = arith.constant 0 : i32
    %c0_i32_0 = arith.constant 0 : i32
    %c0_i32_1 = arith.constant 0 : i32
    return %c0_i32, %c0_i32_0 : i32, i32
  }
  func.func @transform_10(%arg0: i32) -> (i32, i32) {
    %c0_i32 = arith.constant 0 : i32
    %c0_i32_0 = arith.constant 0 : i32
    %c0_i32_1 = arith.constant 0 : i32
    return %c0_i32, %c0_i32_0 : i32, i32
  }
  func.func @transform_11(%arg0: i32) -> (i32, i32) {
    %c0_i32 = arith.constant 0 : i32
    %c0_i32_0 = arith.constant 0 : i32
    %c0_i32_1 = arith.constant 0 : i32
    return %c0_i32, %c0_i32_0 : i32, i32
  }
  func.func @transform_12(%arg0: i32) -> (i32, i32) {
    %c0_i32 = arith.constant 0 : i32
    %c0_i32_0 = arith.constant 0 : i32
    %c0_i32_1 = arith.constant 0 : i32
    return %c0_i32, %c0_i32_0 : i32, i32
  }
  func.func @transform_13(%arg0: i32) -> (i32, i32) {
    %c0_i32 = arith.constant 0 : i32
    %c0_i32_0 = arith.constant 0 : i32
    %c0_i32_1 = arith.constant 0 : i32
    return %c0_i32, %c0_i32_0 : i32, i32
  }
  func.func @transform_14(%arg0: i32) -> (i32, i32) {
    %c0_i32 = arith.constant 0 : i32
    %c0_i32_0 = arith.constant 0 : i32
    %c0_i32_1 = arith.constant 0 : i32
    return %c0_i32, %c0_i32_0 : i32, i32
  }
  func.func @transform_15(%arg0: i32) -> (i32, i32) {
    %c0_i32 = arith.constant 0 : i32
    %c0_i32_0 = arith.constant 0 : i32
    %c0_i32_1 = arith.constant 0 : i32
    return %c0_i32, %c0_i32_0 : i32, i32
  }
  func.func @transform_16(%arg0: i32) -> (i32, i32, i32, i32) {
    %c0_i32 = arith.constant 0 : i32
    %c0_i32_0 = arith.constant 0 : i32
    %c0_i32_1 = arith.constant 0 : i32
    %c0_i32_2 = arith.constant 0 : i32
    return %arg0, %c0_i32, %c0_i32_0, %c0_i32_1 : i32, i32, i32, i32
  }
  func.func @transform_17(%arg0: i32) -> (i32, i32, i32) {
    %c0_i32 = arith.constant 0 : i32
    %c0_i32_0 = arith.constant 0 : i32
    %c0_i32_1 = arith.constant 0 : i32
    return %arg0, %c0_i32, %c0_i32_0 : i32, i32, i32
  }
  func.func @transform_18(%arg0: i32) -> (i32, i32, i32) {
    %c0_i32 = arith.constant 0 : i32
    %c0_i32_0 = arith.constant 0 : i32
    %c0_i32_1 = arith.constant 0 : i32
    return %arg0, %c0_i32, %c0_i32_0 : i32, i32, i32
  }
}

</mosaic_0001>

<llo_original>
// kernel: tpu_custom_call.1
$region0: #{tpu_custom_call.1}
  #allocation0 [shape = 'u32[]', space=smem, size = 0x4, offset = 0x4, fixed_abs, tag = 'smem constant byte address 0x4 - core index']
  #allocation1 [shape = 'u32[72,128]{1,0:T(1,128)}', space=vmem, size = 0x9000, scoped, tag = 'internal scratch']
  #allocation2 [shape = 'f32[48,48,16]{2,1,0:T(8,128)}', space=vmem, size = 0x120000, scoped, tag = 'scratch operand']
  %s0 = inlined_call_operand.hbm [shape: f32[2,16,16,16], index: 0, kind: input, shape index: {}]
  %s1 = inlined_call_operand.vmem [shape: f32[1,16], index: 1, kind: input, shape index: {}]
  %s2 = inlined_call_operand.vmem [shape: f32[1,16], index: 2, kind: input, shape index: {}]
  %s3 = inlined_call_operand.vmem [shape: f32[1,16], index: 3, kind: input, shape index: {}]
  %s4 = inlined_call_operand.vmem [shape: f32[1,16], index: 4, kind: input, shape index: {}]
  %s5 = inlined_call_operand.vmem [shape: f32[16,64], index: 5, kind: input, shape index: {}]
  %s6 = inlined_call_operand.vmem [shape: f32[1,64], index: 6, kind: input, shape index: {}]
  %s7 = inlined_call_operand.vmem [shape: f32[64,16], index: 7, kind: input, shape index: {}]
  %s8 = inlined_call_operand.vmem [shape: f32[1,16], index: 8, kind: input, shape index: {}]
  %s9 = inlined_call_operand.vmem [shape: f32[16,8], index: 9, kind: input, shape index: {}]
  %s10 = inlined_call_operand.vmem [shape: f32[1,8], index: 10, kind: input, shape index: {}]
  %s11 = inlined_call_operand.vmem [shape: f32[1,8], index: 11, kind: input, shape index: {}]
  %s12 = inlined_call_operand.vmem [shape: f32[8,16], index: 12, kind: input, shape index: {}]
  %s13 = inlined_call_operand.vmem [shape: f32[1,16], index: 13, kind: input, shape index: {}]
  %s14 = inlined_call_operand.vmem [shape: f32[8,16], index: 14, kind: input, shape index: {}]
  %s15 = inlined_call_operand.vmem [shape: f32[1,16], index: 15, kind: input, shape index: {}]
  %s16 = inlined_call_operand.hbm [shape: f32[2,16,16,16], index: 16, kind: output, shape index: {0}]
  %s17 = inlined_call_operand.hbm [shape: f32[2,16,16], index: 17, kind: output, shape index: {1}]
  %s18 = inlined_call_operand.hbm [shape: f32[2,16,16], index: 18, kind: output, shape index: {2}]
  %19 = xla_tuple %s16, %s17, %s18
  %s20 = sld [smem:[#allocation0]]
  $region117: #{tpu_custom_call.1} parent=0
    _
  %s22 = ssub.s32 1, %s20
  %s23 = scalar_select 0, %s22, %s20
  $region1: #{tpu_custom_call.1} parent=0
    #allocation3 [shape = 'u8[262144]{0}', space=vmem, size = 0x40000, scoped, tag = 'input window, operand 0']
    #allocation4 [shape = 's32[2]{0}', space=sflag, size = 0x8, scoped, tag = 'scoped memory for tpu_custom_call.1']
    #allocation5 [shape = 's32[2]{0}', space=sflag, size = 0x8, scoped, tag = 'scoped memory for tpu_custom_call.1']
    #allocation6 [shape = 'u8[262144]{0}', space=vmem, size = 0x40000, scoped, tag = 'output window, operand 0']
    #allocation7 [shape = 'u8[16384]{0}', space=vmem, size = 0x4000, scoped, tag = 'output window, operand 1']
    #allocation8 [shape = 's32[2]{0}', space=sflag, size = 0x8, scoped, tag = 'scoped memory for tpu_custom_call.1']
    #allocation9 [shape = 'u8[16384]{0}', space=vmem, size = 0x4000, scoped, tag = 'output window, operand 2']
    %24 = vsyncpa [#allocation4], 0
    %s25 = scalar_lea.sflag [#allocation4], 1
    %26 = vsyncpa %s25, 0
    %27 = vsyncpa [#allocation5], 0
    %s28 = scalar_lea.sflag [#allocation5], 1
    %29 = vsyncpa %s28, 0
    %30 = vsyncpa [#allocation8], 0
    %s31 = scalar_lea.sflag [#allocation8], 1
    %32 = vsyncpa %s31, 0
    loop: start=0, step=1, limit=4
    $region2: #{tpu_custom_call.1} parent=1 // loop_pre_header
      _
    $region3: #{tpu_custom_call.1} parent=1 // loop_header
      %s34 = sphi 0, %s38
      %p35 = scmp.ge.s32.totalorder %s34, 4
      %s44 = sphi 0, %s46
      %s47 = sphi 0, %s44
      %s48 = sphi 0, %s47
      %s64 = sphi 0, %s48
      %s68 = sphi 0, %s68
      %s70 = sphi 0, %s68
      %s71 = sphi 0, %s70
      %s85 = sphi 0, %s71
      %s89 = sphi 0, %s89
      %s91 = sphi 0, %s89
      %s92 = sphi 0, %s91
      %s106 = sphi 0, %s92
      %s110 = sphi 0, %s110
      %s112 = sphi 0, %s110
      %s113 = sphi 0, %s112
      %s127 = sphi 0, %s113
      %s131 = sphi 0, %s131
      %s133 = sphi 0, %s131
      %s134 = sphi 0, %s133
      %s148 = sphi 0, %s134
      %s152 = sphi 0, %s152
      %s154 = sphi 0, %s152
      %s155 = sphi 0, %s154
      %s169 = sphi 0, %s155
      %s173 = sphi 0, %s173
      %s175 = sphi 0, %s173
      %s176 = sphi 0, %s175
      %s190 = sphi 0, %s176
      %s194 = sphi 0, %s194
      %s196 = sphi 0, %s194
      %s197 = sphi 0, %s196
      %s211 = sphi 0, %s197
      %s215 = sphi 0, %s215
      %s217 = sphi 0, %s215
      %s218 = sphi 0, %s217
      %s232 = sphi 0, %s218
      %s236 = sphi 0, %s236
      %s238 = sphi 0, %s236
      %s239 = sphi 0, %s238
      %s253 = sphi 0, %s239
      %s257 = sphi 0, %s257
      %s259 = sphi 0, %s257
      %s260 = sphi 0, %s259
      %s274 = sphi 0, %s260
      %s278 = sphi 0, %s278
      %s280 = sphi 0, %s278
      %s281 = sphi 0, %s280
      %s295 = sphi 0, %s281
      %s299 = sphi 0, %s299
      %s301 = sphi 0, %s299
      %s302 = sphi 0, %s301
      %s316 = sphi 0, %s302
      %s320 = sphi 0, %s320
      %s322 = sphi 0, %s320
      %s323 = sphi 0, %s322
      %s337 = sphi 0, %s323
      %s341 = sphi 0, %s341
      %s343 = sphi 0, %s341
      %s344 = sphi 0, %s343
      %s358 = sphi 0, %s344
      %s362 = sphi 0, %s362
      %s364 = sphi 0, %s362
      %s365 = sphi 0, %s364
      %s379 = sphi 0, %s365
      %s385 = sphi 0, %s387
      %s388 = sphi 0, %s385
      %s389 = sphi 0, %s388
      %s405 = sphi 0, %s389
      %s411 = sphi 0, %s413
      %s414 = sphi 0, %s411
      %s415 = sphi 0, %s414
      %s431 = sphi 0, %s415
      %s437 = sphi 0, %s439
      %s440 = sphi 0, %s437
      %s441 = sphi 0, %s440
      %s457 = sphi 0, %s441
    $region4: #{tpu_custom_call.1} parent=1 // loop_header_branch
      %37 = sbr.rel (%p35) target = $region8
    $region5: #{tpu_custom_call.1} parent=1 // loop_body
      %s39 = ssub.s32 %s34, 1
      %s40 = ssub.s32 %s34, 2
      %s41 = sadd.s32 %s34, 1
      %s42 = ssub.s32 %s34, %s41
      %p43 = scmp.eq.s32.totalorder %s42, 0
      %s45 = sadd.s32 %s44, 1
      %s46 = scalar_select %p43, %s44, %s45
      %p49 = pneg %p43
      %p50 = scmp.eq.s32.totalorder %s34, 1
      %p51 = por %p49, %p50
      %p52 = scmp.ne.s32.totalorder %s44, %s47
      %p53 = scmp.eq.s32.totalorder %s34, 0
      %p54 = por %p52, %p53
      %p55 = scmp.ne.s32.totalorder %s44, %s47
      %p56 = scmp.eq.s32.totalorder %s39, 1
      %p57 = por %p55, %p56
      %p58 = scmp.ne.s32.totalorder %s47, %s48
      %p59 = scmp.eq.s32.totalorder %s39, 0
      %p60 = por %p58, %p59
      %p61 = scmp.ne.s32.totalorder %s47, %s48
      %p62 = scmp.eq.s32.totalorder %s40, 1
      %p63 = por %p61, %p62
      %p65 = scmp.ne.s32.totalorder %s48, %s64
      %p66 = scmp.eq.s32.totalorder %s40, 0
      %p67 = por %p65, %p66
      %s69 = sadd.s32 %s68, 1
      %p72 = scmp.eq.s32.totalorder %s34, 1
      %p73 = scmp.ne.s32.totalorder %s68, %s70
      %p74 = scmp.eq.s32.totalorder %s34, 0
      %p75 = por %p73, %p74
      %p76 = scmp.ne.s32.totalorder %s68, %s70
      %p77 = scmp.eq.s32.totalorder %s39, 1
      %p78 = por %p76, %p77
      %p79 = scmp.ne.s32.totalorder %s70, %s71
      %p80 = scmp.eq.s32.totalorder %s39, 0
      %p81 = por %p79, %p80
      %p82 = scmp.ne.s32.totalorder %s70, %s71
      %p83 = scmp.eq.s32.totalorder %s40, 1
      %p84 = por %p82, %p83
      %p86 = scmp.ne.s32.totalorder %s71, %s85
      %p87 = scmp.eq.s32.totalorder %s40, 0
      %p88 = por %p86, %p87
      %s90 = sadd.s32 %s89, 1
      %p93 = scmp.eq.s32.totalorder %s34, 1
      %p94 = scmp.ne.s32.totalorder %s89, %s91
      %p95 = scmp.eq.s32.totalorder %s34, 0
      %p96 = por %p94, %p95
      %p97 = scmp.ne.s32.totalorder %s89, %s91
      %p98 = scmp.eq.s32.totalorder %s39, 1
      %p99 = por %p97, %p98
      %p100 = scmp.ne.s32.totalorder %s91, %s92
      %p101 = scmp.eq.s32.totalorder %s39, 0
      %p102 = por %p100, %p101
      %p103 = scmp.ne.s32.totalorder %s91, %s92
      %p104 = scmp.eq.s32.totalorder %s40, 1
      %p105 = por %p103, %p104
      %p107 = scmp.ne.s32.totalorder %s92, %s106
      %p108 = scmp.eq.s32.totalorder %s40, 0
      %p109 = por %p107, %p108
      %s111 = sadd.s32 %s110, 1
      %p114 = scmp.eq.s32.totalorder %s34, 1
      %p115 = scmp.ne.s32.totalorder %s110, %s112
      %p116 = scmp.eq.s32.totalorder %s34, 0
      %p117 = por %p115, %p116
      %p118 = scmp.ne.s32.totalorder %s110, %s112
      %p119 = scmp.eq.s32.totalorder %s39, 1
      %p120 = por %p118, %p119
      %p121 = scmp.ne.s32.totalorder %s112, %s113
      %p122 = scmp.eq.s32.totalorder %s39, 0
      %p123 = por %p121, %p122
      %p124 = scmp.ne.s32.totalorder %s112, %s113
      %p125 = scmp.eq.s32.totalorder %s40, 1
      %p126 = por %p124, %p125
      %p128 = scmp.ne.s32.totalorder %s113, %s127
      %p129 = scmp.eq.s32.totalorder %s40, 0
      %p130 = por %p128, %p129
      %s132 = sadd.s32 %s131, 1
      %p135 = scmp.eq.s32.totalorder %s34, 1
      %p136 = scmp.ne.s32.totalorder %s131, %s133
      %p137 = scmp.eq.s32.totalorder %s34, 0
      %p138 = por %p136, %p137
      %p139 = scmp.ne.s32.totalorder %s131, %s133
      %p140 = scmp.eq.s32.totalorder %s39, 1
      %p141 = por %p139, %p140
      %p142 = scmp.ne.s32.totalorder %s133, %s134
      %p143 = scmp.eq.s32.totalorder %s39, 0
      %p144 = por %p142, %p143
      %p145 = scmp.ne.s32.totalorder %s133, %s134
      %p146 = scmp.eq.s32.totalorder %s40, 1
      %p147 = por %p145, %p146
      %p149 = scmp.ne.s32.totalorder %s134, %s148
      %p150 = scmp.eq.s32.totalorder %s40, 0
      %p151 = por %p149, %p150
      %s153 = sadd.s32 %s152, 1
      %p156 = scmp.eq.s32.totalorder %s34, 1
      %p157 = scmp.ne.s32.totalorder %s152, %s154
      %p158 = scmp.eq.s32.totalorder %s34, 0
      %p159 = por %p157, %p158
      %p160 = scmp.ne.s32.totalorder %s152, %s154
      %p161 = scmp.eq.s32.totalorder %s39, 1
      %p162 = por %p160, %p161
      %p163 = scmp.ne.s32.totalorder %s154, %s155
      %p164 = scmp.eq.s32.totalorder %s39, 0
      %p165 = por %p163, %p164
      %p166 = scmp.ne.s32.totalorder %s154, %s155
      %p167 = scmp.eq.s32.totalorder %s40, 1
      %p168 = por %p166, %p167
      %p170 = scmp.ne.s32.totalorder %s155, %s169
      %p171 = scmp.eq.s32.totalorder %s40, 0
      %p172 = por %p170, %p171
      %s174 = sadd.s32 %s173, 1
      %p177 = scmp.eq.s32.totalorder %s34, 1
      %p178 = scmp.ne.s32.totalorder %s173, %s175
      %p179 = scmp.eq.s32.totalorder %s34, 0
      %p180 = por %p178, %p179
      %p181 = scmp.ne.s32.totalorder %s173, %s175
      %p182 = scmp.eq.s32.totalorder %s39, 1
      %p183 = por %p181, %p182
      %p184 = scmp.ne.s32.totalorder %s175, %s176
      %p185 = scmp.eq.s32.totalorder %s39, 0
      %p186 = por %p184, %p185
      %p187 = scmp.ne.s32.totalorder %s175, %s176
      %p188 = scmp.eq.s32.totalorder %s40, 1
      %p189 = por %p187, %p188
      %p191 = scmp.ne.s32.totalorder %s176, %s190
      %p192 = scmp.eq.s32.totalorder %s40, 0
      %p193 = por %p191, %p192
      %s195 = sadd.s32 %s194, 1
      %p198 = scmp.eq.s32.totalorder %s34, 1
      %p199 = scmp.ne.s32.totalorder %s194, %s196
      %p200 = scmp.eq.s32.totalorder %s34, 0
      %p201 = por %p199, %p200
      %p202 = scmp.ne.s32.totalorder %s194, %s196
      %p203 = scmp.eq.s32.totalorder %s39, 1
      %p204 = por %p202, %p203
      %p205 = scmp.ne.s32.totalorder %s196, %s197
      %p206 = scmp.eq.s32.totalorder %s39, 0
      %p207 = por %p205, %p206
      %p208 = scmp.ne.s32.totalorder %s196, %s197
      %p209 = scmp.eq.s32.totalorder %s40, 1
      %p210 = por %p208, %p209
      %p212 = scmp.ne.s32.totalorder %s197, %s211
      %p213 = scmp.eq.s32.totalorder %s40, 0
      %p214 = por %p212, %p213
      %s216 = sadd.s32 %s215, 1
      %p219 = scmp.eq.s32.totalorder %s34, 1
      %p220 = scmp.ne.s32.totalorder %s215, %s217
      %p221 = scmp.eq.s32.totalorder %s34, 0
      %p222 = por %p220, %p221
      %p223 = scmp.ne.s32.totalorder %s215, %s217
      %p224 = scmp.eq.s32.totalorder %s39, 1
      %p225 = por %p223, %p224
      %p226 = scmp.ne.s32.totalorder %s217, %s218
      %p227 = scmp.eq.s32.totalorder %s39, 0
      %p228 = por %p226, %p227
      %p229 = scmp.ne.s32.totalorder %s217, %s218
      %p230 = scmp.eq.s32.totalorder %s40, 1
      %p231 = por %p229, %p230
      %p233 = scmp.ne.s32.totalorder %s218, %s232
      %p234 = scmp.eq.s32.totalorder %s40, 0
      %p235 = por %p233, %p234
      %s237 = sadd.s32 %s236, 1
      %p240 = scmp.eq.s32.totalorder %s34, 1
      %p241 = scmp.ne.s32.totalorder %s236, %s238
      %p242 = scmp.eq.s32.totalorder %s34, 0
      %p243 = por %p241, %p242
      %p244 = scmp.ne.s32.totalorder %s236, %s238
      %p245 = scmp.eq.s32.totalorder %s39, 1
      %p246 = por %p244, %p245
      %p247 = scmp.ne.s32.totalorder %s238, %s239
      %p248 = scmp.eq.s32.totalorder %s39, 0
      %p249 = por %p247, %p248
      %p250 = scmp.ne.s32.totalorder %s238, %s239
      %p251 = scmp.eq.s32.totalorder %s40, 1
      %p252 = por %p250, %p251
      %p254 = scmp.ne.s32.totalorder %s239, %s253
      %p255 = scmp.eq.s32.totalorder %s40, 0
      %p256 = por %p254, %p255
      %s258 = sadd.s32 %s257, 1
      %p261 = scmp.eq.s32.totalorder %s34, 1
      %p262 = scmp.ne.s32.totalorder %s257, %s259
      %p263 = scmp.eq.s32.totalorder %s34, 0
      %p264 = por %p262, %p263
      %p265 = scmp.ne.s32.totalorder %s257, %s259
      %p266 = scmp.eq.s32.totalorder %s39, 1
      %p267 = por %p265, %p266
      %p268 = scmp.ne.s32.totalorder %s259, %s260
      %p269 = scmp.eq.s32.totalorder %s39, 0
      %p270 = por %p268, %p269
      %p271 = scmp.ne.s32.totalorder %s259, %s260
      %p272 = scmp.eq.s32.totalorder %s40, 1
      %p273 = por %p271, %p272
      %p275 = scmp.ne.s32.totalorder %s260, %s274
      %p276 = scmp.eq.s32.totalorder %s40, 0
      %p277 = por %p275, %p276
      %s279 = sadd.s32 %s278, 1
      %p282 = scmp.eq.s32.totalorder %s34, 1
      %p283 = scmp.ne.s32.totalorder %s278, %s280
      %p284 = scmp.eq.s32.totalorder %s34, 0
      %p285 = por %p283, %p284
      %p286 = scmp.ne.s32.totalorder %s278, %s280
      %p287 = scmp.eq.s32.totalorder %s39, 1
      %p288 = por %p286, %p287
      %p289 = scmp.ne.s32.totalorder %s280, %s281
      %p290 = scmp.eq.s32.totalorder %s39, 0
      %p291 = por %p289, %p290
      %p292 = scmp.ne.s32.totalorder %s280, %s281
      %p293 = scmp.eq.s32.totalorder %s40, 1
      %p294 = por %p292, %p293
      %p296 = scmp.ne.s32.totalorder %s281, %s295
      %p297 = scmp.eq.s32.totalorder %s40, 0
      %p298 = por %p296, %p297
      %s300 = sadd.s32 %s299, 1
      %p303 = scmp.eq.s32.totalorder %s34, 1
      %p304 = scmp.ne.s32.totalorder %s299, %s301
      %p305 = scmp.eq.s32.totalorder %s34, 0
      %p306 = por %p304, %p305
      %p307 = scmp.ne.s32.totalorder %s299, %s301
      %p308 = scmp.eq.s32.totalorder %s39, 1
      %p309 = por %p307, %p308
      %p310 = scmp.ne.s32.totalorder %s301, %s302
      %p311 = scmp.eq.s32.totalorder %s39, 0
      %p312 = por %p310, %p311
      %p313 = scmp.ne.s32.totalorder %s301, %s302
      %p314 = scmp.eq.s32.totalorder %s40, 1
      %p315 = por %p313, %p314
      %p317 = scmp.ne.s32.totalorder %s302, %s316
      %p318 = scmp.eq.s32.totalorder %s40, 0
      %p319 = por %p317, %p318
      %s321 = sadd.s32 %s320, 1
      %p324 = scmp.eq.s32.totalorder %s34, 1
      %p325 = scmp.ne.s32.totalorder %s320, %s322
      %p326 = scmp.eq.s32.totalorder %s34, 0
      %p327 = por %p325, %p326
      %p328 = scmp.ne.s32.totalorder %s320, %s322
      %p329 = scmp.eq.s32.totalorder %s39, 1
      %p330 = por %p328, %p329
      %p331 = scmp.ne.s32.totalorder %s322, %s323
      %p332 = scmp.eq.s32.totalorder %s39, 0
      %p333 = por %p331, %p332
      %p334 = scmp.ne.s32.totalorder %s322, %s323
      %p335 = scmp.eq.s32.totalorder %s40, 1
      %p336 = por %p334, %p335
      %p338 = scmp.ne.s32.totalorder %s323, %s337
      %p339 = scmp.eq.s32.totalorder %s40, 0
      %p340 = por %p338, %p339
      %s342 = sadd.s32 %s341, 1
      %p345 = scmp.eq.s32.totalorder %s34, 1
      %p346 = scmp.ne.s32.totalorder %s341, %s343
      %p347 = scmp.eq.s32.totalorder %s34, 0
      %p348 = por %p346, %p347
      %p349 = scmp.ne.s32.totalorder %s341, %s343
      %p350 = scmp.eq.s32.totalorder %s39, 1
      %p351 = por %p349, %p350
      %p352 = scmp.ne.s32.totalorder %s343, %s344
      %p353 = scmp.eq.s32.totalorder %s39, 0
      %p354 = por %p352, %p353
      %p355 = scmp.ne.s32.totalorder %s343, %s344
      %p356 = scmp.eq.s32.totalorder %s40, 1
      %p357 = por %p355, %p356
      %p359 = scmp.ne.s32.totalorder %s344, %s358
      %p360 = scmp.eq.s32.totalorder %s40, 0
      %p361 = por %p359, %p360
      %s363 = sadd.s32 %s362, 1
      %p366 = scmp.eq.s32.totalorder %s34, 1
      %p367 = scmp.ne.s32.totalorder %s362, %s364
      %p368 = scmp.eq.s32.totalorder %s34, 0
      %p369 = por %p367, %p368
      %p370 = scmp.ne.s32.totalorder %s362, %s364
      %p371 = scmp.eq.s32.totalorder %s39, 1
      %p372 = por %p370, %p371
      %p373 = scmp.ne.s32.totalorder %s364, %s365
      %p374 = scmp.eq.s32.totalorder %s39, 0
      %p375 = por %p373, %p374
      %p376 = scmp.ne.s32.totalorder %s364, %s365
      %p377 = scmp.eq.s32.totalorder %s40, 1
      %p378 = por %p376, %p377
      %p380 = scmp.ne.s32.totalorder %s365, %s379
      %p381 = scmp.eq.s32.totalorder %s40, 0
      %p382 = por %p380, %p381
      %s383 = ssub.s32 %s34, %s41
      %p384 = scmp.eq.s32.totalorder %s383, 0
      %s386 = sadd.s32 %s385, 1
      %s387 = scalar_select %p384, %s385, %s386
      %p390 = pneg %p384
      %p391 = scmp.eq.s32.totalorder %s34, 1
      %p392 = por %p390, %p391
      %p393 = scmp.ne.s32.totalorder %s385, %s388
      %p394 = scmp.eq.s32.totalorder %s34, 0
      %p395 = por %p393, %p394
      %p396 = scmp.ne.s32.totalorder %s385, %s388
      %p397 = scmp.eq.s32.totalorder %s39, 1
      %p398 = por %p396, %p397
      %p399 = scmp.ne.s32.totalorder %s388, %s389
      %p400 = scmp.eq.s32.totalorder %s39, 0
      %p401 = por %p399, %p400
      %p402 = scmp.ne.s32.totalorder %s388, %s389
      %p403 = scmp.eq.s32.totalorder %s40, 1
      %p404 = por %p402, %p403
      %p406 = scmp.ne.s32.totalorder %s389, %s405
      %p407 = scmp.eq.s32.totalorder %s40, 0
      %p408 = por %p406, %p407
      %s409 = ssub.s32 %s34, %s41
      %p410 = scmp.eq.s32.totalorder %s409, 0
      %s412 = sadd.s32 %s411, 1
      %s413 = scalar_select %p410, %s411, %s412
      %p416 = pneg %p410
      %p417 = scmp.eq.s32.totalorder %s34, 1
      %p418 = por %p416, %p417
      %p419 = scmp.ne.s32.totalorder %s411, %s414
      %p420 = scmp.eq.s32.totalorder %s34, 0
      %p421 = por %p419, %p420
      %p422 = scmp.ne.s32.totalorder %s411, %s414
      %p423 = scmp.eq.s32.totalorder %s39, 1
      %p424 = por %p422, %p423
      %p425 = scmp.ne.s32.totalorder %s414, %s415
      %p426 = scmp.eq.s32.totalorder %s39, 0
      %p427 = por %p425, %p426
      %p428 = scmp.ne.s32.totalorder %s414, %s415
      %p429 = scmp.eq.s32.totalorder %s40, 1
      %p430 = por %p428, %p429
      %p432 = scmp.ne.s32.totalorder %s415, %s431
      %p433 = scmp.eq.s32.totalorder %s40, 0
      %p434 = por %p432, %p433
      %s435 = ssub.s32 %s34, %s41
      %p436 = scmp.eq.s32.totalorder %s435, 0
      %s438 = sadd.s32 %s437, 1
      %s439 = scalar_select %p436, %s437, %s438
      %p442 = pneg %p436
      %p443 = scmp.eq.s32.totalorder %s34, 1
      %p444 = por %p442, %p443
      %p445 = scmp.ne.s32.totalorder %s437, %s440
      %p446 = scmp.eq.s32.totalorder %s34, 0
      %p447 = por %p445, %p446
      %p448 = scmp.ne.s32.totalorder %s437, %s440
      %p449 = scmp.eq.s32.totalorder %s39, 1
      %p450 = por %p448, %p449
      %p451 = scmp.ne.s32.totalorder %s440, %s441
      %p452 = scmp.eq.s32.totalorder %s39, 0
      %p453 = por %p451, %p452
      %p454 = scmp.ne.s32.totalorder %s440, %s441
      %p455 = scmp.eq.s32.totalorder %s40, 1
      %p456 = por %p454, %p455
      %p458 = scmp.ne.s32.totalorder %s441, %s457
      %p459 = scmp.eq.s32.totalorder %s40, 0
      %p460 = por %p458, %p459
      %p461 = scmp.le.s32.totalorder 1, %s34
      %p462 = scmp.lt.s32.totalorder %s34, 3
      %p463 = pnand %p461, %p462
      %p464 = pneg %p463
      // Predicated region
      $region9: #{tpu_custom_call.1} parent=5 // pred_check
        _
      $region10: #{tpu_custom_call.1} parent=5 // pred_check_branch
        %466 = sbr.rel (%p463) target = $region12
      $region11: #{tpu_custom_call.1} parent=5 // pred_region
        %s467 = ssub.s32 %s34, 1
        // Predicated region
        $region13: #{tpu_custom_call.1} parent=11 // pred_check
          %p468 = pneg %p81
        $region14: #{tpu_custom_call.1} parent=11 // pred_check_branch
          %470 = sbr.rel (%p468) target = $region16
        $region15: #{tpu_custom_call.1} parent=11 // pred_region
          _
        $region16: #{tpu_custom_call.1} parent=11 // pred_fallthru
          _
        // Predicated region
        $region17: #{tpu_custom_call.1} parent=11 // pred_check
          %p471 = pneg %p102
        $region18: #{tpu_custom_call.1} parent=11 // pred_check_branch
          %473 = sbr.rel (%p471) target = $region20
        $region19: #{tpu_custom_call.1} parent=11 // pred_region
          _
        $region20: #{tpu_custom_call.1} parent=11 // pred_fallthru
          _
        // Predicated region
        $region21: #{tpu_custom_call.1} parent=11 // pred_check
          %p474 = pneg %p123
        $region22: #{tpu_custom_call.1} parent=11 // pred_check_branch
          %476 = sbr.rel (%p474) target = $region24
        $region23: #{tpu_custom_call.1} parent=11 // pred_region
          _
        $region24: #{tpu_custom_call.1} parent=11 // pred_fallthru
          _
        // Predicated region
        $region25: #{tpu_custom_call.1} parent=11 // pred_check
          %p477 = pneg %p144
        $region26: #{tpu_custom_call.1} parent=11 // pred_check_branch
          %479 = sbr.rel (%p477) target = $region28
        $region27: #{tpu_custom_call.1} parent=11 // pred_region
          _
        $region28: #{tpu_custom_call.1} parent=11 // pred_fallthru
          _
        // Predicated region
        $region29: #{tpu_custom_call.1} parent=11 // pred_check
          %p480 = pneg %p165
        $region30: #{tpu_custom_call.1} parent=11 // pred_check_branch
          %482 = sbr.rel (%p480) target = $region32
        $region31: #{tpu_custom_call.1} parent=11 // pred_region
          _
        $region32: #{tpu_custom_call.1} parent=11 // pred_fallthru
          _
        // Predicated region
        $region33: #{tpu_custom_call.1} parent=11 // pred_check
          %p483 = pneg %p186
        $region34: #{tpu_custom_call.1} parent=11 // pred_check_branch
          %485 = sbr.rel (%p483) target = $region36
        $region35: #{tpu_custom_call.1} parent=11 // pred_region
          _
        $region36: #{tpu_custom_call.1} parent=11 // pred_fallthru
          _
        // Predicated region
        $region37: #{tpu_custom_call.1} parent=11 // pred_check
          %p486 = pneg %p207
        $region38: #{tpu_custom_call.1} parent=11 // pred_check_branch
          %488 = sbr.rel (%p486) target = $region40
        $region39: #{tpu_custom_call.1} parent=11 // pred_region
          _
        $region40: #{tpu_custom_call.1} parent=11 // pred_fallthru
          _
        // Predicated region
        $region41: #{tpu_custom_call.1} parent=11 // pred_check
          %p489 = pneg %p228
        $region42: #{tpu_custom_call.1} parent=11 // pred_check_branch
          %491 = sbr.rel (%p489) target = $region44
        $region43: #{tpu_custom_call.1} parent=11 // pred_region
          _
        $region44: #{tpu_custom_call.1} parent=11 // pred_fallthru
          _
        // Predicated region
        $region45: #{tpu_custom_call.1} parent=11 // pred_check
          %p492 = pneg %p249
        $region46: #{tpu_custom_call.1} parent=11 // pred_check_branch
          %494 = sbr.rel (%p492) target = $region48
        $region47: #{tpu_custom_call.1} parent=11 // pred_region
          _
        $region48: #{tpu_custom_call.1} parent=11 // pred_fallthru
          _
        // Predicated region
        $region49: #{tpu_custom_call.1} parent=11 // pred_check
          %p495 = pneg %p270
        $region50: #{tpu_custom_call.1} parent=11 // pred_check_branch
          %497 = sbr.rel (%p495) target = $region52
        $region51: #{tpu_custom_call.1} parent=11 // pred_region
          _
        $region52: #{tpu_custom_call.1} parent=11 // pred_fallthru
          _
        // Predicated region
        $region53: #{tpu_custom_call.1} parent=11 // pred_check
          %p498 = pneg %p291
        $region54: #{tpu_custom_call.1} parent=11 // pred_check_branch
          %500 = sbr.rel (%p498) target = $region56
        $region55: #{tpu_custom_call.1} parent=11 // pred_region
          _
        $region56: #{tpu_custom_call.1} parent=11 // pred_fallthru
          _
        // Predicated region
        $region57: #{tpu_custom_call.1} parent=11 // pred_check
          %p501 = pneg %p312
        $region58: #{tpu_custom_call.1} parent=11 // pred_check_branch
          %503 = sbr.rel (%p501) target = $region60
        $region59: #{tpu_custom_call.1} parent=11 // pred_region
          _
        $region60: #{tpu_custom_call.1} parent=11 // pred_fallthru
          _
        // Predicated region
        $region61: #{tpu_custom_call.1} parent=11 // pred_check
          %p504 = pneg %p333
        $region62: #{tpu_custom_call.1} parent=11 // pred_check_branch
          %506 = sbr.rel (%p504) target = $region64
        $region63: #{tpu_custom_call.1} parent=11 // pred_region
          _
        $region64: #{tpu_custom_call.1} parent=11 // pred_fallthru
          _
        // Predicated region
        $region65: #{tpu_custom_call.1} parent=11 // pred_check
          %p507 = pneg %p354
        $region66: #{tpu_custom_call.1} parent=11 // pred_check_branch
          %509 = sbr.rel (%p507) target = $region68
        $region67: #{tpu_custom_call.1} parent=11 // pred_region
          _
        $region68: #{tpu_custom_call.1} parent=11 // pred_fallthru
          _
        // Predicated region
        $region69: #{tpu_custom_call.1} parent=11 // pred_check
          %p510 = pneg %p375
        $region70: #{tpu_custom_call.1} parent=11 // pred_check_branch
          %512 = sbr.rel (%p510) target = $region72
        $region71: #{tpu_custom_call.1} parent=11 // pred_region
          _
        $region72: #{tpu_custom_call.1} parent=11 // pred_fallthru
          _
      $region12: #{tpu_custom_call.1} parent=5 // pred_fallthru
        _
      %p513 = scmp.lt.s32.totalorder %s34, 2
      // Predicated region
      $region73: #{tpu_custom_call.1} parent=5 // pred_check
        %p514 = pneg %p513
      $region74: #{tpu_custom_call.1} parent=5 // pred_check_branch
        %516 = sbr.rel (%p514) target = $region76
      $region75: #{tpu_custom_call.1} parent=5 // pred_region
        // Predicated region
        $region77: #{tpu_custom_call.1} parent=75 // pred_check
          %p517 = pneg %p54
        $region78: #{tpu_custom_call.1} parent=75 // pred_check_branch
          %519 = sbr.rel (%p517) target = $region80
        $region79: #{tpu_custom_call.1} parent=75 // pred_region
          %s520 = sand.u32 %s44, 1
          %s521 = scalar_lea.sflag [#allocation4], %s520
          %s522 = sand.u32 %s44, 1
          %s523 = smul.addr %s522, 256
          %s524 = scalar_lea.vmem [#allocation3], %s523
          %526 = vsyncadd %s521, 0
          %s527 = smul.addr %s34, 32
          %s528 = smul.addr %s527, 8
          %s529 = scalar_lea.hbm %s0, %s528
          %s530 = sshll.u32 %s529, 4
          %s531 = int_to_ptr.hbm [resolvable:$true] %s530
          %s532 = sshll.u32 %s524, 4
          %s533 = int_to_ptr.vmem [resolvable:$true] %s532
          %538 = dma.hbm_to_vmem [thread:$0]  %s531, 4096, %s533, %s521, 128, 128, 8
        $region80: #{tpu_custom_call.1} parent=75 // pred_fallthru
          _
      $region76: #{tpu_custom_call.1} parent=5 // pred_fallthru
        _
      %p539 = scmp.le.s32.totalorder 1, %s34
      %p540 = scmp.lt.s32.totalorder %s34, 3
      %p541 = pnand %p539, %p540
      %p542 = pneg %p541
      // Predicated region
      $region81: #{tpu_custom_call.1} parent=5 // pred_check
        _
      $region82: #{tpu_custom_call.1} parent=5 // pred_check_branch
        %544 = sbr.rel (%p541) target = $region84
      $region83: #{tpu_custom_call.1} parent=5 // pred_region
        %s545 = ssub.s32 %s34, 1
        %s546 = sand.u32 %s47, 1
        %s547 = scalar_lea.sflag [#allocation4], %s546
        %s548 = sand.u32 %s47, 1
        %s549 = smul.addr %s548, 256
        %s550 = scalar_lea.vmem [#allocation3], %s549
        // Predicated region
        $region85: #{tpu_custom_call.1} parent=83 // pred_check
          %p551 = pneg %p60
        $region86: #{tpu_custom_call.1} parent=83 // pred_check_branch
          %553 = sbr.rel (%p551) target = $region88
        $region87: #{tpu_custom_call.1} parent=83 // pred_region
          %555 = dma.done %s547, 4096
        $region88: #{tpu_custom_call.1} parent=83 // pred_fallthru
          _
        %s556 = sand.u32 %s47, 1
        %s557 = scalar_lea.sflag [#allocation4], %s556
        %s558 = sand.u32 %s47, 1
        %s559 = smul.addr %s558, 256
        %s560 = scalar_lea.vmem [#allocation3], %s559
        %p561 = pneg %p60
        %p562 = pneg %p57
        %p563 = pneg %p81
        %p564 = pneg %p78
        %p565 = pneg %p102
        %p566 = pneg %p99
        %p567 = pneg %p123
        %p568 = pneg %p120
        %p569 = pneg %p144
        %p570 = pneg %p141
        %p571 = pneg %p165
        %p572 = pneg %p162
        %p573 = pneg %p186
        %p574 = pneg %p183
        %p575 = pneg %p207
        %p576 = pneg %p204
        %p577 = pneg %p228
        %p578 = pneg %p225
        %p579 = pneg %p249
        %p580 = pneg %p246
        %p581 = pneg %p270
        %p582 = pneg %p267
        %p583 = pneg %p291
        %p584 = pneg %p288
        %p585 = pneg %p312
        %p586 = pneg %p309
        %p587 = pneg %p333
        %p588 = pneg %p330
        %p589 = pneg %p354
        %p590 = pneg %p351
        %p591 = pneg %p375
        %p592 = pneg %p372
        %p593 = pneg %p401
        %p594 = pneg %p398
        %s595 = sand.u32 %s388, 1
        %s596 = scalar_lea.sflag [#allocation5], %s595
        %s597 = sand.u32 %s388, 1
        %s598 = smul.addr %s597, 256
        %s599 = scalar_lea.vmem [#allocation6], %s598
        %p600 = pneg %p427
        %p601 = pneg %p424
        %s602 = sand.u32 %s39, 1
        %s603 = scalar_lea.sflag [#allocation8], %s602
        %s604 = sand.u32 %s414, 1
        %s605 = smul.addr %s604, 16
        %s606 = scalar_lea.vmem [#allocation7], %s605
        %p607 = pneg %p453
        %p608 = pneg %p450
        %s609 = sand.u32 %s39, 1
        %s610 = scalar_lea.sflag [#allocation8], %s609
        %s611 = sand.u32 %s440, 1
        %s612 = smul.addr %s611, 16
        %s613 = scalar_lea.vmem [#allocation9], %s612
        %v614 = vld [vmem:[%s550] sm:$0xff]
        %v615 = vld [vmem:[%s550 + $0x8] sm:$0xff]
        %v616 = vld [vmem:[%s550 + $0x10] sm:$0xff]
        %v617 = vld [vmem:[%s550 + $0x18] sm:$0xff]
        %v618 = vld [vmem:[%s550 + $0x20] sm:$0xff]
        %v619 = vld [vmem:[%s550 + $0x28] sm:$0xff]
        %v620 = vld [vmem:[%s550 + $0x30] sm:$0xff]
        %v621 = vld [vmem:[%s550 + $0x38] sm:$0xff]
        %v622 = vld [vmem:[%s550 + $0x40] sm:$0xff]
        %v623 = vld [vmem:[%s550 + $0x48] sm:$0xff]
        %v624 = vld [vmem:[%s550 + $0x50] sm:$0xff]
        %v625 = vld [vmem:[%s550 + $0x58] sm:$0xff]
        %v626 = vld [vmem:[%s550 + $0x60] sm:$0xff]
        %v627 = vld [vmem:[%s550 + $0x68] sm:$0xff]
        %v628 = vld [vmem:[%s550 + $0x70] sm:$0xff]
        %v629 = vld [vmem:[%s550 + $0x78] sm:$0xff]
        %v630 = vld [vmem:[%s550 + $0x80] sm:$0xff]
        %v631 = vld [vmem:[%s550 + $0x88] sm:$0xff]
        %v632 = vld [vmem:[%s550 + $0x90] sm:$0xff]
        %v633 = vld [vmem:[%s550 + $0x98] sm:$0xff]
        %v634 = vld [vmem:[%s550 + $0xa0] sm:$0xff]
        %v635 = vld [vmem:[%s550 + $0xa8] sm:$0xff]
        %v636 = vld [vmem:[%s550 + $0xb0] sm:$0xff]
        %v637 = vld [vmem:[%s550 + $0xb8] sm:$0xff]
        %v638 = vld [vmem:[%s550 + $0xc0] sm:$0xff]
        %v639 = vld [vmem:[%s550 + $0xc8] sm:$0xff]
        %v640 = vld [vmem:[%s550 + $0xd0] sm:$0xff]
        %v641 = vld [vmem:[%s550 + $0xd8] sm:$0xff]
        %v642 = vld [vmem:[%s550 + $0xe0] sm:$0xff]
        %v643 = vld [vmem:[%s550 + $0xe8] sm:$0xff]
        %v644 = vld [vmem:[%s550 + $0xf0] sm:$0xff]
        %v645 = vld [vmem:[%s550 + $0xf8] sm:$0xff]
        %v646 = vld [vmem:[%s1] sm:$0x1]
        %v648 = vperm.slane %v646, 0
        %v650 = vmul.f32 %v614, %v648
        %v651 = vmul.f32 %v615, %v648
        %v652 = vmul.f32 %v616, %v648
        %v653 = vmul.f32 %v617, %v648
        %v654 = vmul.f32 %v618, %v648
        %v655 = vmul.f32 %v619, %v648
        %v656 = vmul.f32 %v620, %v648
        %v657 = vmul.f32 %v621, %v648
        %v658 = vmul.f32 %v622, %v648
        %v659 = vmul.f32 %v623, %v648
        %v660 = vmul.f32 %v624, %v648
        %v661 = vmul.f32 %v625, %v648
        %v662 = vmul.f32 %v626, %v648
        %v663 = vmul.f32 %v627, %v648
        %v664 = vmul.f32 %v628, %v648
        %v665 = vmul.f32 %v629, %v648
        %v666 = vmul.f32 %v630, %v648
        %v667 = vmul.f32 %v631, %v648
        %v668 = vmul.f32 %v632, %v648
        %v669 = vmul.f32 %v633, %v648
        %v670 = vmul.f32 %v634, %v648
        %v671 = vmul.f32 %v635, %v648
        %v672 = vmul.f32 %v636, %v648
        %v673 = vmul.f32 %v637, %v648
        %v674 = vmul.f32 %v638, %v648
        %v675 = vmul.f32 %v639, %v648
        %v676 = vmul.f32 %v640, %v648
        %v677 = vmul.f32 %v641, %v648
        %v678 = vmul.f32 %v642, %v648
        %v679 = vmul.f32 %v643, %v648
        %v680 = vmul.f32 %v644, %v648
        %v681 = vmul.f32 %v645, %v648
        %v682 = vld [vmem:[%s2] sm:$0x1]
        %v684 = vperm.slane %v682, 0
        %v686 = vadd.f32 %v650, %v684
        %v687 = vadd.f32 %v651, %v684
        %v688 = vadd.f32 %v652, %v684
        %v689 = vadd.f32 %v653, %v684
        %v690 = vadd.f32 %v654, %v684
        %v691 = vadd.f32 %v655, %v684
        %v692 = vadd.f32 %v656, %v684
        %v693 = vadd.f32 %v657, %v684
        %v694 = vadd.f32 %v658, %v684
        %v695 = vadd.f32 %v659, %v684
        %v696 = vadd.f32 %v660, %v684
        %v697 = vadd.f32 %v661, %v684
        %v698 = vadd.f32 %v662, %v684
        %v699 = vadd.f32 %v663, %v684
        %v700 = vadd.f32 %v664, %v684
        %v701 = vadd.f32 %v665, %v684
        %v702 = vadd.f32 %v666, %v684
        %v703 = vadd.f32 %v667, %v684
        %v704 = vadd.f32 %v668, %v684
        %v705 = vadd.f32 %v669, %v684
        %v706 = vadd.f32 %v670, %v684
        %v707 = vadd.f32 %v671, %v684
        %v708 = vadd.f32 %v672, %v684
        %v709 = vadd.f32 %v673, %v684
        %v710 = vadd.f32 %v674, %v684
        %v711 = vadd.f32 %v675, %v684
        %v712 = vadd.f32 %v676, %v684
        %v713 = vadd.f32 %v677, %v684
        %v714 = vadd.f32 %v678, %v684
        %v715 = vadd.f32 %v679, %v684
        %v716 = vadd.f32 %v680, %v684
        %v717 = vadd.f32 %v681, %v684
        %vm718 = vcmask 130048
        %719 = vst.msk [vmem:[#allocation2] sm:$0xff] %vm718, 0.0
        %720 = vst.msk [vmem:[#allocation2 + $0x8] sm:$0xff] %vm718, 0.0
        %721 = vst.msk [vmem:[#allocation2 + $0x10] sm:$0xff] %vm718, 0.0
        %722 = vst.msk [vmem:[#allocation2 + $0x18] sm:$0xff] %vm718, 0.0
        %723 = vst.msk [vmem:[#allocation2 + $0x20] sm:$0xff] %vm718, 0.0
        %724 = vst.msk [vmem:[#allocation2 + $0x28] sm:$0xff] %vm718, 0.0
        %725 = vst.msk [vmem:[#allocation2 + $0x30] sm:$0xff] %vm718, 0.0
        %726 = vst.msk [vmem:[#allocation2 + $0x38] sm:$0xff] %vm718, 0.0
        %727 = vst.msk [vmem:[#allocation2 + $0x40] sm:$0xff] %vm718, 0.0
        %728 = vst.msk [vmem:[#allocation2 + $0x48] sm:$0xff] %vm718, 0.0
        %729 = vst.msk [vmem:[#allocation2 + $0x50] sm:$0xff] %vm718, 0.0
        %730 = vst.msk [vmem:[#allocation2 + $0x58] sm:$0xff] %vm718, 0.0
        %731 = vst.msk [vmem:[#allocation2 + $0x60] sm:$0xff] %vm718, 0.0
        %732 = vst.msk [vmem:[#allocation2 + $0x68] sm:$0xff] %vm718, 0.0
        %733 = vst.msk [vmem:[#allocation2 + $0x70] sm:$0xff] %vm718, 0.0
        %734 = vst.msk [vmem:[#allocation2 + $0x78] sm:$0xff] %vm718, 0.0
        %735 = vst.msk [vmem:[#allocation2 + $0x80] sm:$0xff] %vm718, 0.0
        %736 = vst.msk [vmem:[#allocation2 + $0x88] sm:$0xff] %vm718, 0.0
        %737 = vst.msk [vmem:[#allocation2 + $0x90] sm:$0xff] %vm718, 0.0
        %738 = vst.msk [vmem:[#allocation2 + $0x98] sm:$0xff] %vm718, 0.0
        %739 = vst.msk [vmem:[#allocation2 + $0xa0] sm:$0xff] %vm718, 0.0
        %740 = vst.msk [vmem:[#allocation2 + $0xa8] sm:$0xff] %vm718, 0.0
        %741 = vst.msk [vmem:[#allocation2 + $0xb0] sm:$0xff] %vm718, 0.0
        %742 = vst.msk [vmem:[#allocation2 + $0xb8] sm:$0xff] %vm718, 0.0
        %743 = vst.msk [vmem:[#allocation2 + $0xc0] sm:$0xff] %vm718, 0.0
        %744 = vst.msk [vmem:[#allocation2 + $0xc8] sm:$0xff] %vm718, 0.0
        %745 = vst.msk [vmem:[#allocation2 + $0xd0] sm:$0xff] %vm718, 0.0
        %746 = vst.msk [vmem:[#allocation2 + $0xd8] sm:$0xff] %vm718, 0.0
        %747 = vst.msk [vmem:[#allocation2 + $0xe0] sm:$0xff] %vm718, 0.0
        %748 = vst.msk [vmem:[#allocation2 + $0xe8] sm:$0xff] %vm718, 0.0
        %749 = vst.msk [vmem:[#allocation2 + $0xf0] sm:$0xff] %vm718, 0.0
        %750 = vst.msk [vmem:[#allocation2 + $0xf8] sm:$0xff] %vm718, 0.0
        %751 = vst.msk [vmem:[#allocation2 + $0x100] sm:$0xff] %vm718, 0.0
        %752 = vst.msk [vmem:[#allocation2 + $0x108] sm:$0xff] %vm718, 0.0
        %753 = vst.msk [vmem:[#allocation2 + $0x110] sm:$0xff] %vm718, 0.0
        %754 = vst.msk [vmem:[#allocation2 + $0x118] sm:$0xff] %vm718, 0.0
        %755 = vst.msk [vmem:[#allocation2 + $0x120] sm:$0xff] %vm718, 0.0
        %756 = vst.msk [vmem:[#allocation2 + $0x128] sm:$0xff] %vm718, 0.0
        %757 = vst.msk [vmem:[#allocation2 + $0x130] sm:$0xff] %vm718, 0.0
        %758 = vst.msk [vmem:[#allocation2 + $0x138] sm:$0xff] %vm718, 0.0
        %759 = vst.msk [vmem:[#allocation2 + $0x140] sm:$0xff] %vm718, 0.0
        %760 = vst.msk [vmem:[#allocation2 + $0x148] sm:$0xff] %vm718, 0.0
        %761 = vst.msk [vmem:[#allocation2 + $0x150] sm:$0xff] %vm718, 0.0
        %762 = vst.msk [vmem:[#allocation2 + $0x158] sm:$0xff] %vm718, 0.0
        %763 = vst.msk [vmem:[#allocation2 + $0x160] sm:$0xff] %vm718, 0.0
        %764 = vst.msk [vmem:[#allocation2 + $0x168] sm:$0xff] %vm718, 0.0
        %765 = vst.msk [vmem:[#allocation2 + $0x170] sm:$0xff] %vm718, 0.0
        %766 = vst.msk [vmem:[#allocation2 + $0x178] sm:$0xff] %vm718, 0.0
        %767 = vst.msk [vmem:[#allocation2 + $0x180] sm:$0xff] %vm718, 0.0
        %768 = vst.msk [vmem:[#allocation2 + $0x188] sm:$0xff] %vm718, 0.0
        %769 = vst.msk [vmem:[#allocation2 + $0x190] sm:$0xff] %vm718, 0.0
        %770 = vst.msk [vmem:[#allocation2 + $0x198] sm:$0xff] %vm718, 0.0
        %771 = vst.msk [vmem:[#allocation2 + $0x1a0] sm:$0xff] %vm718, 0.0
        %772 = vst.msk [vmem:[#allocation2 + $0x1a8] sm:$0xff] %vm718, 0.0
        %773 = vst.msk [vmem:[#allocation2 + $0x1b0] sm:$0xff] %vm718, 0.0
        %774 = vst.msk [vmem:[#allocation2 + $0x1b8] sm:$0xff] %vm718, 0.0
        %775 = vst.msk [vmem:[#allocation2 + $0x1c0] sm:$0xff] %vm718, 0.0
        %776 = vst.msk [vmem:[#allocation2 + $0x1c8] sm:$0xff] %vm718, 0.0
        %777 = vst.msk [vmem:[#allocation2 + $0x1d0] sm:$0xff] %vm718, 0.0
        %778 = vst.msk [vmem:[#allocation2 + $0x1d8] sm:$0xff] %vm718, 0.0
        %779 = vst.msk [vmem:[#allocation2 + $0x1e0] sm:$0xff] %vm718, 0.0
        %780 = vst.msk [vmem:[#allocation2 + $0x1e8] sm:$0xff] %vm718, 0.0
        %781 = vst.msk [vmem:[#allocation2 + $0x1f0] sm:$0xff] %vm718, 0.0
        %782 = vst.msk [vmem:[#allocation2 + $0x1f8] sm:$0xff] %vm718, 0.0
        %783 = vst.msk [vmem:[#allocation2 + $0x200] sm:$0xff] %vm718, 0.0
        %784 = vst.msk [vmem:[#allocation2 + $0x208] sm:$0xff] %vm718, 0.0
        %785 = vst.msk [vmem:[#allocation2 + $0x210] sm:$0xff] %vm718, 0.0
        %786 = vst.msk [vmem:[#allocation2 + $0x218] sm:$0xff] %vm718, 0.0
        %787 = vst.msk [vmem:[#allocation2 + $0x220] sm:$0xff] %vm718, 0.0
        %788 = vst.msk [vmem:[#allocation2 + $0x228] sm:$0xff] %vm718, 0.0
        %789 = vst.msk [vmem:[#allocation2 + $0x230] sm:$0xff] %vm718, 0.0
        %790 = vst.msk [vmem:[#allocation2 + $0x238] sm:$0xff] %vm718, 0.0
        %791 = vst.msk [vmem:[#allocation2 + $0x240] sm:$0xff] %vm718, 0.0
        %792 = vst.msk [vmem:[#allocation2 + $0x248] sm:$0xff] %vm718, 0.0
        %793 = vst.msk [vmem:[#allocation2 + $0x250] sm:$0xff] %vm718, 0.0
        %794 = vst.msk [vmem:[#allocation2 + $0x258] sm:$0xff] %vm718, 0.0
        %795 = vst.msk [vmem:[#allocation2 + $0x260] sm:$0xff] %vm718, 0.0
        %796 = vst.msk [vmem:[#allocation2 + $0x268] sm:$0xff] %vm718, 0.0
        %797 = vst.msk [vmem:[#allocation2 + $0x270] sm:$0xff] %vm718, 0.0
        %798 = vst.msk [vmem:[#allocation2 + $0x278] sm:$0xff] %vm718, 0.0
        %799 = vst.msk [vmem:[#allocation2 + $0x280] sm:$0xff] %vm718, 0.0
        %800 = vst.msk [vmem:[#allocation2 + $0x288] sm:$0xff] %vm718, 0.0
        %801 = vst.msk [vmem:[#allocation2 + $0x290] sm:$0xff] %vm718, 0.0
        %802 = vst.msk [vmem:[#allocation2 + $0x298] sm:$0xff] %vm718, 0.0
        %803 = vst.msk [vmem:[#allocation2 + $0x2a0] sm:$0xff] %vm718, 0.0
        %804 = vst.msk [vmem:[#allocation2 + $0x2a8] sm:$0xff] %vm718, 0.0
        %805 = vst.msk [vmem:[#allocation2 + $0x2b0] sm:$0xff] %vm718, 0.0
        %806 = vst.msk [vmem:[#allocation2 + $0x2b8] sm:$0xff] %vm718, 0.0
        %807 = vst.msk [vmem:[#allocation2 + $0x2c0] sm:$0xff] %vm718, 0.0
        %808 = vst.msk [vmem:[#allocation2 + $0x2c8] sm:$0xff] %vm718, 0.0
        %809 = vst.msk [vmem:[#allocation2 + $0x2d0] sm:$0xff] %vm718, 0.0
        %810 = vst.msk [vmem:[#allocation2 + $0x2d8] sm:$0xff] %vm718, 0.0
        %811 = vst.msk [vmem:[#allocation2 + $0x2e0] sm:$0xff] %vm718, 0.0
        %812 = vst.msk [vmem:[#allocation2 + $0x2e8] sm:$0xff] %vm718, 0.0
        %813 = vst.msk [vmem:[#allocation2 + $0x2f0] sm:$0xff] %vm718, 0.0
        %814 = vst.msk [vmem:[#allocation2 + $0x2f8] sm:$0xff] %vm718, 0.0
        %815 = vst.msk [vmem:[#allocation2 + $0x300] sm:$0xff] %vm718, 0.0
        %816 = vst.msk [vmem:[#allocation2 + $0x308] sm:$0xff] %vm718, 0.0
        %817 = vst.msk [vmem:[#allocation2 + $0x310] sm:$0xff] %vm718, 0.0
        %818 = vst.msk [vmem:[#allocation2 + $0x318] sm:$0xff] %vm718, 0.0
        %819 = vst.msk [vmem:[#allocation2 + $0x320] sm:$0xff] %vm718, 0.0
        %820 = vst.msk [vmem:[#allocation2 + $0x328] sm:$0xff] %vm718, 0.0
        %821 = vst.msk [vmem:[#allocation2 + $0x330] sm:$0xff] %vm718, 0.0
        %822 = vst.msk [vmem:[#allocation2 + $0x338] sm:$0xff] %vm718, 0.0
        %823 = vst.msk [vmem:[#allocation2 + $0x340] sm:$0xff] %vm718, 0.0
        %824 = vst.msk [vmem:[#allocation2 + $0x348] sm:$0xff] %vm718, 0.0
        %825 = vst.msk [vmem:[#allocation2 + $0x350] sm:$0xff] %vm718, 0.0
        %826 = vst.msk [vmem:[#allocation2 + $0x358] sm:$0xff] %vm718, 0.0
        %827 = vst.msk [vmem:[#allocation2 + $0x360] sm:$0xff] %vm718, 0.0
        %828 = vst.msk [vmem:[#allocation2 + $0x368] sm:$0xff] %vm718, 0.0
        %829 = vst.msk [vmem:[#allocation2 + $0x370] sm:$0xff] %vm718, 0.0
        %830 = vst.msk [vmem:[#allocation2 + $0x378] sm:$0xff] %vm718, 0.0
        %831 = vst.msk [vmem:[#allocation2 + $0x380] sm:$0xff] %vm718, 0.0
        %832 = vst.msk [vmem:[#allocation2 + $0x388] sm:$0xff] %vm718, 0.0
        %833 = vst.msk [vmem:[#allocation2 + $0x390] sm:$0xff] %vm718, 0.0
        %834 = vst.msk [vmem:[#allocation2 + $0x398] sm:$0xff] %vm718, 0.0
        %835 = vst.msk [vmem:[#allocation2 + $0x3a0] sm:$0xff] %vm718, 0.0
        %836 = vst.msk [vmem:[#allocation2 + $0x3a8] sm:$0xff] %vm718, 0.0
        %837 = vst.msk [vmem:[#allocation2 + $0x3b0] sm:$0xff] %vm718, 0.0
        %838 = vst.msk [vmem:[#allocation2 + $0x3b8] sm:$0xff] %vm718, 0.0
        %839 = vst.msk [vmem:[#allocation2 + $0x3c0] sm:$0xff] %vm718, 0.0
        %840 = vst.msk [vmem:[#allocation2 + $0x3c8] sm:$0xff] %vm718, 0.0
        %841 = vst.msk [vmem:[#allocation2 + $0x3d0] sm:$0xff] %vm718, 0.0
        %842 = vst.msk [vmem:[#allocation2 + $0x3d8] sm:$0xff] %vm718, 0.0
        %843 = vst.msk [vmem:[#allocation2 + $0x3e0] sm:$0xff] %vm718, 0.0
        %844 = vst.msk [vmem:[#allocation2 + $0x3e8] sm:$0xff] %vm718, 0.0
        %845 = vst.msk [vmem:[#allocation2 + $0x3f0] sm:$0xff] %vm718, 0.0
        %846 = vst.msk [vmem:[#allocation2 + $0x3f8] sm:$0xff] %vm718, 0.0
        %847 = vst.msk [vmem:[#allocation2 + $0x400] sm:$0xff] %vm718, 0.0
        %848 = vst.msk [vmem:[#allocation2 + $0x408] sm:$0xff] %vm718, 0.0
        %849 = vst.msk [vmem:[#allocation2 + $0x410] sm:$0xff] %vm718, 0.0
        %850 = vst.msk [vmem:[#allocation2 + $0x418] sm:$0xff] %vm718, 0.0
        %851 = vst.msk [vmem:[#allocation2 + $0x420] sm:$0xff] %vm718, 0.0
        %852 = vst.msk [vmem:[#allocation2 + $0x428] sm:$0xff] %vm718, 0.0
        %853 = vst.msk [vmem:[#allocation2 + $0x430] sm:$0xff] %vm718, 0.0
        %854 = vst.msk [vmem:[#allocation2 + $0x438] sm:$0xff] %vm718, 0.0
        %855 = vst.msk [vmem:[#allocation2 + $0x440] sm:$0xff] %vm718, 0.0
        %856 = vst.msk [vmem:[#allocation2 + $0x448] sm:$0xff] %vm718, 0.0
        %857 = vst.msk [vmem:[#allocation2 + $0x450] sm:$0xff] %vm718, 0.0
        %858 = vst.msk [vmem:[#allocation2 + $0x458] sm:$0xff] %vm718, 0.0
        %859 = vst.msk [vmem:[#allocation2 + $0x460] sm:$0xff] %vm718, 0.0
        %860 = vst.msk [vmem:[#allocation2 + $0x468] sm:$0xff] %vm718, 0.0
        %861 = vst.msk [vmem:[#allocation2 + $0x470] sm:$0xff] %vm718, 0.0
        %862 = vst.msk [vmem:[#allocation2 + $0x478] sm:$0xff] %vm718, 0.0
        %863 = vst.msk [vmem:[#allocation2 + $0x480] sm:$0xff] %vm718, 0.0
        %864 = vst.msk [vmem:[#allocation2 + $0x488] sm:$0xff] %vm718, 0.0
        %865 = vst.msk [vmem:[#allocation2 + $0x490] sm:$0xff] %vm718, 0.0
        %866 = vst.msk [vmem:[#allocation2 + $0x498] sm:$0xff] %vm718, 0.0
        %867 = vst.msk [vmem:[#allocation2 + $0x4a0] sm:$0xff] %vm718, 0.0
        %868 = vst.msk [vmem:[#allocation2 + $0x4a8] sm:$0xff] %vm718, 0.0
        %869 = vst.msk [vmem:[#allocation2 + $0x4b0] sm:$0xff] %vm718, 0.0
        %870 = vst.msk [vmem:[#allocation2 + $0x4b8] sm:$0xff] %vm718, 0.0
        %871 = vst.msk [vmem:[#allocation2 + $0x4c0] sm:$0xff] %vm718, 0.0
        %872 = vst.msk [vmem:[#allocation2 + $0x4c8] sm:$0xff] %vm718, 0.0
        %873 = vst.msk [vmem:[#allocation2 + $0x4d0] sm:$0xff] %vm718, 0.0
        %874 = vst.msk [vmem:[#allocation2 + $0x4d8] sm:$0xff] %vm718, 0.0
        %875 = vst.msk [vmem:[#allocation2 + $0x4e0] sm:$0xff] %vm718, 0.0
        %876 = vst.msk [vmem:[#allocation2 + $0x4e8] sm:$0xff] %vm718, 0.0
        %877 = vst.msk [vmem:[#allocation2 + $0x4f0] sm:$0xff] %vm718, 0.0
        %878 = vst.msk [vmem:[#allocation2 + $0x4f8] sm:$0xff] %vm718, 0.0
        %879 = vst.msk [vmem:[#allocation2 + $0x500] sm:$0xff] %vm718, 0.0
        %880 = vst.msk [vmem:[#allocation2 + $0x508] sm:$0xff] %vm718, 0.0
        %881 = vst.msk [vmem:[#allocation2 + $0x510] sm:$0xff] %vm718, 0.0
        %882 = vst.msk [vmem:[#allocation2 + $0x518] sm:$0xff] %vm718, 0.0
        %883 = vst.msk [vmem:[#allocation2 + $0x520] sm:$0xff] %vm718, 0.0
        %884 = vst.msk [vmem:[#allocation2 + $0x528] sm:$0xff] %vm718, 0.0
        %885 = vst.msk [vmem:[#allocation2 + $0x530] sm:$0xff] %vm718, 0.0
        %886 = vst.msk [vmem:[#allocation2 + $0x538] sm:$0xff] %vm718, 0.0
        %887 = vst.msk [vmem:[#allocation2 + $0x540] sm:$0xff] %vm718, 0.0
        %888 = vst.msk [vmem:[#allocation2 + $0x548] sm:$0xff] %vm718, 0.0
        %889 = vst.msk [vmem:[#allocation2 + $0x550] sm:$0xff] %vm718, 0.0
        %890 = vst.msk [vmem:[#allocation2 + $0x558] sm:$0xff] %vm718, 0.0
        %891 = vst.msk [vmem:[#allocation2 + $0x560] sm:$0xff] %vm718, 0.0
        %892 = vst.msk [vmem:[#allocation2 + $0x568] sm:$0xff] %vm718, 0.0
        %893 = vst.msk [vmem:[#allocation2 + $0x570] sm:$0xff] %vm718, 0.0
        %894 = vst.msk [vmem:[#allocation2 + $0x578] sm:$0xff] %vm718, 0.0
        %895 = vst.msk [vmem:[#allocation2 + $0x580] sm:$0xff] %vm718, 0.0
        %896 = vst.msk [vmem:[#allocation2 + $0x588] sm:$0xff] %vm718, 0.0
        %897 = vst.msk [vmem:[#allocation2 + $0x590] sm:$0xff] %vm718, 0.0
        %898 = vst.msk [vmem:[#allocation2 + $0x598] sm:$0xff] %vm718, 0.0
        %899 = vst.msk [vmem:[#allocation2 + $0x5a0] sm:$0xff] %vm718, 0.0
        %900 = vst.msk [vmem:[#allocation2 + $0x5a8] sm:$0xff] %vm718, 0.0
        %901 = vst.msk [vmem:[#allocation2 + $0x5b0] sm:$0xff] %vm718, 0.0
        %902 = vst.msk [vmem:[#allocation2 + $0x5b8] sm:$0xff] %vm718, 0.0
        %903 = vst.msk [vmem:[#allocation2 + $0x5c0] sm:$0xff] %vm718, 0.0
        %904 = vst.msk [vmem:[#allocation2 + $0x5c8] sm:$0xff] %vm718, 0.0
        %905 = vst.msk [vmem:[#allocation2 + $0x5d0] sm:$0xff] %vm718, 0.0
        %906 = vst.msk [vmem:[#allocation2 + $0x5d8] sm:$0xff] %vm718, 0.0
        %907 = vst.msk [vmem:[#allocation2 + $0x5e0] sm:$0xff] %vm718, 0.0
        %908 = vst.msk [vmem:[#allocation2 + $0x5e8] sm:$0xff] %vm718, 0.0
        %909 = vst.msk [vmem:[#allocation2 + $0x5f0] sm:$0xff] %vm718, 0.0
        %910 = vst.msk [vmem:[#allocation2 + $0x5f8] sm:$0xff] %vm718, 0.0
        %911 = vst.msk [vmem:[#allocation2 + $0x600] sm:$0xff] %vm718, 0.0
        %912 = vst.msk [vmem:[#allocation2 + $0x608] sm:$0xff] %vm718, 0.0
        %913 = vst.msk [vmem:[#allocation2 + $0x610] sm:$0xff] %vm718, 0.0
        %914 = vst.msk [vmem:[#allocation2 + $0x618] sm:$0xff] %vm718, 0.0
        %915 = vst.msk [vmem:[#allocation2 + $0x620] sm:$0xff] %vm718, 0.0
        %916 = vst.msk [vmem:[#allocation2 + $0x628] sm:$0xff] %vm718, 0.0
        %917 = vst.msk [vmem:[#allocation2 + $0x630] sm:$0xff] %vm718, 0.0
        %918 = vst.msk [vmem:[#allocation2 + $0x638] sm:$0xff] %vm718, 0.0
        %919 = vst.msk [vmem:[#allocation2 + $0x640] sm:$0xff] %vm718, 0.0
        %920 = vst.msk [vmem:[#allocation2 + $0x648] sm:$0xff] %vm718, 0.0
        %921 = vst.msk [vmem:[#allocation2 + $0x650] sm:$0xff] %vm718, 0.0
        %922 = vst.msk [vmem:[#allocation2 + $0x658] sm:$0xff] %vm718, 0.0
        %923 = vst.msk [vmem:[#allocation2 + $0x660] sm:$0xff] %vm718, 0.0
        %924 = vst.msk [vmem:[#allocation2 + $0x668] sm:$0xff] %vm718, 0.0
        %925 = vst.msk [vmem:[#allocation2 + $0x670] sm:$0xff] %vm718, 0.0
        %926 = vst.msk [vmem:[#allocation2 + $0x678] sm:$0xff] %vm718, 0.0
        %927 = vst.msk [vmem:[#allocation2 + $0x680] sm:$0xff] %vm718, 0.0
        %928 = vst.msk [vmem:[#allocation2 + $0x688] sm:$0xff] %vm718, 0.0
        %929 = vst.msk [vmem:[#allocation2 + $0x690] sm:$0xff] %vm718, 0.0
        %930 = vst.msk [vmem:[#allocation2 + $0x698] sm:$0xff] %vm718, 0.0
        %931 = vst.msk [vmem:[#allocation2 + $0x6a0] sm:$0xff] %vm718, 0.0
        %932 = vst.msk [vmem:[#allocation2 + $0x6a8] sm:$0xff] %vm718, 0.0
        %933 = vst.msk [vmem:[#allocation2 + $0x6b0] sm:$0xff] %vm718, 0.0
        %934 = vst.msk [vmem:[#allocation2 + $0x6b8] sm:$0xff] %vm718, 0.0
        %935 = vst.msk [vmem:[#allocation2 + $0x6c0] sm:$0xff] %vm718, 0.0
        %936 = vst.msk [vmem:[#allocation2 + $0x6c8] sm:$0xff] %vm718, 0.0
        %937 = vst.msk [vmem:[#allocation2 + $0x6d0] sm:$0xff] %vm718, 0.0
        %938 = vst.msk [vmem:[#allocation2 + $0x6d8] sm:$0xff] %vm718, 0.0
        %939 = vst.msk [vmem:[#allocation2 + $0x6e0] sm:$0xff] %vm718, 0.0
        %940 = vst.msk [vmem:[#allocation2 + $0x6e8] sm:$0xff] %vm718, 0.0
        %941 = vst.msk [vmem:[#allocation2 + $0x6f0] sm:$0xff] %vm718, 0.0
        %942 = vst.msk [vmem:[#allocation2 + $0x6f8] sm:$0xff] %vm718, 0.0
        %943 = vst.msk [vmem:[#allocation2 + $0x700] sm:$0xff] %vm718, 0.0
        %944 = vst.msk [vmem:[#allocation2 + $0x708] sm:$0xff] %vm718, 0.0
        %945 = vst.msk [vmem:[#allocation2 + $0x710] sm:$0xff] %vm718, 0.0
        %946 = vst.msk [vmem:[#allocation2 + $0x718] sm:$0xff] %vm718, 0.0
        %947 = vst.msk [vmem:[#allocation2 + $0x720] sm:$0xff] %vm718, 0.0
        %948 = vst.msk [vmem:[#allocation2 + $0x728] sm:$0xff] %vm718, 0.0
        %949 = vst.msk [vmem:[#allocation2 + $0x730] sm:$0xff] %vm718, 0.0
        %950 = vst.msk [vmem:[#allocation2 + $0x738] sm:$0xff] %vm718, 0.0
        %951 = vst.msk [vmem:[#allocation2 + $0x740] sm:$0xff] %vm718, 0.0
        %952 = vst.msk [vmem:[#allocation2 + $0x748] sm:$0xff] %vm718, 0.0
        %953 = vst.msk [vmem:[#allocation2 + $0x750] sm:$0xff] %vm718, 0.0
        %954 = vst.msk [vmem:[#allocation2 + $0x758] sm:$0xff] %vm718, 0.0
        %955 = vst.msk [vmem:[#allocation2 + $0x760] sm:$0xff] %vm718, 0.0
        %956 = vst.msk [vmem:[#allocation2 + $0x768] sm:$0xff] %vm718, 0.0
        %957 = vst.msk [vmem:[#allocation2 + $0x770] sm:$0xff] %vm718, 0.0
        %958 = vst.msk [vmem:[#allocation2 + $0x778] sm:$0xff] %vm718, 0.0
        %959 = vst.msk [vmem:[#allocation2 + $0x780] sm:$0xff] %vm718, 0.0
        %960 = vst.msk [vmem:[#allocation2 + $0x788] sm:$0xff] %vm718, 0.0
        %961 = vst.msk [vmem:[#allocation2 + $0x790] sm:$0xff] %vm718, 0.0
        %962 = vst.msk [vmem:[#allocation2 + $0x798] sm:$0xff] %vm718, 0.0
        %963 = vst.msk [vmem:[#allocation2 + $0x7a0] sm:$0xff] %vm718, 0.0
        %964 = vst.msk [vmem:[#allocation2 + $0x7a8] sm:$0xff] %vm718, 0.0
        %965 = vst.msk [vmem:[#allocation2 + $0x7b0] sm:$0xff] %vm718, 0.0
        %966 = vst.msk [vmem:[#allocation2 + $0x7b8] sm:$0xff] %vm718, 0.0
        %967 = vst.msk [vmem:[#allocation2 + $0x7c0] sm:$0xff] %vm718, 0.0
        %968 = vst.msk [vmem:[#allocation2 + $0x7c8] sm:$0xff] %vm718, 0.0
        %969 = vst.msk [vmem:[#allocation2 + $0x7d0] sm:$0xff] %vm718, 0.0
        %970 = vst.msk [vmem:[#allocation2 + $0x7d8] sm:$0xff] %vm718, 0.0
        %971 = vst.msk [vmem:[#allocation2 + $0x7e0] sm:$0xff] %vm718, 0.0
        %972 = vst.msk [vmem:[#allocation2 + $0x7e8] sm:$0xff] %vm718, 0.0
        %973 = vst.msk [vmem:[#allocation2 + $0x7f0] sm:$0xff] %vm718, 0.0
        %974 = vst.msk [vmem:[#allocation2 + $0x7f8] sm:$0xff] %vm718, 0.0
        %975 = vst.msk [vmem:[#allocation2 + $0x800] sm:$0xff] %vm718, 0.0
        %976 = vst.msk [vmem:[#allocation2 + $0x808] sm:$0xff] %vm718, 0.0
        %977 = vst.msk [vmem:[#allocation2 + $0x810] sm:$0xff] %vm718, 0.0
        %978 = vst.msk [vmem:[#allocation2 + $0x818] sm:$0xff] %vm718, 0.0
        %979 = vst.msk [vmem:[#allocation2 + $0x820] sm:$0xff] %vm718, 0.0
        %980 = vst.msk [vmem:[#allocation2 + $0x828] sm:$0xff] %vm718, 0.0
        %981 = vst.msk [vmem:[#allocation2 + $0x830] sm:$0xff] %vm718, 0.0
        %982 = vst.msk [vmem:[#allocation2 + $0x838] sm:$0xff] %vm718, 0.0
        %983 = vst.msk [vmem:[#allocation2 + $0x840] sm:$0xff] %vm718, 0.0
        %984 = vst.msk [vmem:[#allocation2 + $0x848] sm:$0xff] %vm718, 0.0
        %985 = vst.msk [vmem:[#allocation2 + $0x850] sm:$0xff] %vm718, 0.0
        %986 = vst.msk [vmem:[#allocation2 + $0x858] sm:$0xff] %vm718, 0.0
        %987 = vst.msk [vmem:[#allocation2 + $0x860] sm:$0xff] %vm718, 0.0
        %988 = vst.msk [vmem:[#allocation2 + $0x868] sm:$0xff] %vm718, 0.0
        %989 = vst.msk [vmem:[#allocation2 + $0x870] sm:$0xff] %vm718, 0.0
        %990 = vst.msk [vmem:[#allocation2 + $0x878] sm:$0xff] %vm718, 0.0
        %991 = vst.msk [vmem:[#allocation2 + $0x880] sm:$0xff] %vm718, 0.0
        %992 = vst.msk [vmem:[#allocation2 + $0x888] sm:$0xff] %vm718, 0.0
        %993 = vst.msk [vmem:[#allocation2 + $0x890] sm:$0xff] %vm718, 0.0
        %994 = vst.msk [vmem:[#allocation2 + $0x898] sm:$0xff] %vm718, 0.0
        %995 = vst.msk [vmem:[#allocation2 + $0x8a0] sm:$0xff] %vm718, 0.0
        %996 = vst.msk [vmem:[#allocation2 + $0x8a8] sm:$0xff] %vm718, 0.0
        %997 = vst.msk [vmem:[#allocation2 + $0x8b0] sm:$0xff] %vm718, 0.0
        %998 = vst.msk [vmem:[#allocation2 + $0x8b8] sm:$0xff] %vm718, 0.0
        %999 = vst.msk [vmem:[#allocation2 + $0x8c0] sm:$0xff] %vm718, 0.0
        %1000 = vst.msk [vmem:[#allocation2 + $0x8c8] sm:$0xff] %vm718, 0.0
        %1001 = vst.msk [vmem:[#allocation2 + $0x8d0] sm:$0xff] %vm718, 0.0
        %1002 = vst.msk [vmem:[#allocation2 + $0x8d8] sm:$0xff] %vm718, 0.0
        %1003 = vst.msk [vmem:[#allocation2 + $0x8e0] sm:$0xff] %vm718, 0.0
        %1004 = vst.msk [vmem:[#allocation2 + $0x8e8] sm:$0xff] %vm718, 0.0
        %1005 = vst.msk [vmem:[#allocation2 + $0x8f0] sm:$0xff] %vm718, 0.0
        %1006 = vst.msk [vmem:[#allocation2 + $0x8f8] sm:$0xff] %vm718, 0.0
        %s1007 = scalar_lea.vmem [#allocation2], 768
        %1008 = vst.msk [vmem:[%s1007 + $0x10] sm:$0xff] %vm718, %v686
        %1009 = vst.msk [vmem:[%s1007 + $0x18] sm:$0xff] %vm718, %v687
        %1010 = vst.msk [vmem:[%s1007 + $0x40] sm:$0xff] %vm718, %v688
        %1011 = vst.msk [vmem:[%s1007 + $0x48] sm:$0xff] %vm718, %v689
        %1012 = vst.msk [vmem:[%s1007 + $0x70] sm:$0xff] %vm718, %v690
        %1013 = vst.msk [vmem:[%s1007 + $0x78] sm:$0xff] %vm718, %v691
        %1014 = vst.msk [vmem:[%s1007 + $0xa0] sm:$0xff] %vm718, %v692
        %1015 = vst.msk [vmem:[%s1007 + $0xa8] sm:$0xff] %vm718, %v693
        %1016 = vst.msk [vmem:[%s1007 + $0xd0] sm:$0xff] %vm718, %v694
        %1017 = vst.msk [vmem:[%s1007 + $0xd8] sm:$0xff] %vm718, %v695
        %1018 = vst.msk [vmem:[%s1007 + $0x100] sm:$0xff] %vm718, %v696
        %1019 = vst.msk [vmem:[%s1007 + $0x108] sm:$0xff] %vm718, %v697
        %1020 = vst.msk [vmem:[%s1007 + $0x130] sm:$0xff] %vm718, %v698
        %1021 = vst.msk [vmem:[%s1007 + $0x138] sm:$0xff] %vm718, %v699
        %1022 = vst.msk [vmem:[%s1007 + $0x160] sm:$0xff] %vm718, %v700
        %1023 = vst.msk [vmem:[%s1007 + $0x168] sm:$0xff] %vm718, %v701
        %1024 = vst.msk [vmem:[%s1007 + $0x190] sm:$0xff] %vm718, %v702
        %1025 = vst.msk [vmem:[%s1007 + $0x198] sm:$0xff] %vm718, %v703
        %1026 = vst.msk [vmem:[%s1007 + $0x1c0] sm:$0xff] %vm718, %v704
        %1027 = vst.msk [vmem:[%s1007 + $0x1c8] sm:$0xff] %vm718, %v705
        %1028 = vst.msk [vmem:[%s1007 + $0x1f0] sm:$0xff] %vm718, %v706
        %1029 = vst.msk [vmem:[%s1007 + $0x1f8] sm:$0xff] %vm718, %v707
        %1030 = vst.msk [vmem:[%s1007 + $0x220] sm:$0xff] %vm718, %v708
        %1031 = vst.msk [vmem:[%s1007 + $0x228] sm:$0xff] %vm718, %v709
        %1032 = vst.msk [vmem:[%s1007 + $0x250] sm:$0xff] %vm718, %v710
        %1033 = vst.msk [vmem:[%s1007 + $0x258] sm:$0xff] %vm718, %v711
        %1034 = vst.msk [vmem:[%s1007 + $0x280] sm:$0xff] %vm718, %v712
        %1035 = vst.msk [vmem:[%s1007 + $0x288] sm:$0xff] %vm718, %v713
        %1036 = vst.msk [vmem:[%s1007 + $0x2b0] sm:$0xff] %vm718, %v714
        %1037 = vst.msk [vmem:[%s1007 + $0x2b8] sm:$0xff] %vm718, %v715
        %1038 = vst.msk [vmem:[%s1007 + $0x2e0] sm:$0xff] %vm718, %v716
        %1039 = vst.msk [vmem:[%s1007 + $0x2e8] sm:$0xff] %vm718, %v717
        %v1040 = vld [vmem:[%s1007 + $0x1a] sm:$0xff]
        %v1041 = vld [vmem:[%s1007 + $0x22] sm:$0xff]
        %v1042 = vld [vmem:[%s1007 + $0x4a] sm:$0xff]
        %v1043 = vld [vmem:[%s1007 + $0x52] sm:$0xff]
        %v1044 = vld [vmem:[%s1007 + $0x7a] sm:$0xff]
        %v1045 = vld [vmem:[%s1007 + $0x82] sm:$0xff]
        %v1046 = vld [vmem:[%s1007 + $0xaa] sm:$0xff]
        %v1047 = vld [vmem:[%s1007 + $0xb2] sm:$0xff]
        %v1048 = vld [vmem:[%s1007 + $0xda] sm:$0xff]
        %v1049 = vld [vmem:[%s1007 + $0xe2] sm:$0xff]
        %v1050 = vld [vmem:[%s1007 + $0x10a] sm:$0xff]
        %v1051 = vld [vmem:[%s1007 + $0x112] sm:$0xff]
        %v1052 = vld [vmem:[%s1007 + $0x13a] sm:$0xff]
        %v1053 = vld [vmem:[%s1007 + $0x142] sm:$0xff]
        %v1054 = vld [vmem:[%s1007 + $0x16a] sm:$0xff]
        %v1055 = vld [vmem:[%s1007 + $0x172] sm:$0xff]
        %v1056 = vld [vmem:[%s1007 + $0x19a] sm:$0xff]
        %v1057 = vld [vmem:[%s1007 + $0x1a2] sm:$0xff]
        %v1058 = vld [vmem:[%s1007 + $0x1ca] sm:$0xff]
        %v1059 = vld [vmem:[%s1007 + $0x1d2] sm:$0xff]
        %v1060 = vld [vmem:[%s1007 + $0x1fa] sm:$0xff]
        %v1061 = vld [vmem:[%s1007 + $0x202] sm:$0xff]
        %v1062 = vld [vmem:[%s1007 + $0x22a] sm:$0xff]
        %v1063 = vld [vmem:[%s1007 + $0x232] sm:$0xff]
        %v1064 = vld [vmem:[%s1007 + $0x25a] sm:$0xff]
        %v1065 = vld [vmem:[%s1007 + $0x262] sm:$0xff]
        %v1066 = vld [vmem:[%s1007 + $0x28a] sm:$0xff]
        %v1067 = vld [vmem:[%s1007 + $0x292] sm:$0xff]
        %v1068 = vld [vmem:[%s1007 + $0x2ba] sm:$0xff]
        %v1069 = vld [vmem:[%s1007 + $0x2c2] sm:$0xff]
        %v1070 = vld [vmem:[%s1007 + $0x2ea] sm:$0xff]
        %v1071 = vld [vmem:[%s1007 + $0x2f2] sm:$0xff]
        %v1072 = vld [vmem:[%s1007 + $0x6] sm:$0xff]
        %v1073 = vld [vmem:[%s1007 + $0xe] sm:$0xff]
        %v1074 = vld [vmem:[%s1007 + $0x36] sm:$0xff]
        %v1075 = vld [vmem:[%s1007 + $0x3e] sm:$0xff]
        %v1076 = vld [vmem:[%s1007 + $0x66] sm:$0xff]
        %v1077 = vld [vmem:[%s1007 + $0x6e] sm:$0xff]
        %v1078 = vld [vmem:[%s1007 + $0x96] sm:$0xff]
        %v1079 = vld [vmem:[%s1007 + $0x9e] sm:$0xff]
        %v1080 = vld [vmem:[%s1007 + $0xc6] sm:$0xff]
        %v1081 = vld [vmem:[%s1007 + $0xce] sm:$0xff]
        %v1082 = vld [vmem:[%s1007 + $0xf6] sm:$0xff]
        %v1083 = vld [vmem:[%s1007 + $0xfe] sm:$0xff]
        %v1084 = vld [vmem:[%s1007 + $0x126] sm:$0xff]
        %v1085 = vld [vmem:[%s1007 + $0x12e] sm:$0xff]
        %v1086 = vld [vmem:[%s1007 + $0x156] sm:$0xff]
        %v1087 = vld [vmem:[%s1007 + $0x15e] sm:$0xff]
        %v1088 = vld [vmem:[%s1007 + $0x186] sm:$0xff]
        %v1089 = vld [vmem:[%s1007 + $0x18e] sm:$0xff]
        %v1090 = vld [vmem:[%s1007 + $0x1b6] sm:$0xff]
        %v1091 = vld [vmem:[%s1007 + $0x1be] sm:$0xff]
        %v1092 = vld [vmem:[%s1007 + $0x1e6] sm:$0xff]
        %v1093 = vld [vmem:[%s1007 + $0x1ee] sm:$0xff]
        %v1094 = vld [vmem:[%s1007 + $0x216] sm:$0xff]
        %v1095 = vld [vmem:[%s1007 + $0x21e] sm:$0xff]
        %v1096 = vld [vmem:[%s1007 + $0x246] sm:$0xff]
        %v1097 = vld [vmem:[%s1007 + $0x24e] sm:$0xff]
        %v1098 = vld [vmem:[%s1007 + $0x276] sm:$0xff]
        %v1099 = vld [vmem:[%s1007 + $0x27e] sm:$0xff]
        %v1100 = vld [vmem:[%s1007 + $0x2a6] sm:$0xff]
        %v1101 = vld [vmem:[%s1007 + $0x2ae] sm:$0xff]
        %v1102 = vld [vmem:[%s1007 + $0x2d6] sm:$0xff]
        %v1103 = vld [vmem:[%s1007 + $0x2de] sm:$0xff]
        %s1104 = scalar_lea.vmem [#allocation2], 1248
        %v1105 = vld [vmem:[%s1104 + $0x10] sm:$0xff]
        %v1106 = vld [vmem:[%s1104 + $0x18] sm:$0xff]
        %v1107 = vld [vmem:[%s1104 + $0x40] sm:$0xff]
        %v1108 = vld [vmem:[%s1104 + $0x48] sm:$0xff]
        %v1109 = vld [vmem:[%s1104 + $0x70] sm:$0xff]
        %v1110 = vld [vmem:[%s1104 + $0x78] sm:$0xff]
        %v1111 = vld [vmem:[%s1104 + $0xa0] sm:$0xff]
        %v1112 = vld [vmem:[%s1104 + $0xa8] sm:$0xff]
        %v1113 = vld [vmem:[%s1104 + $0xd0] sm:$0xff]
        %v1114 = vld [vmem:[%s1104 + $0xd8] sm:$0xff]
        %v1115 = vld [vmem:[%s1104 + $0x100] sm:$0xff]
        %v1116 = vld [vmem:[%s1104 + $0x108] sm:$0xff]
        %v1117 = vld [vmem:[%s1104 + $0x130] sm:$0xff]
        %v1118 = vld [vmem:[%s1104 + $0x138] sm:$0xff]
        %v1119 = vld [vmem:[%s1104 + $0x160] sm:$0xff]
        %v1120 = vld [vmem:[%s1104 + $0x168] sm:$0xff]
        %v1121 = vld [vmem:[%s1104 + $0x190] sm:$0xff]
        %v1122 = vld [vmem:[%s1104 + $0x198] sm:$0xff]
        %v1123 = vld [vmem:[%s1104 + $0x1c0] sm:$0xff]
        %v1124 = vld [vmem:[%s1104 + $0x1c8] sm:$0xff]
        %v1125 = vld [vmem:[%s1104 + $0x1f0] sm:$0xff]
        %v1126 = vld [vmem:[%s1104 + $0x1f8] sm:$0xff]
        %v1127 = vld [vmem:[%s1104 + $0x220] sm:$0xff]
        %v1128 = vld [vmem:[%s1104 + $0x228] sm:$0xff]
        %v1129 = vld [vmem:[%s1104 + $0x250] sm:$0xff]
        %v1130 = vld [vmem:[%s1104 + $0x258] sm:$0xff]
        %v1131 = vld [vmem:[%s1104 + $0x280] sm:$0xff]
        %v1132 = vld [vmem:[%s1104 + $0x288] sm:$0xff]
        %v1133 = vld [vmem:[%s1104 + $0x2b0] sm:$0xff]
        %v1134 = vld [vmem:[%s1104 + $0x2b8] sm:$0xff]
        %v1135 = vld [vmem:[%s1104 + $0x2e0] sm:$0xff]
        %v1136 = vld [vmem:[%s1104 + $0x2e8] sm:$0xff]
        %s1137 = scalar_lea.vmem [#allocation2], 288
        %v1138 = vld [vmem:[%s1137 + $0x10] sm:$0xff]
        %v1139 = vld [vmem:[%s1137 + $0x18] sm:$0xff]
        %v1140 = vld [vmem:[%s1137 + $0x40] sm:$0xff]
        %v1141 = vld [vmem:[%s1137 + $0x48] sm:$0xff]
        %v1142 = vld [vmem:[%s1137 + $0x70] sm:$0xff]
        %v1143 = vld [vmem:[%s1137 + $0x78] sm:$0xff]
        %v1144 = vld [vmem:[%s1137 + $0xa0] sm:$0xff]
        %v1145 = vld [vmem:[%s1137 + $0xa8] sm:$0xff]
        %v1146 = vld [vmem:[%s1137 + $0xd0] sm:$0xff]
        %v1147 = vld [vmem:[%s1137 + $0xd8] sm:$0xff]
        %v1148 = vld [vmem:[%s1137 + $0x100] sm:$0xff]
        %v1149 = vld [vmem:[%s1137 + $0x108] sm:$0xff]
        %v1150 = vld [vmem:[%s1137 + $0x130] sm:$0xff]
        %v1151 = vld [vmem:[%s1137 + $0x138] sm:$0xff]
        %v1152 = vld [vmem:[%s1137 + $0x160] sm:$0xff]
        %v1153 = vld [vmem:[%s1137 + $0x168] sm:$0xff]
        %v1154 = vld [vmem:[%s1137 + $0x190] sm:$0xff]
        %v1155 = vld [vmem:[%s1137 + $0x198] sm:$0xff]
        %v1156 = vld [vmem:[%s1137 + $0x1c0] sm:$0xff]
        %v1157 = vld [vmem:[%s1137 + $0x1c8] sm:$0xff]
        %v1158 = vld [vmem:[%s1137 + $0x1f0] sm:$0xff]
        %v1159 = vld [vmem:[%s1137 + $0x1f8] sm:$0xff]
        %v1160 = vld [vmem:[%s1137 + $0x220] sm:$0xff]
        %v1161 = vld [vmem:[%s1137 + $0x228] sm:$0xff]
        %v1162 = vld [vmem:[%s1137 + $0x250] sm:$0xff]
        %v1163 = vld [vmem:[%s1137 + $0x258] sm:$0xff]
        %v1164 = vld [vmem:[%s1137 + $0x280] sm:$0xff]
        %v1165 = vld [vmem:[%s1137 + $0x288] sm:$0xff]
        %v1166 = vld [vmem:[%s1137 + $0x2b0] sm:$0xff]
        %v1167 = vld [vmem:[%s1137 + $0x2b8] sm:$0xff]
        %v1168 = vld [vmem:[%s1137 + $0x2e0] sm:$0xff]
        %v1169 = vld [vmem:[%s1137 + $0x2e8] sm:$0xff]
        %v1170 = vlaneseq
        %v1171 = vand.u32 %v1170, 127
        %vm1172 = vcmp.lt.s32.totalorder %v1171, 1
        %vm1173 = vcmp.lt.s32.totalorder %v1171, 2
        %vm1174 = vcmp.lt.s32.totalorder %v1171, 3
        %vm1175 = vcmp.lt.s32.totalorder %v1171, 4
        %v1176 = vsel %vm1175, %v1138, %v686
        %v1177 = vsel %vm1175, %v1139, %v687
        %v1178 = vsel %vm1175, %v1140, %v688
        %v1179 = vsel %vm1175, %v1141, %v689
        %v1180 = vsel %vm1175, %v1142, %v690
        %v1181 = vsel %vm1175, %v1143, %v691
        %v1182 = vsel %vm1175, %v1144, %v692
        %v1183 = vsel %vm1175, %v1145, %v693
        %v1184 = vsel %vm1175, %v1146, %v694
        %v1185 = vsel %vm1175, %v1147, %v695
        %v1186 = vsel %vm1175, %v1148, %v696
        %v1187 = vsel %vm1175, %v1149, %v697
        %v1188 = vsel %vm1175, %v1150, %v698
        %v1189 = vsel %vm1175, %v1151, %v699
        %v1190 = vsel %vm1175, %v1152, %v700
        %v1191 = vsel %vm1175, %v1153, %v701
        %v1192 = vsel %vm1175, %v1154, %v702
        %v1193 = vsel %vm1175, %v1155, %v703
        %v1194 = vsel %vm1175, %v1156, %v704
        %v1195 = vsel %vm1175, %v1157, %v705
        %v1196 = vsel %vm1175, %v1158, %v706
        %v1197 = vsel %vm1175, %v1159, %v707
        %v1198 = vsel %vm1175, %v1160, %v708
        %v1199 = vsel %vm1175, %v1161, %v709
        %v1200 = vsel %vm1175, %v1162, %v710
        %v1201 = vsel %vm1175, %v1163, %v711
        %v1202 = vsel %vm1175, %v1164, %v712
        %v1203 = vsel %vm1175, %v1165, %v713
        %v1204 = vsel %vm1175, %v1166, %v714
        %v1205 = vsel %vm1175, %v1167, %v715
        %v1206 = vsel %vm1175, %v1168, %v716
        %v1207 = vsel %vm1175, %v1169, %v717
        %v1208 = vsel %vm1174, %v1105, %v1176
        %v1209 = vsel %vm1174, %v1106, %v1177
        %v1210 = vsel %vm1174, %v1107, %v1178
        %v1211 = vsel %vm1174, %v1108, %v1179
        %v1212 = vsel %vm1174, %v1109, %v1180
        %v1213 = vsel %vm1174, %v1110, %v1181
        %v1214 = vsel %vm1174, %v1111, %v1182
        %v1215 = vsel %vm1174, %v1112, %v1183
        %v1216 = vsel %vm1174, %v1113, %v1184
        %v1217 = vsel %vm1174, %v1114, %v1185
        %v1218 = vsel %vm1174, %v1115, %v1186
        %v1219 = vsel %vm1174, %v1116, %v1187
        %v1220 = vsel %vm1174, %v1117, %v1188
        %v1221 = vsel %vm1174, %v1118, %v1189
        %v1222 = vsel %vm1174, %v1119, %v1190
        %v1223 = vsel %vm1174, %v1120, %v1191
        %v1224 = vsel %vm1174, %v1121, %v1192
        %v1225 = vsel %vm1174, %v1122, %v1193
        %v1226 = vsel %vm1174, %v1123, %v1194
        %v1227 = vsel %vm1174, %v1124, %v1195
        %v1228 = vsel %vm1174, %v1125, %v1196
        %v1229 = vsel %vm1174, %v1126, %v1197
        %v1230 = vsel %vm1174, %v1127, %v1198
        %v1231 = vsel %vm1174, %v1128, %v1199
        %v1232 = vsel %vm1174, %v1129, %v1200
        %v1233 = vsel %vm1174, %v1130, %v1201
        %v1234 = vsel %vm1174, %v1131, %v1202
        %v1235 = vsel %vm1174, %v1132, %v1203
        %v1236 = vsel %vm1174, %v1133, %v1204
        %v1237 = vsel %vm1174, %v1134, %v1205
        %v1238 = vsel %vm1174, %v1135, %v1206
        %v1239 = vsel %vm1174, %v1136, %v1207
        %v1240 = vsel %vm1173, %v1072, %v1208
        %v1241 = vsel %vm1173, %v1073, %v1209
        %v1242 = vsel %vm1173, %v1074, %v1210
        %v1243 = vsel %vm1173, %v1075, %v1211
        %v1244 = vsel %vm1173, %v1076, %v1212
        %v1245 = vsel %vm1173, %v1077, %v1213
        %v1246 = vsel %vm1173, %v1078, %v1214
        %v1247 = vsel %vm1173, %v1079, %v1215
        %v1248 = vsel %vm1173, %v1080, %v1216
        %v1249 = vsel %vm1173, %v1081, %v1217
        %v1250 = vsel %vm1173, %v1082, %v1218
        %v1251 = vsel %vm1173, %v1083, %v1219
        %v1252 = vsel %vm1173, %v1084, %v1220
        %v1253 = vsel %vm1173, %v1085, %v1221
        %v1254 = vsel %vm1173, %v1086, %v1222
        %v1255 = vsel %vm1173, %v1087, %v1223
        %v1256 = vsel %vm1173, %v1088, %v1224
        %v1257 = vsel %vm1173, %v1089, %v1225
        %v1258 = vsel %vm1173, %v1090, %v1226
        %v1259 = vsel %vm1173, %v1091, %v1227
        %v1260 = vsel %vm1173, %v1092, %v1228
        %v1261 = vsel %vm1173, %v1093, %v1229
        %v1262 = vsel %vm1173, %v1094, %v1230
        %v1263 = vsel %vm1173, %v1095, %v1231
        %v1264 = vsel %vm1173, %v1096, %v1232
        %v1265 = vsel %vm1173, %v1097, %v1233
        %v1266 = vsel %vm1173, %v1098, %v1234
        %v1267 = vsel %vm1173, %v1099, %v1235
        %v1268 = vsel %vm1173, %v1100, %v1236
        %v1269 = vsel %vm1173, %v1101, %v1237
        %v1270 = vsel %vm1173, %v1102, %v1238
        %v1271 = vsel %vm1173, %v1103, %v1239
        %v1272 = vsel %vm1172, %v1040, %v1240
        %v1273 = vsel %vm1172, %v1041, %v1241
        %v1274 = vsel %vm1172, %v1042, %v1242
        %v1275 = vsel %vm1172, %v1043, %v1243
        %v1276 = vsel %vm1172, %v1044, %v1244
        %v1277 = vsel %vm1172, %v1045, %v1245
        %v1278 = vsel %vm1172, %v1046, %v1246
        %v1279 = vsel %vm1172, %v1047, %v1247
        %v1280 = vsel %vm1172, %v1048, %v1248
        %v1281 = vsel %vm1172, %v1049, %v1249
        %v1282 = vsel %vm1172, %v1050, %v1250
        %v1283 = vsel %vm1172, %v1051, %v1251
        %v1284 = vsel %vm1172, %v1052, %v1252
        %v1285 = vsel %vm1172, %v1053, %v1253
        %v1286 = vsel %vm1172, %v1054, %v1254
        %v1287 = vsel %vm1172, %v1055, %v1255
        %v1288 = vsel %vm1172, %v1056, %v1256
        %v1289 = vsel %vm1172, %v1057, %v1257
        %v1290 = vsel %vm1172, %v1058, %v1258
        %v1291 = vsel %vm1172, %v1059, %v1259
        %v1292 = vsel %vm1172, %v1060, %v1260
        %v1293 = vsel %vm1172, %v1061, %v1261
        %v1294 = vsel %vm1172, %v1062, %v1262
        %v1295 = vsel %vm1172, %v1063, %v1263
        %v1296 = vsel %vm1172, %v1064, %v1264
        %v1297 = vsel %vm1172, %v1065, %v1265
        %v1298 = vsel %vm1172, %v1066, %v1266
        %v1299 = vsel %vm1172, %v1067, %v1267
        %v1300 = vsel %vm1172, %v1068, %v1268
        %v1301 = vsel %vm1172, %v1069, %v1269
        %v1302 = vsel %vm1172, %v1070, %v1270
        %v1303 = vsel %vm1172, %v1071, %v1271
        %v1304 = vld [vmem:[%s3] sm:$0x1]
        %v1306 = vperm.slane %v1304, 0
        %v1308 = vmul.f32 %v1272, %v1306
        %v1309 = vmul.f32 %v1273, %v1306
        %v1310 = vmul.f32 %v1274, %v1306
        %v1311 = vmul.f32 %v1275, %v1306
        %v1312 = vmul.f32 %v1276, %v1306
        %v1313 = vmul.f32 %v1277, %v1306
        %v1314 = vmul.f32 %v1278, %v1306
        %v1315 = vmul.f32 %v1279, %v1306
        %v1316 = vmul.f32 %v1280, %v1306
        %v1317 = vmul.f32 %v1281, %v1306
        %v1318 = vmul.f32 %v1282, %v1306
        %v1319 = vmul.f32 %v1283, %v1306
        %v1320 = vmul.f32 %v1284, %v1306
        %v1321 = vmul.f32 %v1285, %v1306
        %v1322 = vmul.f32 %v1286, %v1306
        %v1323 = vmul.f32 %v1287, %v1306
        %v1324 = vmul.f32 %v1288, %v1306
        %v1325 = vmul.f32 %v1289, %v1306
        %v1326 = vmul.f32 %v1290, %v1306
        %v1327 = vmul.f32 %v1291, %v1306
        %v1328 = vmul.f32 %v1292, %v1306
        %v1329 = vmul.f32 %v1293, %v1306
        %v1330 = vmul.f32 %v1294, %v1306
        %v1331 = vmul.f32 %v1295, %v1306
        %v1332 = vmul.f32 %v1296, %v1306
        %v1333 = vmul.f32 %v1297, %v1306
        %v1334 = vmul.f32 %v1298, %v1306
        %v1335 = vmul.f32 %v1299, %v1306
        %v1336 = vmul.f32 %v1300, %v1306
        %v1337 = vmul.f32 %v1301, %v1306
        %v1338 = vmul.f32 %v1302, %v1306
        %v1339 = vmul.f32 %v1303, %v1306
        %v1340 = vld [vmem:[%s4] sm:$0x1]
        %v1342 = vperm.slane %v1340, 0
        %v1344 = vadd.f32 %v1308, %v1342
        %v1345 = vadd.f32 %v1309, %v1342
        %v1346 = vadd.f32 %v1310, %v1342
        %v1347 = vadd.f32 %v1311, %v1342
        %v1348 = vadd.f32 %v1312, %v1342
        %v1349 = vadd.f32 %v1313, %v1342
        %v1350 = vadd.f32 %v1314, %v1342
        %v1351 = vadd.f32 %v1315, %v1342
        %v1352 = vadd.f32 %v1316, %v1342
        %v1353 = vadd.f32 %v1317, %v1342
        %v1354 = vadd.f32 %v1318, %v1342
        %v1355 = vadd.f32 %v1319, %v1342
        %v1356 = vadd.f32 %v1320, %v1342
        %v1357 = vadd.f32 %v1321, %v1342
        %v1358 = vadd.f32 %v1322, %v1342
        %v1359 = vadd.f32 %v1323, %v1342
        %v1360 = vadd.f32 %v1324, %v1342
        %v1361 = vadd.f32 %v1325, %v1342
        %v1362 = vadd.f32 %v1326, %v1342
        %v1363 = vadd.f32 %v1327, %v1342
        %v1364 = vadd.f32 %v1328, %v1342
        %v1365 = vadd.f32 %v1329, %v1342
        %v1366 = vadd.f32 %v1330, %v1342
        %v1367 = vadd.f32 %v1331, %v1342
        %v1368 = vadd.f32 %v1332, %v1342
        %v1369 = vadd.f32 %v1333, %v1342
        %v1370 = vadd.f32 %v1334, %v1342
        %v1371 = vadd.f32 %v1335, %v1342
        %v1372 = vadd.f32 %v1336, %v1342
        %v1373 = vadd.f32 %v1337, %v1342
        %v1374 = vadd.f32 %v1338, %v1342
        %v1375 = vadd.f32 %v1339, %v1342
        %v1376 = vsel %vm718, %v1344, 0.0
        %v1377 = vsel %vm718, %v1345, 0.0
        %v1378 = vadd.f32 %v1376, %v1377
        %v1379 = vsel %vm718, %v1346, 0.0
        %v1380 = vadd.f32 %v1378, %v1379
        %v1381 = vsel %vm718, %v1347, 0.0
        %v1382 = vadd.f32 %v1380, %v1381
        %v1383 = vsel %vm718, %v1348, 0.0
        %v1384 = vadd.f32 %v1382, %v1383
        %v1385 = vsel %vm718, %v1349, 0.0
        %v1386 = vadd.f32 %v1384, %v1385
        %v1387 = vsel %vm718, %v1350, 0.0
        %v1388 = vadd.f32 %v1386, %v1387
        %v1389 = vsel %vm718, %v1351, 0.0
        %v1390 = vadd.f32 %v1388, %v1389
        %v1391 = vsel %vm718, %v1352, 0.0
        %v1392 = vadd.f32 %v1390, %v1391
        %v1393 = vsel %vm718, %v1353, 0.0
        %v1394 = vadd.f32 %v1392, %v1393
        %v1395 = vsel %vm718, %v1354, 0.0
        %v1396 = vadd.f32 %v1394, %v1395
        %v1397 = vsel %vm718, %v1355, 0.0
        %v1398 = vadd.f32 %v1396, %v1397
        %v1399 = vsel %vm718, %v1356, 0.0
        %v1400 = vadd.f32 %v1398, %v1399
        %v1401 = vsel %vm718, %v1357, 0.0
        %v1402 = vadd.f32 %v1400, %v1401
        %v1403 = vsel %vm718, %v1358, 0.0
        %v1404 = vadd.f32 %v1402, %v1403
        %v1405 = vsel %vm718, %v1359, 0.0
        %v1406 = vadd.f32 %v1404, %v1405
        %v1407 = vsel %vm718, %v1360, 0.0
        %v1408 = vadd.f32 %v1406, %v1407
        %v1409 = vsel %vm718, %v1361, 0.0
        %v1410 = vadd.f32 %v1408, %v1409
        %v1411 = vsel %vm718, %v1362, 0.0
        %v1412 = vadd.f32 %v1410, %v1411
        %v1413 = vsel %vm718, %v1363, 0.0
        %v1414 = vadd.f32 %v1412, %v1413
        %v1415 = vsel %vm718, %v1364, 0.0
        %v1416 = vadd.f32 %v1414, %v1415
        %v1417 = vsel %vm718, %v1365, 0.0
        %v1418 = vadd.f32 %v1416, %v1417
        %v1419 = vsel %vm718, %v1366, 0.0
        %v1420 = vadd.f32 %v1418, %v1419
        %v1421 = vsel %vm718, %v1367, 0.0
        %v1422 = vadd.f32 %v1420, %v1421
        %v1423 = vsel %vm718, %v1368, 0.0
        %v1424 = vadd.f32 %v1422, %v1423
        %v1425 = vsel %vm718, %v1369, 0.0
        %v1426 = vadd.f32 %v1424, %v1425
        %v1427 = vsel %vm718, %v1370, 0.0
        %v1428 = vadd.f32 %v1426, %v1427
        %v1429 = vsel %vm718, %v1371, 0.0
        %v1430 = vadd.f32 %v1428, %v1429
        %v1431 = vsel %vm718, %v1372, 0.0
        %v1432 = vadd.f32 %v1430, %v1431
        %v1433 = vsel %vm718, %v1373, 0.0
        %v1434 = vadd.f32 %v1432, %v1433
        %v1435 = vsel %vm718, %v1374, 0.0
        %v1436 = vadd.f32 %v1434, %v1435
        %v1437 = vsel %vm718, %v1375, 0.0
        %v1438 = vadd.f32 %v1436, %v1437
        %v1439 = vrot.slane %v1438, 4
        %v1440 = vadd.f32 %v1438, %v1439
        %v1441 = vrot.slane %v1440, 2
        %v1442 = vadd.f32 %v1440, %v1441
        %v1443 = vrot.slane %v1442, 1
        %v1444 = vadd.f32 %v1442, %v1443
        %v1445 = vrcp.pop 256.0
        %v1446 = vmul.f32 256.0, %v1445
        %v1447 = vsub.f32 1.0, %v1446
        %v1448 = vmul.f32 %v1445, %v1447
        %v1449 = vadd.f32 %v1445, %v1448
        %vm1450 = vweird.f32 %v1445
        %v1451 = vsel %vm1450, %v1445, %v1449
        %v1452 = vmul.f32 %v1444, %v1451
        %v1453 = vsel %vm718, %v1344, -inf
        %v1454 = vsel %vm718, %v1345, -inf
        %v1455 = vsel %vm718, %v1346, -inf
        %v1456 = vsel %vm718, %v1347, -inf
        %v1457 = vsel %vm718, %v1348, -inf
        %v1458 = vmax.f32 %v1453, %v1457
        %v1459 = vsel %vm718, %v1349, -inf
        %v1460 = vmax.f32 %v1454, %v1459
        %v1461 = vsel %vm718, %v1350, -inf
        %v1462 = vmax.f32 %v1455, %v1461
        %v1463 = vsel %vm718, %v1351, -inf
        %v1464 = vmax.f32 %v1456, %v1463
        %v1465 = vsel %vm718, %v1352, -inf
        %v1466 = vmax.f32 %v1458, %v1465
        %v1467 = vsel %vm718, %v1353, -inf
        %v1468 = vmax.f32 %v1460, %v1467
        %v1469 = vsel %vm718, %v1354, -inf
        %v1470 = vmax.f32 %v1462, %v1469
        %v1471 = vsel %vm718, %v1355, -inf
        %v1472 = vmax.f32 %v1464, %v1471
        %v1473 = vsel %vm718, %v1356, -inf
        %v1474 = vmax.f32 %v1466, %v1473
        %v1475 = vsel %vm718, %v1357, -inf
        %v1476 = vmax.f32 %v1468, %v1475
        %v1477 = vsel %vm718, %v1358, -inf
        %v1478 = vmax.f32 %v1470, %v1477
        %v1479 = vsel %vm718, %v1359, -inf
        %v1480 = vmax.f32 %v1472, %v1479
        %v1481 = vsel %vm718, %v1360, -inf
        %v1482 = vmax.f32 %v1474, %v1481
        %v1483 = vsel %vm718, %v1361, -inf
        %v1484 = vmax.f32 %v1476, %v1483
        %v1485 = vsel %vm718, %v1362, -inf
        %v1486 = vmax.f32 %v1478, %v1485
        %v1487 = vsel %vm718, %v1363, -inf
        %v1488 = vmax.f32 %v1480, %v1487
        %v1489 = vsel %vm718, %v1364, -inf
        %v1490 = vmax.f32 %v1482, %v1489
        %v1491 = vsel %vm718, %v1365, -inf
        %v1492 = vmax.f32 %v1484, %v1491
        %v1493 = vsel %vm718, %v1366, -inf
        %v1494 = vmax.f32 %v1486, %v1493
        %v1495 = vsel %vm718, %v1367, -inf
        %v1496 = vmax.f32 %v1488, %v1495
        %v1497 = vsel %vm718, %v1368, -inf
        %v1498 = vmax.f32 %v1490, %v1497
        %v1499 = vsel %vm718, %v1369, -inf
        %v1500 = vmax.f32 %v1492, %v1499
        %v1501 = vsel %vm718, %v1370, -inf
        %v1502 = vmax.f32 %v1494, %v1501
        %v1503 = vsel %vm718, %v1371, -inf
        %v1504 = vmax.f32 %v1496, %v1503
        %v1505 = vsel %vm718, %v1372, -inf
        %v1506 = vmax.f32 %v1498, %v1505
        %v1507 = vsel %vm718, %v1373, -inf
        %v1508 = vmax.f32 %v1500, %v1507
        %v1509 = vsel %vm718, %v1374, -inf
        %v1510 = vmax.f32 %v1502, %v1509
        %v1511 = vsel %vm718, %v1375, -inf
        %v1512 = vmax.f32 %v1504, %v1511
        %v1513 = vmax.f32 %v1506, %v1508
        %v1514 = vmax.f32 %v1510, %v1512
        %v1515 = vmax.f32 %v1513, %v1514
        %v1516 = vrot.slane %v1515, 4
        %v1517 = vmax.f32 %v1515, %v1516
        %v1518 = vrot.slane %v1517, 2
        %v1519 = vmax.f32 %v1517, %v1518
        %v1520 = vrot.slane %v1519, 1
        %v1521 = vmax.f32 %v1519, %v1520
        %v1522 = vld [vmem:[%s5] sm:$0xff]
        %v1523 = vld [vmem:[%s5 + $0x8] sm:$0xff]
        %v1524 = vld [vmem:[%s6] sm:$0x1]
        %v1526 = vsel %vm718, %v1452, 0
        %1528 = vmatpush.msra.mxu0 0.0
        %1529 = vmatpush.msra.mxu0 0.0
        %1530 = vmatpush.msra.mxu0 0.0
        %1531 = vmatpush.msra.mxu0 0.0
        %1532 = vmatpush.msra.mxu0 0.0
        %1533 = vmatpush.msra.mxu0 0.0
        %1534 = vmatpush.msra.mxu0 0.0
        %1535 = vmatpush.msra.mxu0 0.0
        %1536 = vmatpush.msra.mxu0 0.0
        %1537 = vmatpush.msra.mxu0 0.0
        %1538 = vmatpush.msra.mxu0 0.0
        %1539 = vmatpush.msra.mxu0 0.0
        %1540 = vmatpush.msra.mxu0 0.0
        %1541 = vmatpush.msra.mxu0 0.0
        %1542 = vmatpush.msra.mxu0 %v1523
        %1543 = vmatpush.msra.mxu0 %v1522
        %1544 = vmatmul.f32.gmra.mxu0 %v1526
        %v1545 = vpop.f32.mrf.mxu0
        %v1546 = vadd.f32 %v1524, %v1545
        %1547 = vdwg.mxu0
        %vm1548 = vcmp.ge.f32.partialorder %v1546, 0.0
        %v1549 = vmul.f32 %v1546, 0.01
        %v1550 = vsel %vm1548, %v1546, %v1549
        %v1551 = vld [vmem:[%s7] sm:$0xff]
        %v1552 = vld [vmem:[%s7 + $0x8] sm:$0xff]
        %v1553 = vld [vmem:[%s7 + $0x10] sm:$0xff]
        %v1554 = vld [vmem:[%s7 + $0x18] sm:$0xff]
        %v1555 = vld [vmem:[%s7 + $0x20] sm:$0xff]
        %v1556 = vld [vmem:[%s7 + $0x28] sm:$0xff]
        %v1557 = vld [vmem:[%s7 + $0x30] sm:$0xff]
        %v1558 = vld [vmem:[%s7 + $0x38] sm:$0xff]
        %v1559 = vld [vmem:[%s8] sm:$0x1]
        %vm1560 = vcmask 523264
        %v1562 = vsel %vm1560, %v1550, 0
        %1564 = vmatpush.msra.mxu0 0.0
        %1565 = vmatpush.msra.mxu0 0.0
        %1566 = vmatpush.msra.mxu0 0.0
        %1567 = vmatpush.msra.mxu0 0.0
        %1568 = vmatpush.msra.mxu0 0.0
        %1569 = vmatpush.msra.mxu0 0.0
        %1570 = vmatpush.msra.mxu0 0.0
        %1571 = vmatpush.msra.mxu0 0.0
        %1572 = vmatpush.msra.mxu0 %v1558
        %1573 = vmatpush.msra.mxu0 %v1557
        %1574 = vmatpush.msra.mxu0 %v1556
        %1575 = vmatpush.msra.mxu0 %v1555
        %1576 = vmatpush.msra.mxu0 %v1554
        %1577 = vmatpush.msra.mxu0 %v1553
        %1578 = vmatpush.msra.mxu0 %v1552
        %1579 = vmatpush.msra.mxu0 %v1551
        %1580 = vmatmul.f32.gmra.mxu0 %v1562
        %v1581 = vpop.f32.mrf.mxu0
        %v1582 = vadd.f32 %v1559, %v1581
        %1583 = vdwg.mxu0
        %v1585 = vsel %vm718, %v1521, 0
        %1587 = vmatpush.msra.mxu0 0.0
        %1588 = vmatpush.msra.mxu0 0.0
        %1589 = vmatpush.msra.mxu0 0.0
        %1590 = vmatpush.msra.mxu0 0.0
        %1591 = vmatpush.msra.mxu0 0.0
        %1592 = vmatpush.msra.mxu0 0.0
        %1593 = vmatpush.msra.mxu0 0.0
        %1594 = vmatpush.msra.mxu0 0.0
        %1595 = vmatpush.msra.mxu0 0.0
        %1596 = vmatpush.msra.mxu0 0.0
        %1597 = vmatpush.msra.mxu0 0.0
        %1598 = vmatpush.msra.mxu0 0.0
        %1599 = vmatpush.msra.mxu0 0.0
        %1600 = vmatpush.msra.mxu0 0.0
        %1601 = vmatpush.msra.mxu0 %v1523
        %1602 = vmatpush.msra.mxu0 %v1522
        %1603 = vmatmul.f32.gmra.mxu0 %v1585
        %v1604 = vpop.f32.mrf.mxu0
        %v1605 = vadd.f32 %v1524, %v1604
        %1606 = vdwg.mxu0
        %vm1607 = vcmp.ge.f32.partialorder %v1605, 0.0
        %v1608 = vmul.f32 %v1605, 0.01
        %v1609 = vsel %vm1607, %v1605, %v1608
        %v1611 = vsel %vm1560, %v1609, 0
        %1613 = vmatpush.msra.mxu0 0.0
        %1614 = vmatpush.msra.mxu0 0.0
        %1615 = vmatpush.msra.mxu0 0.0
        %1616 = vmatpush.msra.mxu0 0.0
        %1617 = vmatpush.msra.mxu0 0.0
        %1618 = vmatpush.msra.mxu0 0.0
        %1619 = vmatpush.msra.mxu0 0.0
        %1620 = vmatpush.msra.mxu0 0.0
        %1621 = vmatpush.msra.mxu0 %v1558
        %1622 = vmatpush.msra.mxu0 %v1557
        %1623 = vmatpush.msra.mxu0 %v1556
        %1624 = vmatpush.msra.mxu0 %v1555
        %1625 = vmatpush.msra.mxu0 %v1554
        %1626 = vmatpush.msra.mxu0 %v1553
        %1627 = vmatpush.msra.mxu0 %v1552
        %1628 = vmatpush.msra.mxu0 %v1551
        %1629 = vmatmul.f32.gmra.mxu0 %v1611
        %v1630 = vpop.f32.mrf.mxu0
        %v1631 = vadd.f32 %v1559, %v1630
        %1632 = vdwg.mxu0
        %v1633 = vadd.f32 %v1582, %v1631
        %v1634 = vxor.u32 %v1633, 2147483648
        %v1635 = vmul.f32 %v1634, 1.442695
        %v1636 = vpow.pop %v1635
        %v1637 = vadd.f32 %v1636, 1.0
        %v1638 = vrcp.pop %v1637
        %v1639 = vmul.f32 %v1637, %v1638
        %v1640 = vsub.f32 1.0, %v1639
        %v1641 = vmul.f32 %v1638, %v1640
        %v1642 = vadd.f32 %v1638, %v1641
        %vm1643 = vweird.f32 %v1637
        %vm1644 = vweird.f32 %v1638
        %vm1645 = vmor %vm1643, %vm1644
        %v1646 = vsel %vm1645, %v1638, %v1642
        %v1647 = vand.u32 2147483647, %v1637
        %vm1648 = vcmp.eq.f32.partialorder %v1647, 8.507059e+37
        %v1649 = vand.u32 %v1637, 2147483648
        %v1650 = vor.u32 1.1754944e-38, %v1649
        %v1651 = vsel %vm1648, %v1650, %v1646
        %v1652 = vmul.f32 1.0, %v1651
        %v1653 = vadd.f32 %v1652, 1.0
        %v1654 = vperm.slane %v1653, 0
        %v1655 = vmul.f32 %v1272, %v1654
        %v1656 = vmul.f32 %v1273, %v1654
        %v1657 = vmul.f32 %v1274, %v1654
        %v1658 = vmul.f32 %v1275, %v1654
        %v1659 = vmul.f32 %v1276, %v1654
        %v1660 = vmul.f32 %v1277, %v1654
        %v1661 = vmul.f32 %v1278, %v1654
        %v1662 = vmul.f32 %v1279, %v1654
        %v1663 = vmul.f32 %v1280, %v1654
        %v1664 = vmul.f32 %v1281, %v1654
        %v1665 = vmul.f32 %v1282, %v1654
        %v1666 = vmul.f32 %v1283, %v1654
        %v1667 = vmul.f32 %v1284, %v1654
        %v1668 = vmul.f32 %v1285, %v1654
        %v1669 = vmul.f32 %v1286, %v1654
        %v1670 = vmul.f32 %v1287, %v1654
        %v1671 = vmul.f32 %v1288, %v1654
        %v1672 = vmul.f32 %v1289, %v1654
        %v1673 = vmul.f32 %v1290, %v1654
        %v1674 = vmul.f32 %v1291, %v1654
        %v1675 = vmul.f32 %v1292, %v1654
        %v1676 = vmul.f32 %v1293, %v1654
        %v1677 = vmul.f32 %v1294, %v1654
        %v1678 = vmul.f32 %v1295, %v1654
        %v1679 = vmul.f32 %v1296, %v1654
        %v1680 = vmul.f32 %v1297, %v1654
        %v1681 = vmul.f32 %v1298, %v1654
        %v1682 = vmul.f32 %v1299, %v1654
        %v1683 = vmul.f32 %v1300, %v1654
        %v1684 = vmul.f32 %v1301, %v1654
        %v1685 = vmul.f32 %v1302, %v1654
        %v1686 = vmul.f32 %v1303, %v1654
        %v1687 = vadd.f32 %v1655, %v614
        %v1688 = vadd.f32 %v1656, %v615
        %v1689 = vadd.f32 %v1657, %v616
        %v1690 = vadd.f32 %v1658, %v617
        %v1691 = vadd.f32 %v1659, %v618
        %v1692 = vadd.f32 %v1660, %v619
        %v1693 = vadd.f32 %v1661, %v620
        %v1694 = vadd.f32 %v1662, %v621
        %v1695 = vadd.f32 %v1663, %v622
        %v1696 = vadd.f32 %v1664, %v623
        %v1697 = vadd.f32 %v1665, %v624
        %v1698 = vadd.f32 %v1666, %v625
        %v1699 = vadd.f32 %v1667, %v626
        %v1700 = vadd.f32 %v1668, %v627
        %v1701 = vadd.f32 %v1669, %v628
        %v1702 = vadd.f32 %v1670, %v629
        %v1703 = vadd.f32 %v1671, %v630
        %v1704 = vadd.f32 %v1672, %v631
        %v1705 = vadd.f32 %v1673, %v632
        %v1706 = vadd.f32 %v1674, %v633
        %v1707 = vadd.f32 %v1675, %v634
        %v1708 = vadd.f32 %v1676, %v635
        %v1709 = vadd.f32 %v1677, %v636
        %v1710 = vadd.f32 %v1678, %v637
        %v1711 = vadd.f32 %v1679, %v638
        %v1712 = vadd.f32 %v1680, %v639
        %v1713 = vadd.f32 %v1681, %v640
        %v1714 = vadd.f32 %v1682, %v641
        %v1715 = vadd.f32 %v1683, %v642
        %v1716 = vadd.f32 %v1684, %v643
        %v1717 = vadd.f32 %v1685, %v644
        %v1718 = vadd.f32 %v1686, %v645
        %1719 = vst.msk [vmem:[%s599] sm:$0xff] %vm718, %v1687
        %1720 = vst.msk [vmem:[%s599 + $0x8] sm:$0xff] %vm718, %v1688
        %1721 = vst.msk [vmem:[%s599 + $0x10] sm:$0xff] %vm718, %v1689
        %1722 = vst.msk [vmem:[%s599 + $0x18] sm:$0xff] %vm718, %v1690
        %1723 = vst.msk [vmem:[%s599 + $0x20] sm:$0xff] %vm718, %v1691
        %1724 = vst.msk [vmem:[%s599 + $0x28] sm:$0xff] %vm718, %v1692
        %1725 = vst.msk [vmem:[%s599 + $0x30] sm:$0xff] %vm718, %v1693
        %1726 = vst.msk [vmem:[%s599 + $0x38] sm:$0xff] %vm718, %v1694
        %1727 = vst.msk [vmem:[%s599 + $0x40] sm:$0xff] %vm718, %v1695
        %1728 = vst.msk [vmem:[%s599 + $0x48] sm:$0xff] %vm718, %v1696
        %1729 = vst.msk [vmem:[%s599 + $0x50] sm:$0xff] %vm718, %v1697
        %1730 = vst.msk [vmem:[%s599 + $0x58] sm:$0xff] %vm718, %v1698
        %1731 = vst.msk [vmem:[%s599 + $0x60] sm:$0xff] %vm718, %v1699
        %1732 = vst.msk [vmem:[%s599 + $0x68] sm:$0xff] %vm718, %v1700
        %1733 = vst.msk [vmem:[%s599 + $0x70] sm:$0xff] %vm718, %v1701
        %1734 = vst.msk [vmem:[%s599 + $0x78] sm:$0xff] %vm718, %v1702
        %1735 = vst.msk [vmem:[%s599 + $0x80] sm:$0xff] %vm718, %v1703
        %1736 = vst.msk [vmem:[%s599 + $0x88] sm:$0xff] %vm718, %v1704
        %1737 = vst.msk [vmem:[%s599 + $0x90] sm:$0xff] %vm718, %v1705
        %1738 = vst.msk [vmem:[%s599 + $0x98] sm:$0xff] %vm718, %v1706
        %1739 = vst.msk [vmem:[%s599 + $0xa0] sm:$0xff] %vm718, %v1707
        %1740 = vst.msk [vmem:[%s599 + $0xa8] sm:$0xff] %vm718, %v1708
        %1741 = vst.msk [vmem:[%s599 + $0xb0] sm:$0xff] %vm718, %v1709
        %1742 = vst.msk [vmem:[%s599 + $0xb8] sm:$0xff] %vm718, %v1710
        %1743 = vst.msk [vmem:[%s599 + $0xc0] sm:$0xff] %vm718, %v1711
        %1744 = vst.msk [vmem:[%s599 + $0xc8] sm:$0xff] %vm718, %v1712
        %1745 = vst.msk [vmem:[%s599 + $0xd0] sm:$0xff] %vm718, %v1713
        %1746 = vst.msk [vmem:[%s599 + $0xd8] sm:$0xff] %vm718, %v1714
        %1747 = vst.msk [vmem:[%s599 + $0xe0] sm:$0xff] %vm718, %v1715
        %1748 = vst.msk [vmem:[%s599 + $0xe8] sm:$0xff] %vm718, %v1716
        %1749 = vst.msk [vmem:[%s599 + $0xf0] sm:$0xff] %vm718, %v1717
        %1750 = vst.msk [vmem:[%s599 + $0xf8] sm:$0xff] %vm718, %v1718
        %v1751 = vsel %vm718, %v1687, 0.0
        %v1752 = vsel %vm718, %v1688, 0.0
        %v1753 = vadd.f32 %v1751, %v1752
        %v1754 = vrot.slane %v1753, 4
        %v1755 = vadd.f32 %v1753, %v1754
        %v1756 = vrot.slane %v1755, 2
        %v1757 = vadd.f32 %v1755, %v1756
        %v1758 = vrot.slane %v1757, 1
        %v1759 = vadd.f32 %v1757, %v1758
        %v1760 = vsel %vm718, %v1689, 0.0
        %v1761 = vsel %vm718, %v1690, 0.0
        %v1762 = vadd.f32 %v1760, %v1761
        %v1763 = vrot.slane %v1762, 4
        %v1764 = vadd.f32 %v1762, %v1763
        %v1765 = vrot.slane %v1764, 2
        %v1766 = vadd.f32 %v1764, %v1765
        %v1767 = vrot.slane %v1766, 1
        %v1768 = vadd.f32 %v1766, %v1767
        %v1769 = vsel %vm718, %v1691, 0.0
        %v1770 = vsel %vm718, %v1692, 0.0
        %v1771 = vadd.f32 %v1769, %v1770
        %v1772 = vrot.slane %v1771, 4
        %v1773 = vadd.f32 %v1771, %v1772
        %v1774 = vrot.slane %v1773, 2
        %v1775 = vadd.f32 %v1773, %v1774
        %v1776 = vrot.slane %v1775, 1
        %v1777 = vadd.f32 %v1775, %v1776
        %v1778 = vsel %vm718, %v1693, 0.0
        %v1779 = vsel %vm718, %v1694, 0.0
        %v1780 = vadd.f32 %v1778, %v1779
        %v1781 = vrot.slane %v1780, 4
        %v1782 = vadd.f32 %v1780, %v1781
        %v1783 = vrot.slane %v1782, 2
        %v1784 = vadd.f32 %v1782, %v1783
        %v1785 = vrot.slane %v1784, 1
        %v1786 = vadd.f32 %v1784, %v1785
        %v1787 = vsel %vm718, %v1695, 0.0
        %v1788 = vsel %vm718, %v1696, 0.0
        %v1789 = vadd.f32 %v1787, %v1788
        %v1790 = vrot.slane %v1789, 4
        %v1791 = vadd.f32 %v1789, %v1790
        %v1792 = vrot.slane %v1791, 2
        %v1793 = vadd.f32 %v1791, %v1792
        %v1794 = vrot.slane %v1793, 1
        %v1795 = vadd.f32 %v1793, %v1794
        %v1796 = vsel %vm718, %v1697, 0.0
        %v1797 = vsel %vm718, %v1698, 0.0
        %v1798 = vadd.f32 %v1796, %v1797
        %v1799 = vrot.slane %v1798, 4
        %v1800 = vadd.f32 %v1798, %v1799
        %v1801 = vrot.slane %v1800, 2
        %v1802 = vadd.f32 %v1800, %v1801
        %v1803 = vrot.slane %v1802, 1
        %v1804 = vadd.f32 %v1802, %v1803
        %v1805 = vsel %vm718, %v1699, 0.0
        %v1806 = vsel %vm718, %v1700, 0.0
        %v1807 = vadd.f32 %v1805, %v1806
        %v1808 = vrot.slane %v1807, 4
        %v1809 = vadd.f32 %v1807, %v1808
        %v1810 = vrot.slane %v1809, 2
        %v1811 = vadd.f32 %v1809, %v1810
        %v1812 = vrot.slane %v1811, 1
        %v1813 = vadd.f32 %v1811, %v1812
        %v1814 = vsel %vm718, %v1701, 0.0
        %v1815 = vsel %vm718, %v1702, 0.0
        %v1816 = vadd.f32 %v1814, %v1815
        %v1817 = vrot.slane %v1816, 4
        %v1818 = vadd.f32 %v1816, %v1817
        %v1819 = vrot.slane %v1818, 2
        %v1820 = vadd.f32 %v1818, %v1819
        %v1821 = vrot.slane %v1820, 1
        %v1822 = vadd.f32 %v1820, %v1821
        %v1823 = vsel %vm718, %v1703, 0.0
        %v1824 = vsel %vm718, %v1704, 0.0
        %v1825 = vadd.f32 %v1823, %v1824
        %v1826 = vrot.slane %v1825, 4
        %v1827 = vadd.f32 %v1825, %v1826
        %v1828 = vrot.slane %v1827, 2
        %v1829 = vadd.f32 %v1827, %v1828
        %v1830 = vrot.slane %v1829, 1
        %v1831 = vadd.f32 %v1829, %v1830
        %v1832 = vsel %vm718, %v1705, 0.0
        %v1833 = vsel %vm718, %v1706, 0.0
        %v1834 = vadd.f32 %v1832, %v1833
        %v1835 = vrot.slane %v1834, 4
        %v1836 = vadd.f32 %v1834, %v1835
        %v1837 = vrot.slane %v1836, 2
        %v1838 = vadd.f32 %v1836, %v1837
        %v1839 = vrot.slane %v1838, 1
        %v1840 = vadd.f32 %v1838, %v1839
        %v1841 = vsel %vm718, %v1707, 0.0
        %v1842 = vsel %vm718, %v1708, 0.0
        %v1843 = vadd.f32 %v1841, %v1842
        %v1844 = vrot.slane %v1843, 4
        %v1845 = vadd.f32 %v1843, %v1844
        %v1846 = vrot.slane %v1845, 2
        %v1847 = vadd.f32 %v1845, %v1846
        %v1848 = vrot.slane %v1847, 1
        %v1849 = vadd.f32 %v1847, %v1848
        %v1850 = vsel %vm718, %v1709, 0.0
        %v1851 = vsel %vm718, %v1710, 0.0
        %v1852 = vadd.f32 %v1850, %v1851
        %v1853 = vrot.slane %v1852, 4
        %v1854 = vadd.f32 %v1852, %v1853
        %v1855 = vrot.slane %v1854, 2
        %v1856 = vadd.f32 %v1854, %v1855
        %v1857 = vrot.slane %v1856, 1
        %v1858 = vadd.f32 %v1856, %v1857
        %v1859 = vsel %vm718, %v1711, 0.0
        %v1860 = vsel %vm718, %v1712, 0.0
        %v1861 = vadd.f32 %v1859, %v1860
        %v1862 = vrot.slane %v1861, 4
        %v1863 = vadd.f32 %v1861, %v1862
        %v1864 = vrot.slane %v1863, 2
        %v1865 = vadd.f32 %v1863, %v1864
        %v1866 = vrot.slane %v1865, 1
        %v1867 = vadd.f32 %v1865, %v1866
        %v1868 = vsel %vm718, %v1713, 0.0
        %v1869 = vsel %vm718, %v1714, 0.0
        %v1870 = vadd.f32 %v1868, %v1869
        %v1871 = vrot.slane %v1870, 4
        %v1872 = vadd.f32 %v1870, %v1871
        %v1873 = vrot.slane %v1872, 2
        %v1874 = vadd.f32 %v1872, %v1873
        %v1875 = vrot.slane %v1874, 1
        %v1876 = vadd.f32 %v1874, %v1875
        %v1877 = vsel %vm718, %v1715, 0.0
        %v1878 = vsel %vm718, %v1716, 0.0
        %v1879 = vadd.f32 %v1877, %v1878
        %v1880 = vrot.slane %v1879, 4
        %v1881 = vadd.f32 %v1879, %v1880
        %v1882 = vrot.slane %v1881, 2
        %v1883 = vadd.f32 %v1881, %v1882
        %v1884 = vrot.slane %v1883, 1
        %v1885 = vadd.f32 %v1883, %v1884
        %v1886 = vsel %vm718, %v1717, 0.0
        %v1887 = vsel %vm718, %v1718, 0.0
        %v1888 = vadd.f32 %v1886, %v1887
        %v1889 = vrot.slane %v1888, 4
        %v1890 = vadd.f32 %v1888, %v1889
        %v1891 = vrot.slane %v1890, 2
        %v1892 = vadd.f32 %v1890, %v1891
        %v1893 = vrot.slane %v1892, 1
        %v1894 = vadd.f32 %v1892, %v1893
        %v1895 = vrcp.pop 16.0
        %v1896 = vmul.f32 16.0, %v1895
        %v1897 = vsub.f32 1.0, %v1896
        %v1898 = vmul.f32 %v1895, %v1897
        %v1899 = vadd.f32 %v1895, %v1898
        %vm1900 = vweird.f32 %v1895
        %v1901 = vsel %vm1900, %v1895, %v1899
        %v1902 = vmul.f32 %v1759, %v1901
        %v1903 = vmul.f32 %v1768, %v1901
        %v1904 = vmul.f32 %v1777, %v1901
        %v1905 = vmul.f32 %v1786, %v1901
        %v1906 = vmul.f32 %v1795, %v1901
        %v1907 = vmul.f32 %v1804, %v1901
        %v1908 = vmul.f32 %v1813, %v1901
        %v1909 = vmul.f32 %v1822, %v1901
        %v1910 = vmul.f32 %v1831, %v1901
        %v1911 = vmul.f32 %v1840, %v1901
        %v1912 = vmul.f32 %v1849, %v1901
        %v1913 = vmul.f32 %v1858, %v1901
        %v1914 = vmul.f32 %v1867, %v1901
        %v1915 = vmul.f32 %v1876, %v1901
        %v1916 = vmul.f32 %v1885, %v1901
        %v1917 = vmul.f32 %v1894, %v1901
        %v1918 = vadd.f32 %v1751, %v1760
        %v1919 = vadd.f32 %v1918, %v1769
        %v1920 = vadd.f32 %v1919, %v1778
        %v1921 = vadd.f32 %v1920, %v1787
        %v1922 = vadd.f32 %v1921, %v1796
        %v1923 = vadd.f32 %v1922, %v1805
        %v1924 = vadd.f32 %v1923, %v1814
        %v1925 = vadd.f32 %v1924, %v1823
        %v1926 = vadd.f32 %v1925, %v1832
        %v1927 = vadd.f32 %v1926, %v1841
        %v1928 = vadd.f32 %v1927, %v1850
        %v1929 = vadd.f32 %v1928, %v1859
        %v1930 = vadd.f32 %v1929, %v1868
        %v1931 = vadd.f32 %v1930, %v1877
        %v1932 = vadd.f32 %v1931, %v1886
        %v1933 = vadd.f32 %v1752, %v1761
        %v1934 = vadd.f32 %v1933, %v1770
        %v1935 = vadd.f32 %v1934, %v1779
        %v1936 = vadd.f32 %v1935, %v1788
        %v1937 = vadd.f32 %v1936, %v1797
        %v1938 = vadd.f32 %v1937, %v1806
        %v1939 = vadd.f32 %v1938, %v1815
        %v1940 = vadd.f32 %v1939, %v1824
        %v1941 = vadd.f32 %v1940, %v1833
        %v1942 = vadd.f32 %v1941, %v1842
        %v1943 = vadd.f32 %v1942, %v1851
        %v1944 = vadd.f32 %v1943, %v1860
        %v1945 = vadd.f32 %v1944, %v1869
        %v1946 = vadd.f32 %v1945, %v1878
        %v1947 = vadd.f32 %v1946, %v1887
        %v1948 = vmul.f32 %v1932, %v1901
        %v1949 = vmul.f32 %v1947, %v1901
        %v1950 = vld [vmem:[%s9] sm:$0xff]
        %v1951 = vld [vmem:[%s9 + $0x8] sm:$0xff]
        %vm1968 = vcmask 1041409
        %v1969 = vsel %vm1968, %v1903, %v1902
        %vm1970 = vcmask 1042434
        %v1971 = vsel %vm1970, %v1904, %v1969
        %vm1972 = vcmask 1043459
        %v1973 = vsel %vm1972, %v1905, %v1971
        %vm1974 = vcmask 1044484
        %v1975 = vsel %vm1974, %v1906, %v1973
        %vm1976 = vcmask 1045509
        %v1977 = vsel %vm1976, %v1907, %v1975
        %vm1978 = vcmask 1046534
        %v1979 = vsel %vm1978, %v1908, %v1977
        %vm1980 = vcmask 1047559
        %v1981 = vsel %vm1980, %v1909, %v1979
        %v1982 = vsel %vm1968, %v1911, %v1910
        %v1983 = vsel %vm1970, %v1912, %v1982
        %v1984 = vsel %vm1972, %v1913, %v1983
        %v1985 = vsel %vm1974, %v1914, %v1984
        %v1986 = vsel %vm1976, %v1915, %v1985
        %v1987 = vsel %vm1978, %v1916, %v1986
        %v1988 = vsel %vm1980, %v1917, %v1987
        %v1989 = vsel %vm718, %v1981, 0
        %v1991 = vsel %vm718, %v1988, 0
        %1993 = vmatpush.msra.mxu0 0.0
        %1994 = vmatpush.msra.mxu0 0.0
        %1995 = vmatpush.msra.mxu0 0.0
        %1996 = vmatpush.msra.mxu0 0.0
        %1997 = vmatpush.msra.mxu0 0.0
        %1998 = vmatpush.msra.mxu0 0.0
        %1999 = vmatpush.msra.mxu0 0.0
        %2000 = vmatpush.msra.mxu0 0.0
        %2001 = vmatpush.msra.mxu0 0.0
        %2002 = vmatpush.msra.mxu0 0.0
        %2003 = vmatpush.msra.mxu0 0.0
        %2004 = vmatpush.msra.mxu0 0.0
        %2005 = vmatpush.msra.mxu0 0.0
        %2006 = vmatpush.msra.mxu0 0.0
        %2007 = vmatpush.msra.mxu0 %v1951
        %2008 = vmatpush.msra.mxu0 %v1950
        %2009 = vmatmul.f32.gmra.mxu0 %v1989
        %v2010 = vpop.f32.mrf.mxu0
        %v2011 = vadd.f32 0.0, %v2010
        %2012 = vmatmul.f32.gmra.mxu0 %v1991
        %v2013 = vpop.f32.mrf.mxu0
        %v2014 = vadd.f32 0.0, %v2013
        %2015 = vdwg.mxu0
        %v2016 = vld [vmem:[%s10] sm:$0x1]
        %v2018 = vperm.slane %v2016, 0
        %v2020 = vmul.f32 %v2011, %v2018
        %v2021 = vmul.f32 %v2014, %v2018
        %v2022 = vld [vmem:[%s11] sm:$0x1]
        %v2024 = vperm.slane %v2022, 0
        %v2026 = vadd.f32 %v2020, %v2024
        %v2027 = vadd.f32 %v2021, %v2024
        %v2028 = vadd.f32 %v2026, 3.0
        %v2029 = vadd.f32 %v2027, 3.0
        %v2030 = vmax.f32 %v2028, 0.0
        %v2031 = vmax.f32 %v2029, 0.0
        %v2032 = vmin.f32 %v2030, 6.0
        %v2033 = vmin.f32 %v2031, 6.0
        %v2034 = vmul.f32 %v2026, %v2032
        %v2035 = vmul.f32 %v2027, %v2033
        %v2036 = vmul.f32 %v2034, 0.16666667
        %v2037 = vmul.f32 %v2035, 0.16666667
        %v2038 = vld [vmem:[%s12] sm:$0xff]
        %v2039 = vld [vmem:[%s13] sm:$0x1]
        %v2041 = vperm.slane %v2039, 0
        %vm2043 = vcmask 64512
        %v2045 = vsel %vm2043, %v2036, 0
        %v2048 = vsel %vm2043, %v2037, 0
        %2050 = vmatpush.msra.mxu0 0.0
        %2051 = vmatpush.msra.mxu0 0.0
        %2052 = vmatpush.msra.mxu0 0.0
        %2053 = vmatpush.msra.mxu0 0.0
        %2054 = vmatpush.msra.mxu0 0.0
        %2055 = vmatpush.msra.mxu0 0.0
        %2056 = vmatpush.msra.mxu0 0.0
        %2057 = vmatpush.msra.mxu0 0.0
        %2058 = vmatpush.msra.mxu0 0.0
        %2059 = vmatpush.msra.mxu0 0.0
        %2060 = vmatpush.msra.mxu0 0.0
        %2061 = vmatpush.msra.mxu0 0.0
        %2062 = vmatpush.msra.mxu0 0.0
        %2063 = vmatpush.msra.mxu0 0.0
        %2064 = vmatpush.msra.mxu0 0.0
        %2065 = vmatpush.msra.mxu0 %v2038
        %2066 = vmatmul.f32.gmra.mxu0 %v2045
        %v2067 = vpop.f32.mrf.mxu0
        %v2068 = vadd.f32 %v2041, %v2067
        %2069 = vmatmul.f32.gmra.mxu0 %v2048
        %v2070 = vpop.f32.mrf.mxu0
        %v2071 = vadd.f32 %v2041, %v2070
        %2072 = vdwg.mxu0
        %v2073 = vxor.u32 %v2068, 2147483648
        %v2074 = vxor.u32 %v2071, 2147483648
        %v2075 = vmul.f32 %v2073, 1.442695
        %v2076 = vpow.pop %v2075
        %v2077 = vmul.f32 %v2074, 1.442695
        %v2078 = vpow.pop %v2077
        %v2079 = vadd.f32 %v2076, 1.0
        %v2080 = vadd.f32 %v2078, 1.0
        %v2081 = vrcp.pop %v2079
        %v2082 = vmul.f32 %v2079, %v2081
        %v2083 = vsub.f32 1.0, %v2082
        %v2084 = vmul.f32 %v2081, %v2083
        %v2085 = vadd.f32 %v2081, %v2084
        %vm2086 = vweird.f32 %v2079
        %vm2087 = vweird.f32 %v2081
        %vm2088 = vmor %vm2086, %vm2087
        %v2089 = vsel %vm2088, %v2081, %v2085
        %v2090 = vand.u32 2147483647, %v2079
        %vm2091 = vcmp.eq.f32.partialorder %v2090, 8.507059e+37
        %v2092 = vand.u32 %v2079, 2147483648
        %v2093 = vor.u32 1.1754944e-38, %v2092
        %v2094 = vsel %vm2091, %v2093, %v2089
        %v2095 = vmul.f32 1.0, %v2094
        %v2096 = vrcp.pop %v2080
        %v2097 = vmul.f32 %v2080, %v2096
        %v2098 = vsub.f32 1.0, %v2097
        %v2099 = vmul.f32 %v2096, %v2098
        %v2100 = vadd.f32 %v2096, %v2099
        %vm2101 = vweird.f32 %v2080
        %vm2102 = vweird.f32 %v2096
        %vm2103 = vmor %vm2101, %vm2102
        %v2104 = vsel %vm2103, %v2096, %v2100
        %v2105 = vand.u32 2147483647, %v2080
        %vm2106 = vcmp.eq.f32.partialorder %v2105, 8.507059e+37
        %v2107 = vand.u32 %v2080, 2147483648
        %v2108 = vor.u32 1.1754944e-38, %v2107
        %v2109 = vsel %vm2106, %v2108, %v2104
        %v2110 = vmul.f32 1.0, %v2109
        %2111 = vst.msk [vmem:[%s606] sm:$0xff] %vm718, %v2095
        %2112 = vst.msk [vmem:[%s606 + $0x8] sm:$0xff] %vm718, %v2110
        %v2113 = vld [vmem:[%s9] sm:$0xff]
        %v2114 = vld [vmem:[%s9 + $0x8] sm:$0xff]
        %v2116 = vsel %vm718, %v1948, 0
        %v2119 = vsel %vm718, %v1949, 0
        %2121 = vmatpush.msra.mxu0 0.0
        %2122 = vmatpush.msra.mxu0 0.0
        %2123 = vmatpush.msra.mxu0 0.0
        %2124 = vmatpush.msra.mxu0 0.0
        %2125 = vmatpush.msra.mxu0 0.0
        %2126 = vmatpush.msra.mxu0 0.0
        %2127 = vmatpush.msra.mxu0 0.0
        %2128 = vmatpush.msra.mxu0 0.0
        %2129 = vmatpush.msra.mxu0 0.0
        %2130 = vmatpush.msra.mxu0 0.0
        %2131 = vmatpush.msra.mxu0 0.0
        %2132 = vmatpush.msra.mxu0 0.0
        %2133 = vmatpush.msra.mxu0 0.0
        %2134 = vmatpush.msra.mxu0 0.0
        %2135 = vmatpush.msra.mxu0 %v2114
        %2136 = vmatpush.msra.mxu0 %v2113
        %2137 = vmatmul.f32.gmra.mxu0 %v2116
        %v2138 = vpop.f32.mrf.mxu0
        %v2139 = vadd.f32 0.0, %v2138
        %2140 = vmatmul.f32.gmra.mxu0 %v2119
        %v2141 = vpop.f32.mrf.mxu0
        %v2142 = vadd.f32 0.0, %v2141
        %2143 = vdwg.mxu0
        %v2144 = vld [vmem:[%s10] sm:$0x1]
        %v2146 = vperm.slane %v2144, 0
        %v2148 = vmul.f32 %v2139, %v2146
        %v2149 = vmul.f32 %v2142, %v2146
        %v2150 = vld [vmem:[%s11] sm:$0x1]
        %v2152 = vperm.slane %v2150, 0
        %v2154 = vadd.f32 %v2148, %v2152
        %v2155 = vadd.f32 %v2149, %v2152
        %v2156 = vadd.f32 %v2154, 3.0
        %v2157 = vadd.f32 %v2155, 3.0
        %v2158 = vmax.f32 %v2156, 0.0
        %v2159 = vmax.f32 %v2157, 0.0
        %v2160 = vmin.f32 %v2158, 6.0
        %v2161 = vmin.f32 %v2159, 6.0
        %v2162 = vmul.f32 %v2154, %v2160
        %v2163 = vmul.f32 %v2155, %v2161
        %v2164 = vmul.f32 %v2162, 0.16666667
        %v2165 = vmul.f32 %v2163, 0.16666667
        %v2166 = vld [vmem:[%s14] sm:$0xff]
        %v2167 = vld [vmem:[%s15] sm:$0x1]
        %v2169 = vperm.slane %v2167, 0
        %v2172 = vsel %vm2043, %v2164, 0
        %v2175 = vsel %vm2043, %v2165, 0
        %2177 = vmatpush.msra.mxu0 0.0
        %2178 = vmatpush.msra.mxu0 0.0
        %2179 = vmatpush.msra.mxu0 0.0
        %2180 = vmatpush.msra.mxu0 0.0
        %2181 = vmatpush.msra.mxu0 0.0
        %2182 = vmatpush.msra.mxu0 0.0
        %2183 = vmatpush.msra.mxu0 0.0
        %2184 = vmatpush.msra.mxu0 0.0
        %2185 = vmatpush.msra.mxu0 0.0
        %2186 = vmatpush.msra.mxu0 0.0
        %2187 = vmatpush.msra.mxu0 0.0
        %2188 = vmatpush.msra.mxu0 0.0
        %2189 = vmatpush.msra.mxu0 0.0
        %2190 = vmatpush.msra.mxu0 0.0
        %2191 = vmatpush.msra.mxu0 0.0
        %2192 = vmatpush.msra.mxu0 %v2166
        %2193 = vmatmul.f32.gmra.mxu0 %v2172
        %v2194 = vpop.f32.mrf.mxu0
        %v2195 = vadd.f32 %v2169, %v2194
        %2196 = vmatmul.f32.gmra.mxu0 %v2175
        %v2197 = vpop.f32.mrf.mxu0
        %v2198 = vadd.f32 %v2169, %v2197
        %2199 = vdwg.mxu0
        %v2200 = vxor.u32 %v2195, 2147483648
        %v2201 = vxor.u32 %v2198, 2147483648
        %v2202 = vmul.f32 %v2200, 1.442695
        %v2203 = vpow.pop %v2202
        %v2204 = vmul.f32 %v2201, 1.442695
        %v2205 = vpow.pop %v2204
        %v2206 = vadd.f32 %v2203, 1.0
        %v2207 = vadd.f32 %v2205, 1.0
        %v2208 = vrcp.pop %v2206
        %v2209 = vmul.f32 %v2206, %v2208
        %v2210 = vsub.f32 1.0, %v2209
        %v2211 = vmul.f32 %v2208, %v2210
        %v2212 = vadd.f32 %v2208, %v2211
        %vm2213 = vweird.f32 %v2206
        %vm2214 = vweird.f32 %v2208
        %vm2215 = vmor %vm2213, %vm2214
        %v2216 = vsel %vm2215, %v2208, %v2212
        %v2217 = vand.u32 2147483647, %v2206
        %vm2218 = vcmp.eq.f32.partialorder %v2217, 8.507059e+37
        %v2219 = vand.u32 %v2206, 2147483648
        %v2220 = vor.u32 1.1754944e-38, %v2219
        %v2221 = vsel %vm2218, %v2220, %v2216
        %v2222 = vmul.f32 1.0, %v2221
        %v2223 = vrcp.pop %v2207
        %v2224 = vmul.f32 %v2207, %v2223
        %v2225 = vsub.f32 1.0, %v2224
        %v2226 = vmul.f32 %v2223, %v2225
        %v2227 = vadd.f32 %v2223, %v2226
        %vm2228 = vweird.f32 %v2207
        %vm2229 = vweird.f32 %v2223
        %vm2230 = vmor %vm2228, %vm2229
        %v2231 = vsel %vm2230, %v2223, %v2227
        %v2232 = vand.u32 2147483647, %v2207
        %vm2233 = vcmp.eq.f32.partialorder %v2232, 8.507059e+37
        %v2234 = vand.u32 %v2207, 2147483648
        %v2235 = vor.u32 1.1754944e-38, %v2234
        %v2236 = vsel %vm2233, %v2235, %v2231
        %v2237 = vmul.f32 1.0, %v2236
        %2238 = vst.msk [vmem:[%s613] sm:$0xff] %vm718, %v2222
        %2239 = vst.msk [vmem:[%s613 + $0x8] sm:$0xff] %vm718, %v2237
        %s2240 = sand.u32 %s388, 1
        %s2241 = scalar_lea.sflag [#allocation5], %s2240
        %s2242 = sand.u32 %s388, 1
        %s2243 = smul.addr %s2242, 256
        %s2244 = scalar_lea.vmem [#allocation6], %s2243
        %s2245 = sand.u32 %s39, 1
        %s2246 = scalar_lea.sflag [#allocation8], %s2245
        %s2247 = sand.u32 %s414, 1
        %s2248 = smul.addr %s2247, 16
        %s2249 = scalar_lea.vmem [#allocation7], %s2248
        %s2250 = sand.u32 %s39, 1
        %s2251 = scalar_lea.sflag [#allocation8], %s2250
        %s2252 = sand.u32 %s440, 1
        %s2253 = smul.addr %s2252, 16
        %s2254 = scalar_lea.vmem [#allocation9], %s2253
        // Predicated region
        $region89: #{tpu_custom_call.1} parent=83 // pred_check
          %p2255 = pneg %p398
        $region90: #{tpu_custom_call.1} parent=83 // pred_check_branch
          %2257 = sbr.rel (%p2255) target = $region92
        $region91: #{tpu_custom_call.1} parent=83 // pred_region
          %2259 = vsyncadd %s2241, 0
          %s2260 = smul.addr %s39, 32
          %s2261 = smul.addr %s2260, 8
          %s2262 = scalar_lea.hbm %s16, %s2261
          %s2263 = sshll.u32 %s2244, 4
          %s2264 = int_to_ptr.vmem [resolvable:$true] %s2263
          %s2265 = sshll.u32 %s2262, 4
          %s2266 = int_to_ptr.hbm [resolvable:$true] %s2265
          %2271 = dma.vmem_to_hbm [thread:$0]  %s2264, 4096, %s2266, %s2241, 128, 128, 8
        $region92: #{tpu_custom_call.1} parent=83 // pred_fallthru
          _
        // Predicated region
        $region93: #{tpu_custom_call.1} parent=83 // pred_check
          %p2272 = pneg %p424
        $region94: #{tpu_custom_call.1} parent=83 // pred_check_branch
          %2274 = sbr.rel (%p2272) target = $region96
        $region95: #{tpu_custom_call.1} parent=83 // pred_region
          %2276 = vsyncadd %s2246, 0
          %s2277 = smul.addr %s39, 2
          %s2278 = smul.addr %s2277, 8
          %s2279 = scalar_lea.hbm %s17, %s2278
          %s2280 = sshll.u32 %s2249, 4
          %s2281 = int_to_ptr.vmem [resolvable:$true] %s2280
          %s2282 = sshll.u32 %s2279, 4
          %s2283 = int_to_ptr.hbm [resolvable:$true] %s2282
          %2288 = dma.vmem_to_hbm [thread:$0]  %s2281, 256, %s2283, %s2246, 128, 128, 8
        $region96: #{tpu_custom_call.1} parent=83 // pred_fallthru
          _
        // Predicated region
        $region97: #{tpu_custom_call.1} parent=83 // pred_check
          %p2289 = pneg %p450
        $region98: #{tpu_custom_call.1} parent=83 // pred_check_branch
          %2291 = sbr.rel (%p2289) target = $region100
        $region99: #{tpu_custom_call.1} parent=83 // pred_region
          %2293 = vsyncadd %s2251, 0
          %s2294 = smul.addr %s39, 2
          %s2295 = smul.addr %s2294, 8
          %s2296 = scalar_lea.hbm %s18, %s2295
          %s2297 = sshll.u32 %s2254, 4
          %s2298 = int_to_ptr.vmem [resolvable:$true] %s2297
          %s2299 = sshll.u32 %s2296, 4
          %s2300 = int_to_ptr.hbm [resolvable:$true] %s2299
          %2305 = dma.vmem_to_hbm [thread:$0]  %s2298, 256, %s2300, %s2251, 128, 128, 8
        $region100: #{tpu_custom_call.1} parent=83 // pred_fallthru
          _
      $region84: #{tpu_custom_call.1} parent=5 // pred_fallthru
        _
      %p2306 = scmp.le.s32.totalorder 2, %s34
      // Predicated region
      $region101: #{tpu_custom_call.1} parent=5 // pred_check
        %p2307 = pneg %p2306
      $region102: #{tpu_custom_call.1} parent=5 // pred_check_branch
        %2309 = sbr.rel (%p2307) target = $region104
      $region103: #{tpu_custom_call.1} parent=5 // pred_region
        %s2310 = ssub.s32 %s34, 2
        // Predicated region
        $region105: #{tpu_custom_call.1} parent=103 // pred_check
          %p2311 = pneg %p404
        $region106: #{tpu_custom_call.1} parent=103 // pred_check_branch
          %2313 = sbr.rel (%p2311) target = $region108
        $region107: #{tpu_custom_call.1} parent=103 // pred_region
          %s2314 = sand.u32 %s389, 1
          %s2315 = scalar_lea.sflag [#allocation5], %s2314
          %s2316 = sand.u32 %s389, 1
          %s2317 = smul.addr %s2316, 256
          %s2318 = scalar_lea.vmem [#allocation6], %s2317
          %2320 = dma.done %s2315, 4096
        $region108: #{tpu_custom_call.1} parent=103 // pred_fallthru
          _
        // Predicated region
        $region109: #{tpu_custom_call.1} parent=103 // pred_check
          %p2321 = pneg %p430
        $region110: #{tpu_custom_call.1} parent=103 // pred_check_branch
          %2323 = sbr.rel (%p2321) target = $region112
        $region111: #{tpu_custom_call.1} parent=103 // pred_region
          %s2324 = sand.u32 %s40, 1
          %s2325 = scalar_lea.sflag [#allocation8], %s2324
          %s2326 = sand.u32 %s415, 1
          %s2327 = smul.addr %s2326, 16
          %s2328 = scalar_lea.vmem [#allocation7], %s2327
          %2330 = dma.done %s2325, 256
        $region112: #{tpu_custom_call.1} parent=103 // pred_fallthru
          _
        // Predicated region
        $region113: #{tpu_custom_call.1} parent=103 // pred_check
          %p2331 = pneg %p456
        $region114: #{tpu_custom_call.1} parent=103 // pred_check_branch
          %2333 = sbr.rel (%p2331) target = $region116
        $region115: #{tpu_custom_call.1} parent=103 // pred_region
          %s2334 = sand.u32 %s40, 1
          %s2335 = scalar_lea.sflag [#allocation8], %s2334
          %s2336 = sand.u32 %s441, 1
          %s2337 = smul.addr %s2336, 16
          %s2338 = scalar_lea.vmem [#allocation9], %s2337
          %2340 = dma.done %s2335, 256
        $region116: #{tpu_custom_call.1} parent=103 // pred_fallthru
          _
      $region104: #{tpu_custom_call.1} parent=5 // pred_fallthru
        _
    $region6: #{tpu_custom_call.1} parent=1 // loop_footer
      %s38 = sadd.s32 1, %s34
    $region7: #{tpu_custom_call.1} parent=1 // loop_footer_branch
      %33 = sbr.rel target = $region3
    $region8: #{tpu_custom_call.1} parent=1 // loop_exit
      _
    %2341 = vsyncpa [#allocation4], 1
    %s2342 = scalar_lea.sflag [#allocation4], 1
    %2343 = vsyncpa %s2342, 1
    %2344 = vsyncpa [#allocation5], 1
    %s2345 = scalar_lea.sflag [#allocation5], 1
    %2346 = vsyncpa %s2345, 1
    %2347 = vsyncpa [#allocation8], 1
    %s2348 = scalar_lea.sflag [#allocation8], 1
    %2349 = vsyncpa %s2348, 1

</llo_original>
